<compile_context>
chip_gen: v7x
topology: tpu7x:2x2x1
jax: 0.10.0
libtpu: 0.0.40
codegen_flags: <defaults>
</compile_context>

<pallas_src>
import math

import jax
import jax.numpy as jnp
from jax.experimental import pallas as pl
from jax.experimental.pallas import tpu as pltpu

_LANES = 128
_VMEM = pl.BlockSpec(memory_space=pltpu.MemorySpace.VMEM)


def _round_up(n, m):
    return ((n + m - 1) // m) * m


# ----------------------------- Pallas kernel --------------------------------

def _predict_time_kernel(x_ref, wih_ref, whh_ref, b_ref, h0_ref, c0_ref,
                         wl2_ref, bl2_ref, y_ref, hn_ref, cn_ref):
    """Fused multi-layer LSTM recurrence + (Linear -> Sigmoid) epilogue."""
    L = x_ref.shape[0]
    FP = h0_ref.shape[1]            # lane-padded feature width (multiple of 128)
    num_layers = h0_ref.shape[0]

    layer_in = x_ref[...]                                   # (L, FP)
    for layer in range(num_layers):                          # static layer unroll
        wih = wih_ref[layer]                                 # (FP, 4*FP)
        whh = whh_ref[layer]                                 # (FP, 4*FP)
        b = b_ref[pl.ds(layer, 1), :]                        # (1, 4*FP)

        # Hoisted input projection: one batched matmul replaces L matvecs
        # on the serial critical path.
        xg = jnp.dot(layer_in, wih, preferred_element_type=jnp.float32) + b  # (L, 4*FP)

        h = h0_ref[pl.ds(layer, 1), :]                       # (1, FP)
        c = c0_ref[pl.ds(layer, 1), :]                       # (1, FP)

        hs = []
        for t in range(L):                                   # fully unrolled recurrence
            gates = xg[t:t + 1, :] + jnp.dot(h, whh, preferred_element_type=jnp.float32)
            # Lane-aligned 128-wide gate slices (gate order i, f, g, o).
            i_g = jax.nn.sigmoid(gates[:, 0 * FP:1 * FP])
            f_g = jax.nn.sigmoid(gates[:, 1 * FP:2 * FP])
            g_g = jnp.tanh(gates[:, 2 * FP:3 * FP])
            o_g = jax.nn.sigmoid(gates[:, 3 * FP:4 * FP])
            c = f_g * c + i_g * g_g
            h = o_g * jnp.tanh(c)
            hs.append(h)

        hn_ref[pl.ds(layer, 1), :] = h
        cn_ref[pl.ds(layer, 1), :] = c
        layer_in = jnp.concatenate(hs, axis=0)               # (L, FP), lane-dense

    # Fused dense + sigmoid epilogue: one MXU matmul, one unmasked lane-dense store.
    y = jnp.dot(layer_in, wl2_ref[...], preferred_element_type=jnp.float32) + bl2_ref[...]
    y_ref[...] = jax.nn.sigmoid(y)


@jax.jit
def _predict_time_forward(x_pad, wih, whh, b, h0, c0, wl2, bl2):
    L, FP = x_pad.shape
    num_layers = h0.shape[0]
    OP = wl2.shape[1]
    return pl.pallas_call(
        _predict_time_kernel,
        out_shape=(
            jax.ShapeDtypeStruct((L, OP), jnp.float32),          # y (lane-padded)
            jax.ShapeDtypeStruct((num_layers, FP), jnp.float32),  # h_n (padded)
            jax.ShapeDtypeStruct((num_layers, FP), jnp.float32),  # c_n (padded)
        ),
        in_specs=[_VMEM] * 8,
        out_specs=(_VMEM, _VMEM, _VMEM),
    )(x_pad, wih, whh, b, h0, c0, wl2, bl2)


# ---------------------- weight padding helpers (host side) ------------------

def _pad_gate_cols(w_t, rows_pad, H, FP):
    """(in_dim, 4H) -> (rows_pad, 4*FP); gate k's real columns land at k*FP..k*FP+H."""
    in_dim = w_t.shape[0]
    out = jnp.zeros((rows_pad, 4 * FP), jnp.float32)
    for g in range(4):
        out = out.at[:in_dim, g * FP:g * FP + H].set(w_t[:, g * H:(g + 1) * H])
    return out


def _pad_gate_vec(b, H, FP):
    out = jnp.zeros((4 * FP,), jnp.float32)
    for g in range(4):
        out = out.at[g * FP:g * FP + H].set(b[g * H:(g + 1) * H])
    return out


# ----------------------------- Module wrapper --------------------------------

class PredictTime:
    """JAX/Pallas re-implementation of the PyTorch PredictTime forward pass."""

    def __init__(self, input_size=1, output_size=1, hidden_layers=1,
                 hidden_size=1, seed=42):
        self.input_size = input_size
        self.output_size = output_size
        self.hidden_layers = hidden_layers
        self.hidden_size = hidden_size
        # lane-padded widths (features / output); uniform across layer 0 and 1+
        self.fp = _round_up(max(input_size, hidden_size), _LANES)
        self.op = _round_up(output_size, _LANES)

        H, FP = hidden_size, self.fp
        key = jax.random.PRNGKey(seed)
        k = 1.0 / math.sqrt(hidden_size)

        self.ref_layers = []          # unpadded params (for the pure-jnp reference)
        wih_pads, whh_pads, b_pads = [], [], []
        for layer in range(hidden_layers):
            in_dim = input_size if layer == 0 else hidden_size
            key, k1, k2, k3, k4 = jax.random.split(key, 5)
            w_ih = jax.random.uniform(k1, (4 * H, in_dim), jnp.float32, -k, k)
            w_hh = jax.random.uniform(k2, (4 * H, H), jnp.float32, -k, k)
            b_ih = jax.random.uniform(k3, (4 * H,), jnp.float32, -k, k)
            b_hh = jax.random.uniform(k4, (4 * H,), jnp.float32, -k, k)
            w_ih_t, w_hh_t, b_sum = w_ih.T, w_hh.T, b_ih + b_hh
            self.ref_layers.append(dict(w_ih_t=w_ih_t, w_hh_t=w_hh_t,
                                        b=b_sum.reshape(1, -1)))
            wih_pads.append(_pad_gate_cols(w_ih_t, FP, H, FP))
            whh_pads.append(_pad_gate_cols(w_hh_t, FP, H, FP))
            b_pads.append(_pad_gate_vec(b_sum, H, FP))

        self.wih = jnp.stack(wih_pads)     # (num_layers, FP, 4*FP)
        self.whh = jnp.stack(whh_pads)     # (num_layers, FP, 4*FP)
        self.b = jnp.stack(b_pads)         # (num_layers, 4*FP)

        # l1 / ReLU exist in the original module but are unused in forward(); skipped.
        key, k5, k6 = jax.random.split(key, 3)
        w_l2 = jax.random.uniform(k5, (output_size, hidden_size), jnp.float32, -k, k)
        b_l2 = jax.random.uniform(k6, (output_size,), jnp.float32, -k, k)
        self.ref_w_l2_t = w_l2.T                              # (H, O)
        self.ref_b_l2 = b_l2.reshape(1, -1)                   # (1, O)
        self.wl2_pad = (jnp.zeros((FP, self.op), jnp.float32)
                        .at[:H, :output_size].set(w_l2.T))
        self.bl2_pad = (jnp.zeros((1, self.op), jnp.float32)
                        .at[:, :output_size].set(b_l2))

        self.clean_state()

    # ----- state management (mirrors the PyTorch module) -----
    def _pad_state(self, s):
        return (jnp.zeros((self.hidden_layers, self.fp), jnp.float32)
                .at[:, :self.hidden_size].set(s))

    def clean_state(self):
        self.h_0 = jnp.zeros((self.hidden_layers, self.hidden_size), jnp.float32)
        self.c_0 = jnp.zeros((self.hidden_layers, self.hidden_size), jnp.float32)
        self.hidden = (self._pad_state(self.h_0), self._pad_state(self.c_0))

    def init_state(self):
        self.h_0 = self.hidden[0][:, :self.hidden_size]
        self.c_0 = self.hidden[1][:, :self.hidden_size]
        self.hidden = (self._pad_state(self.h_0), self._pad_state(self.c_0))

    def random_state(self, seed=0):
        k1, k2 = jax.random.split(jax.random.PRNGKey(seed))
        self.h_0 = jax.random.normal(k1, (self.hidden_layers, self.hidden_size), jnp.float32)
        self.c_0 = jax.random.normal(k2, (self.hidden_layers, self.hidden_size), jnp.float32)
        self.hidden = (self._pad_state(self.h_0), self._pad_state(self.c_0))

    # ----- forward -----
    def forward(self, x):
        """x: (seq_len, input_size), time-major, unbatched."""
        L = x.shape[0]
        x_pad = (jnp.zeros((L, self.fp), jnp.float32)
                 .at[:, :self.input_size].set(x))
        h0, c0 = self.hidden
        y_pad, hn, cn = _predict_time_forward(
            x_pad, self.wih, self.whh, self.b, h0, c0, self.wl2_pad, self.bl2_pad)
        # NOTE: input_output_aliases for h0/c0 was deliberately skipped: eager-mode
        # donation would invalidate the live self.h_0 / self.c_0 arrays for a
        # negligible gain at these sizes.
        self.hidden = (hn, cn)
        return y_pad[:, :self.output_size]


# ------------------------------ reference -----------------------------------

def _reference_forward(model, x):
    """Pure-jnp reference of the same forward pass (uses unpadded params)."""
    H = model.hidden_size
    layer_in = x
    for layer, p in enumerate(model.ref_layers):
        h = model.h_0[layer].reshape(1, -1)
        c = model.c_0[layer].reshape(1, -1)
        outs = []
        for t in range(x.shape[0]):
            g = layer_in[t:t + 1] @ p["w_ih_t"] + h @ p["w_hh_t"] + p["b"]
            i_g = jax.nn.sigmoid(g[:, 0:H])
            f_g = jax.nn.sigmoid(g[:, H:2 * H])
            g_g = jnp.tanh(g[:, 2 * H:3 * H])
            o_g = jax.nn.sigmoid(g[:, 3 * H:4 * H])
            c = f_g * c + i_g * g_g
            h = o_g * jnp.tanh(c)
            outs.append(h)
        layer_in = jnp.concatenate(outs, axis=0)
    return jax.nn.sigmoid(layer_in @ model.ref_w_l2_t + model.ref_b_l2)


# -------------------------------- main ---------------------------------------

if __name__ == "__main__":
    seq_len, input_size, hidden_size, output_size, hidden_layers = 8, 4, 32, 2, 2

    model = PredictTime(input_size=input_size, output_size=output_size,
                        hidden_layers=hidden_layers, hidden_size=hidden_size)

    x = jax.random.normal(jax.random.PRNGKey(0), (seq_len, input_size), jnp.float32)

    # Reference uses the pre-forward (zero) state, which forward() does not mutate
    # (only self.hidden is updated, mirroring the PyTorch module).
    y = model.forward(x)
    y = jax.block_until_ready(y)

    y_ref = _reference_forward(model, x)
    assert y.shape == (seq_len, output_size)
    assert jnp.allclose(y, y_ref, atol=1e-5, rtol=1e-5), "mismatch vs reference"

    print("KERNEL_OK")
</pallas_src>

<mosaic_0001>
module attributes {stable_mosaic.version = 11 : i64} {
  func.func @_predict_time_kernel(%arg0: memref<8x128xf32, #tpu.memory_space<vmem>>, %arg1: memref<2x128x512xf32, #tpu.memory_space<vmem>>, %arg2: memref<2x128x512xf32, #tpu.memory_space<vmem>>, %arg3: memref<2x512xf32, #tpu.memory_space<vmem>>, %arg4: memref<2x128xf32, #tpu.memory_space<vmem>>, %arg5: memref<2x128xf32, #tpu.memory_space<vmem>>, %arg6: memref<128x128xf32, #tpu.memory_space<vmem>>, %arg7: memref<1x128xf32, #tpu.memory_space<vmem>>, %arg8: memref<8x128xf32, #tpu.memory_space<vmem>>, %arg9: memref<2x128xf32, #tpu.memory_space<vmem>>, %arg10: memref<2x128xf32, #tpu.memory_space<vmem>>) attributes {dimension_semantics = [], scalar_prefetch = 0 : i64, scratch_operands = 0 : i64, tpu.core_type = #tpu.core_type<tc>} {
    %c0 = arith.constant 0 : index
    %c0_0 = arith.constant 0 : index
    %0 = vector.load %arg0[%c0, %c0_0] : memref<8x128xf32, #tpu.memory_space<vmem>>, vector<8x128xf32>
    %c0_1 = arith.constant 0 : index
    %c0_2 = arith.constant 0 : index
    %c0_3 = arith.constant 0 : index
    %1 = vector.load %arg1[%c0_1, %c0_2, %c0_3] : memref<2x128x512xf32, #tpu.memory_space<vmem>>, vector<1x128x512xf32>
    %2 = vector.shape_cast %1 : vector<1x128x512xf32> to vector<128x512xf32>
    %c0_4 = arith.constant 0 : index
    %c0_5 = arith.constant 0 : index
    %c0_6 = arith.constant 0 : index
    %3 = vector.load %arg2[%c0_4, %c0_5, %c0_6] : memref<2x128x512xf32, #tpu.memory_space<vmem>>, vector<1x128x512xf32>
    %4 = vector.shape_cast %3 : vector<1x128x512xf32> to vector<128x512xf32>
    %c0_7 = arith.constant 0 : index
    %c0_8 = arith.constant 0 : index
    %5 = vector.load %arg3[%c0_7, %c0_8] : memref<2x512xf32, #tpu.memory_space<vmem>>, vector<1x512xf32>
    %cst = arith.constant dense<0.000000e+00> : vector<8x512xf32>
    %6 = tpu.matmul %0, %2, %cst {dimension_numbers = #tpu.dot_dimension_numbers<[1], [0], [0], [1], [0, 0, 1, 1], [], []>} : vector<8x128xf32>, vector<128x512xf32>, vector<8x512xf32> -> vector<8x512xf32>
    %7 = vector.broadcast %5 : vector<1x512xf32> to vector<8x512xf32>
    %8 = arith.addf %6, %7 : vector<8x512xf32>
    %c0_9 = arith.constant 0 : index
    %c0_10 = arith.constant 0 : index
    %9 = vector.load %arg4[%c0_9, %c0_10] : memref<2x128xf32, #tpu.memory_space<vmem>>, vector<1x128xf32>
    %c0_11 = arith.constant 0 : index
    %c0_12 = arith.constant 0 : index
    %10 = vector.load %arg5[%c0_11, %c0_12] : memref<2x128xf32, #tpu.memory_space<vmem>>, vector<1x128xf32>
    %11 = vector.extract_strided_slice %8 {offsets = [0, 0], sizes = [1, 512], strides = [1, 1]} : vector<8x512xf32> to vector<1x512xf32>
    %cst_13 = arith.constant dense<0.000000e+00> : vector<1x512xf32>
    %12 = tpu.matmul %9, %4, %cst_13 {dimension_numbers = #tpu.dot_dimension_numbers<[1], [0], [0], [1], [0, 0, 1, 1], [], []>} : vector<1x128xf32>, vector<128x512xf32>, vector<1x512xf32> -> vector<1x512xf32>
    %13 = arith.addf %11, %12 : vector<1x512xf32>
    %14 = vector.extract_strided_slice %13 {offsets = [0, 0], sizes = [1, 128], strides = [1, 1]} : vector<1x512xf32> to vector<1x128xf32>
    %15 = arith.negf %14 : vector<1x128xf32>
    %16 = math.exp %15 : vector<1x128xf32>
    %cst_14 = arith.constant 1.000000e+00 : f32
    %17 = vector.broadcast %cst_14 : f32 to vector<1x128xf32>
    %18 = arith.addf %17, %16 : vector<1x128xf32>
    %19 = arith.divf %17, %18 : vector<1x128xf32>
    %20 = vector.extract_strided_slice %13 {offsets = [0, 128], sizes = [1, 128], strides = [1, 1]} : vector<1x512xf32> to vector<1x128xf32>
    %21 = arith.negf %20 : vector<1x128xf32>
    %22 = math.exp %21 : vector<1x128xf32>
    %cst_15 = arith.constant 1.000000e+00 : f32
    %23 = vector.broadcast %cst_15 : f32 to vector<1x128xf32>
    %24 = arith.addf %23, %22 : vector<1x128xf32>
    %25 = arith.divf %23, %24 : vector<1x128xf32>
    %26 = vector.extract_strided_slice %13 {offsets = [0, 256], sizes = [1, 128], strides = [1, 1]} : vector<1x512xf32> to vector<1x128xf32>
    %27 = math.tanh %26 : vector<1x128xf32>
    %28 = vector.extract_strided_slice %13 {offsets = [0, 384], sizes = [1, 128], strides = [1, 1]} : vector<1x512xf32> to vector<1x128xf32>
    %29 = arith.negf %28 : vector<1x128xf32>
    %30 = math.exp %29 : vector<1x128xf32>
    %cst_16 = arith.constant 1.000000e+00 : f32
    %31 = vector.broadcast %cst_16 : f32 to vector<1x128xf32>
    %32 = arith.addf %31, %30 : vector<1x128xf32>
    %33 = arith.divf %31, %32 : vector<1x128xf32>
    %34 = arith.mulf %25, %10 : vector<1x128xf32>
    %35 = arith.mulf %19, %27 : vector<1x128xf32>
    %36 = arith.addf %34, %35 : vector<1x128xf32>
    %37 = math.tanh %36 : vector<1x128xf32>
    %38 = arith.mulf %33, %37 : vector<1x128xf32>
    %39 = vector.extract_strided_slice %8 {offsets = [1, 0], sizes = [1, 512], strides = [1, 1]} : vector<8x512xf32> to vector<1x512xf32>
    %cst_17 = arith.constant dense<0.000000e+00> : vector<1x512xf32>
    %40 = tpu.matmul %38, %4, %cst_17 {dimension_numbers = #tpu.dot_dimension_numbers<[1], [0], [0], [1], [0, 0, 1, 1], [], []>} : vector<1x128xf32>, vector<128x512xf32>, vector<1x512xf32> -> vector<1x512xf32>
    %41 = arith.addf %39, %40 : vector<1x512xf32>
    %42 = vector.extract_strided_slice %41 {offsets = [0, 0], sizes = [1, 128], strides = [1, 1]} : vector<1x512xf32> to vector<1x128xf32>
    %43 = arith.negf %42 : vector<1x128xf32>
    %44 = math.exp %43 : vector<1x128xf32>
    %cst_18 = arith.constant 1.000000e+00 : f32
    %45 = vector.broadcast %cst_18 : f32 to vector<1x128xf32>
    %46 = arith.addf %45, %44 : vector<1x128xf32>
    %47 = arith.divf %45, %46 : vector<1x128xf32>
    %48 = vector.extract_strided_slice %41 {offsets = [0, 128], sizes = [1, 128], strides = [1, 1]} : vector<1x512xf32> to vector<1x128xf32>
    %49 = arith.negf %48 : vector<1x128xf32>
    %50 = math.exp %49 : vector<1x128xf32>
    %cst_19 = arith.constant 1.000000e+00 : f32
    %51 = vector.broadcast %cst_19 : f32 to vector<1x128xf32>
    %52 = arith.addf %51, %50 : vector<1x128xf32>
    %53 = arith.divf %51, %52 : vector<1x128xf32>
    %54 = vector.extract_strided_slice %41 {offsets = [0, 256], sizes = [1, 128], strides = [1, 1]} : vector<1x512xf32> to vector<1x128xf32>
    %55 = math.tanh %54 : vector<1x128xf32>
    %56 = vector.extract_strided_slice %41 {offsets = [0, 384], sizes = [1, 128], strides = [1, 1]} : vector<1x512xf32> to vector<1x128xf32>
    %57 = arith.negf %56 : vector<1x128xf32>
    %58 = math.exp %57 : vector<1x128xf32>
    %cst_20 = arith.constant 1.000000e+00 : f32
    %59 = vector.broadcast %cst_20 : f32 to vector<1x128xf32>
    %60 = arith.addf %59, %58 : vector<1x128xf32>
    %61 = arith.divf %59, %60 : vector<1x128xf32>
    %62 = arith.mulf %53, %36 : vector<1x128xf32>
    %63 = arith.mulf %47, %55 : vector<1x128xf32>
    %64 = arith.addf %62, %63 : vector<1x128xf32>
    %65 = math.tanh %64 : vector<1x128xf32>
    %66 = arith.mulf %61, %65 : vector<1x128xf32>
    %67 = vector.extract_strided_slice %8 {offsets = [2, 0], sizes = [1, 512], strides = [1, 1]} : vector<8x512xf32> to vector<1x512xf32>
    %cst_21 = arith.constant dense<0.000000e+00> : vector<1x512xf32>
    %68 = tpu.matmul %66, %4, %cst_21 {dimension_numbers = #tpu.dot_dimension_numbers<[1], [0], [0], [1], [0, 0, 1, 1], [], []>} : vector<1x128xf32>, vector<128x512xf32>, vector<1x512xf32> -> vector<1x512xf32>
    %69 = arith.addf %67, %68 : vector<1x512xf32>
    %70 = vector.extract_strided_slice %69 {offsets = [0, 0], sizes = [1, 128], strides = [1, 1]} : vector<1x512xf32> to vector<1x128xf32>
    %71 = arith.negf %70 : vector<1x128xf32>
    %72 = math.exp %71 : vector<1x128xf32>
    %cst_22 = arith.constant 1.000000e+00 : f32
    %73 = vector.broadcast %cst_22 : f32 to vector<1x128xf32>
    %74 = arith.addf %73, %72 : vector<1x128xf32>
    %75 = arith.divf %73, %74 : vector<1x128xf32>
    %76 = vector.extract_strided_slice %69 {offsets = [0, 128], sizes = [1, 128], strides = [1, 1]} : vector<1x512xf32> to vector<1x128xf32>
    %77 = arith.negf %76 : vector<1x128xf32>
    %78 = math.exp %77 : vector<1x128xf32>
    %cst_23 = arith.constant 1.000000e+00 : f32
    %79 = vector.broadcast %cst_23 : f32 to vector<1x128xf32>
    %80 = arith.addf %79, %78 : vector<1x128xf32>
    %81 = arith.divf %79, %80 : vector<1x128xf32>
    %82 = vector.extract_strided_slice %69 {offsets = [0, 256], sizes = [1, 128], strides = [1, 1]} : vector<1x512xf32> to vector<1x128xf32>
    %83 = math.tanh %82 : vector<1x128xf32>
    %84 = vector.extract_strided_slice %69 {offsets = [0, 384], sizes = [1, 128], strides = [1, 1]} : vector<1x512xf32> to vector<1x128xf32>
    %85 = arith.negf %84 : vector<1x128xf32>
    %86 = math.exp %85 : vector<1x128xf32>
    %cst_24 = arith.constant 1.000000e+00 : f32
    %87 = vector.broadcast %cst_24 : f32 to vector<1x128xf32>
    %88 = arith.addf %87, %86 : vector<1x128xf32>
    %89 = arith.divf %87, %88 : vector<1x128xf32>
    %90 = arith.mulf %81, %64 : vector<1x128xf32>
    %91 = arith.mulf %75, %83 : vector<1x128xf32>
    %92 = arith.addf %90, %91 : vector<1x128xf32>
    %93 = math.tanh %92 : vector<1x128xf32>
    %94 = arith.mulf %89, %93 : vector<1x128xf32>
    %95 = vector.extract_strided_slice %8 {offsets = [3, 0], sizes = [1, 512], strides = [1, 1]} : vector<8x512xf32> to vector<1x512xf32>
    %cst_25 = arith.constant dense<0.000000e+00> : vector<1x512xf32>
    %96 = tpu.matmul %94, %4, %cst_25 {dimension_numbers = #tpu.dot_dimension_numbers<[1], [0], [0], [1], [0, 0, 1, 1], [], []>} : vector<1x128xf32>, vector<128x512xf32>, vector<1x512xf32> -> vector<1x512xf32>
    %97 = arith.addf %95, %96 : vector<1x512xf32>
    %98 = vector.extract_strided_slice %97 {offsets = [0, 0], sizes = [1, 128], strides = [1, 1]} : vector<1x512xf32> to vector<1x128xf32>
    %99 = arith.negf %98 : vector<1x128xf32>
    %100 = math.exp %99 : vector<1x128xf32>
    %cst_26 = arith.constant 1.000000e+00 : f32
    %101 = vector.broadcast %cst_26 : f32 to vector<1x128xf32>
    %102 = arith.addf %101, %100 : vector<1x128xf32>
    %103 = arith.divf %101, %102 : vector<1x128xf32>
    %104 = vector.extract_strided_slice %97 {offsets = [0, 128], sizes = [1, 128], strides = [1, 1]} : vector<1x512xf32> to vector<1x128xf32>
    %105 = arith.negf %104 : vector<1x128xf32>
    %106 = math.exp %105 : vector<1x128xf32>
    %cst_27 = arith.constant 1.000000e+00 : f32
    %107 = vector.broadcast %cst_27 : f32 to vector<1x128xf32>
    %108 = arith.addf %107, %106 : vector<1x128xf32>
    %109 = arith.divf %107, %108 : vector<1x128xf32>
    %110 = vector.extract_strided_slice %97 {offsets = [0, 256], sizes = [1, 128], strides = [1, 1]} : vector<1x512xf32> to vector<1x128xf32>
    %111 = math.tanh %110 : vector<1x128xf32>
    %112 = vector.extract_strided_slice %97 {offsets = [0, 384], sizes = [1, 128], strides = [1, 1]} : vector<1x512xf32> to vector<1x128xf32>
    %113 = arith.negf %112 : vector<1x128xf32>
    %114 = math.exp %113 : vector<1x128xf32>
    %cst_28 = arith.constant 1.000000e+00 : f32
    %115 = vector.broadcast %cst_28 : f32 to vector<1x128xf32>
    %116 = arith.addf %115, %114 : vector<1x128xf32>
    %117 = arith.divf %115, %116 : vector<1x128xf32>
    %118 = arith.mulf %109, %92 : vector<1x128xf32>
    %119 = arith.mulf %103, %111 : vector<1x128xf32>
    %120 = arith.addf %118, %119 : vector<1x128xf32>
    %121 = math.tanh %120 : vector<1x128xf32>
    %122 = arith.mulf %117, %121 : vector<1x128xf32>
    %123 = vector.extract_strided_slice %8 {offsets = [4, 0], sizes = [1, 512], strides = [1, 1]} : vector<8x512xf32> to vector<1x512xf32>
    %cst_29 = arith.constant dense<0.000000e+00> : vector<1x512xf32>
    %124 = tpu.matmul %122, %4, %cst_29 {dimension_numbers = #tpu.dot_dimension_numbers<[1], [0], [0], [1], [0, 0, 1, 1], [], []>} : vector<1x128xf32>, vector<128x512xf32>, vector<1x512xf32> -> vector<1x512xf32>
    %125 = arith.addf %123, %124 : vector<1x512xf32>
    %126 = vector.extract_strided_slice %125 {offsets = [0, 0], sizes = [1, 128], strides = [1, 1]} : vector<1x512xf32> to vector<1x128xf32>
    %127 = arith.negf %126 : vector<1x128xf32>
    %128 = math.exp %127 : vector<1x128xf32>
    %cst_30 = arith.constant 1.000000e+00 : f32
    %129 = vector.broadcast %cst_30 : f32 to vector<1x128xf32>
    %130 = arith.addf %129, %128 : vector<1x128xf32>
    %131 = arith.divf %129, %130 : vector<1x128xf32>
    %132 = vector.extract_strided_slice %125 {offsets = [0, 128], sizes = [1, 128], strides = [1, 1]} : vector<1x512xf32> to vector<1x128xf32>
    %133 = arith.negf %132 : vector<1x128xf32>
    %134 = math.exp %133 : vector<1x128xf32>
    %cst_31 = arith.constant 1.000000e+00 : f32
    %135 = vector.broadcast %cst_31 : f32 to vector<1x128xf32>
    %136 = arith.addf %135, %134 : vector<1x128xf32>
    %137 = arith.divf %135, %136 : vector<1x128xf32>
    %138 = vector.extract_strided_slice %125 {offsets = [0, 256], sizes = [1, 128], strides = [1, 1]} : vector<1x512xf32> to vector<1x128xf32>
    %139 = math.tanh %138 : vector<1x128xf32>
    %140 = vector.extract_strided_slice %125 {offsets = [0, 384], sizes = [1, 128], strides = [1, 1]} : vector<1x512xf32> to vector<1x128xf32>
    %141 = arith.negf %140 : vector<1x128xf32>
    %142 = math.exp %141 : vector<1x128xf32>
    %cst_32 = arith.constant 1.000000e+00 : f32
    %143 = vector.broadcast %cst_32 : f32 to vector<1x128xf32>
    %144 = arith.addf %143, %142 : vector<1x128xf32>
    %145 = arith.divf %143, %144 : vector<1x128xf32>
    %146 = arith.mulf %137, %120 : vector<1x128xf32>
    %147 = arith.mulf %131, %139 : vector<1x128xf32>
    %148 = arith.addf %146, %147 : vector<1x128xf32>
    %149 = math.tanh %148 : vector<1x128xf32>
    %150 = arith.mulf %145, %149 : vector<1x128xf32>
    %151 = vector.extract_strided_slice %8 {offsets = [5, 0], sizes = [1, 512], strides = [1, 1]} : vector<8x512xf32> to vector<1x512xf32>
    %cst_33 = arith.constant dense<0.000000e+00> : vector<1x512xf32>
    %152 = tpu.matmul %150, %4, %cst_33 {dimension_numbers = #tpu.dot_dimension_numbers<[1], [0], [0], [1], [0, 0, 1, 1], [], []>} : vector<1x128xf32>, vector<128x512xf32>, vector<1x512xf32> -> vector<1x512xf32>
    %153 = arith.addf %151, %152 : vector<1x512xf32>
    %154 = vector.extract_strided_slice %153 {offsets = [0, 0], sizes = [1, 128], strides = [1, 1]} : vector<1x512xf32> to vector<1x128xf32>
    %155 = arith.negf %154 : vector<1x128xf32>
    %156 = math.exp %155 : vector<1x128xf32>
    %cst_34 = arith.constant 1.000000e+00 : f32
    %157 = vector.broadcast %cst_34 : f32 to vector<1x128xf32>
    %158 = arith.addf %157, %156 : vector<1x128xf32>
    %159 = arith.divf %157, %158 : vector<1x128xf32>
    %160 = vector.extract_strided_slice %153 {offsets = [0, 128], sizes = [1, 128], strides = [1, 1]} : vector<1x512xf32> to vector<1x128xf32>
    %161 = arith.negf %160 : vector<1x128xf32>
    %162 = math.exp %161 : vector<1x128xf32>
    %cst_35 = arith.constant 1.000000e+00 : f32
    %163 = vector.broadcast %cst_35 : f32 to vector<1x128xf32>
    %164 = arith.addf %163, %162 : vector<1x128xf32>
    %165 = arith.divf %163, %164 : vector<1x128xf32>
    %166 = vector.extract_strided_slice %153 {offsets = [0, 256], sizes = [1, 128], strides = [1, 1]} : vector<1x512xf32> to vector<1x128xf32>
    %167 = math.tanh %166 : vector<1x128xf32>
    %168 = vector.extract_strided_slice %153 {offsets = [0, 384], sizes = [1, 128], strides = [1, 1]} : vector<1x512xf32> to vector<1x128xf32>
    %169 = arith.negf %168 : vector<1x128xf32>
    %170 = math.exp %169 : vector<1x128xf32>
    %cst_36 = arith.constant 1.000000e+00 : f32
    %171 = vector.broadcast %cst_36 : f32 to vector<1x128xf32>
    %172 = arith.addf %171, %170 : vector<1x128xf32>
    %173 = arith.divf %171, %172 : vector<1x128xf32>
    %174 = arith.mulf %165, %148 : vector<1x128xf32>
    %175 = arith.mulf %159, %167 : vector<1x128xf32>
    %176 = arith.addf %174, %175 : vector<1x128xf32>
    %177 = math.tanh %176 : vector<1x128xf32>
    %178 = arith.mulf %173, %177 : vector<1x128xf32>
    %179 = vector.extract_strided_slice %8 {offsets = [6, 0], sizes = [1, 512], strides = [1, 1]} : vector<8x512xf32> to vector<1x512xf32>
    %cst_37 = arith.constant dense<0.000000e+00> : vector<1x512xf32>
    %180 = tpu.matmul %178, %4, %cst_37 {dimension_numbers = #tpu.dot_dimension_numbers<[1], [0], [0], [1], [0, 0, 1, 1], [], []>} : vector<1x128xf32>, vector<128x512xf32>, vector<1x512xf32> -> vector<1x512xf32>
    %181 = arith.addf %179, %180 : vector<1x512xf32>
    %182 = vector.extract_strided_slice %181 {offsets = [0, 0], sizes = [1, 128], strides = [1, 1]} : vector<1x512xf32> to vector<1x128xf32>
    %183 = arith.negf %182 : vector<1x128xf32>
    %184 = math.exp %183 : vector<1x128xf32>
    %cst_38 = arith.constant 1.000000e+00 : f32
    %185 = vector.broadcast %cst_38 : f32 to vector<1x128xf32>
    %186 = arith.addf %185, %184 : vector<1x128xf32>
    %187 = arith.divf %185, %186 : vector<1x128xf32>
    %188 = vector.extract_strided_slice %181 {offsets = [0, 128], sizes = [1, 128], strides = [1, 1]} : vector<1x512xf32> to vector<1x128xf32>
    %189 = arith.negf %188 : vector<1x128xf32>
    %190 = math.exp %189 : vector<1x128xf32>
    %cst_39 = arith.constant 1.000000e+00 : f32
    %191 = vector.broadcast %cst_39 : f32 to vector<1x128xf32>
    %192 = arith.addf %191, %190 : vector<1x128xf32>
    %193 = arith.divf %191, %192 : vector<1x128xf32>
    %194 = vector.extract_strided_slice %181 {offsets = [0, 256], sizes = [1, 128], strides = [1, 1]} : vector<1x512xf32> to vector<1x128xf32>
    %195 = math.tanh %194 : vector<1x128xf32>
    %196 = vector.extract_strided_slice %181 {offsets = [0, 384], sizes = [1, 128], strides = [1, 1]} : vector<1x512xf32> to vector<1x128xf32>
    %197 = arith.negf %196 : vector<1x128xf32>
    %198 = math.exp %197 : vector<1x128xf32>
    %cst_40 = arith.constant 1.000000e+00 : f32
    %199 = vector.broadcast %cst_40 : f32 to vector<1x128xf32>
    %200 = arith.addf %199, %198 : vector<1x128xf32>
    %201 = arith.divf %199, %200 : vector<1x128xf32>
    %202 = arith.mulf %193, %176 : vector<1x128xf32>
    %203 = arith.mulf %187, %195 : vector<1x128xf32>
    %204 = arith.addf %202, %203 : vector<1x128xf32>
    %205 = math.tanh %204 : vector<1x128xf32>
    %206 = arith.mulf %201, %205 : vector<1x128xf32>
    %207 = vector.extract_strided_slice %8 {offsets = [7, 0], sizes = [1, 512], strides = [1, 1]} : vector<8x512xf32> to vector<1x512xf32>
    %cst_41 = arith.constant dense<0.000000e+00> : vector<1x512xf32>
    %208 = tpu.matmul %206, %4, %cst_41 {dimension_numbers = #tpu.dot_dimension_numbers<[1], [0], [0], [1], [0, 0, 1, 1], [], []>} : vector<1x128xf32>, vector<128x512xf32>, vector<1x512xf32> -> vector<1x512xf32>
    %209 = arith.addf %207, %208 : vector<1x512xf32>
    %210 = vector.extract_strided_slice %209 {offsets = [0, 0], sizes = [1, 128], strides = [1, 1]} : vector<1x512xf32> to vector<1x128xf32>
    %211 = arith.negf %210 : vector<1x128xf32>
    %212 = math.exp %211 : vector<1x128xf32>
    %cst_42 = arith.constant 1.000000e+00 : f32
    %213 = vector.broadcast %cst_42 : f32 to vector<1x128xf32>
    %214 = arith.addf %213, %212 : vector<1x128xf32>
    %215 = arith.divf %213, %214 : vector<1x128xf32>
    %216 = vector.extract_strided_slice %209 {offsets = [0, 128], sizes = [1, 128], strides = [1, 1]} : vector<1x512xf32> to vector<1x128xf32>
    %217 = arith.negf %216 : vector<1x128xf32>
    %218 = math.exp %217 : vector<1x128xf32>
    %cst_43 = arith.constant 1.000000e+00 : f32
    %219 = vector.broadcast %cst_43 : f32 to vector<1x128xf32>
    %220 = arith.addf %219, %218 : vector<1x128xf32>
    %221 = arith.divf %219, %220 : vector<1x128xf32>
    %222 = vector.extract_strided_slice %209 {offsets = [0, 256], sizes = [1, 128], strides = [1, 1]} : vector<1x512xf32> to vector<1x128xf32>
    %223 = math.tanh %222 : vector<1x128xf32>
    %224 = vector.extract_strided_slice %209 {offsets = [0, 384], sizes = [1, 128], strides = [1, 1]} : vector<1x512xf32> to vector<1x128xf32>
    %225 = arith.negf %224 : vector<1x128xf32>
    %226 = math.exp %225 : vector<1x128xf32>
    %cst_44 = arith.constant 1.000000e+00 : f32
    %227 = vector.broadcast %cst_44 : f32 to vector<1x128xf32>
    %228 = arith.addf %227, %226 : vector<1x128xf32>
    %229 = arith.divf %227, %228 : vector<1x128xf32>
    %230 = arith.mulf %221, %204 : vector<1x128xf32>
    %231 = arith.mulf %215, %223 : vector<1x128xf32>
    %232 = arith.addf %230, %231 : vector<1x128xf32>
    %233 = math.tanh %232 : vector<1x128xf32>
    %234 = arith.mulf %229, %233 : vector<1x128xf32>
    %c0_45 = arith.constant 0 : index
    %c0_46 = arith.constant 0 : index
    %235 = vector.load %arg9[%c0_45, %c0_46] : memref<2x128xf32, #tpu.memory_space<vmem>>, vector<1x128xf32>
    tpu.vector_store %arg9[%c0_45, %c0_46], %234 {strides = array<i32>} : memref<2x128xf32, #tpu.memory_space<vmem>>, vector<1x128xf32>,
    %c0_47 = arith.constant 0 : index
    %c0_48 = arith.constant 0 : index
    %236 = vector.load %arg10[%c0_47, %c0_48] : memref<2x128xf32, #tpu.memory_space<vmem>>, vector<1x128xf32>
    tpu.vector_store %arg10[%c0_47, %c0_48], %232 {strides = array<i32>} : memref<2x128xf32, #tpu.memory_space<vmem>>, vector<1x128xf32>,
    %237 = tpu.concatenate %38, %66, %94, %122, %150, %178, %206, %234 in 0 : vector<1x128xf32>, vector<1x128xf32>, vector<1x128xf32>, vector<1x128xf32>, vector<1x128xf32>, vector<1x128xf32>, vector<1x128xf32>, vector<1x128xf32> -> vector<8x128xf32>
    %c1 = arith.constant 1 : index
    %c0_49 = arith.constant 0 : index
    %c0_50 = arith.constant 0 : index
    %238 = vector.load %arg1[%c1, %c0_49, %c0_50] : memref<2x128x512xf32, #tpu.memory_space<vmem>>, vector<1x128x512xf32>
    %239 = vector.shape_cast %238 : vector<1x128x512xf32> to vector<128x512xf32>
    %c1_51 = arith.constant 1 : index
    %c0_52 = arith.constant 0 : index
    %c0_53 = arith.constant 0 : index
    %240 = vector.load %arg2[%c1_51, %c0_52, %c0_53] : memref<2x128x512xf32, #tpu.memory_space<vmem>>, vector<1x128x512xf32>
    %241 = vector.shape_cast %240 : vector<1x128x512xf32> to vector<128x512xf32>
    %c1_54 = arith.constant 1 : index
    %c0_55 = arith.constant 0 : index
    %242 = vector.load %arg3[%c1_54, %c0_55] : memref<2x512xf32, #tpu.memory_space<vmem>>, vector<1x512xf32>
    %cst_56 = arith.constant dense<0.000000e+00> : vector<8x512xf32>
    %243 = tpu.matmul %237, %239, %cst_56 {dimension_numbers = #tpu.dot_dimension_numbers<[1], [0], [0], [1], [0, 0, 1, 1], [], []>} : vector<8x128xf32>, vector<128x512xf32>, vector<8x512xf32> -> vector<8x512xf32>
    %244 = vector.broadcast %242 : vector<1x512xf32> to vector<8x512xf32>
    %245 = arith.addf %243, %244 : vector<8x512xf32>
    %c1_57 = arith.constant 1 : index
    %c0_58 = arith.constant 0 : index
    %246 = vector.load %arg4[%c1_57, %c0_58] : memref<2x128xf32, #tpu.memory_space<vmem>>, vector<1x128xf32>
    %c1_59 = arith.constant 1 : index
    %c0_60 = arith.constant 0 : index
    %247 = vector.load %arg5[%c1_59, %c0_60] : memref<2x128xf32, #tpu.memory_space<vmem>>, vector<1x128xf32>
    %248 = vector.extract_strided_slice %245 {offsets = [0, 0], sizes = [1, 512], strides = [1, 1]} : vector<8x512xf32> to vector<1x512xf32>
    %cst_61 = arith.constant dense<0.000000e+00> : vector<1x512xf32>
    %249 = tpu.matmul %246, %241, %cst_61 {dimension_numbers = #tpu.dot_dimension_numbers<[1], [0], [0], [1], [0, 0, 1, 1], [], []>} : vector<1x128xf32>, vector<128x512xf32>, vector<1x512xf32> -> vector<1x512xf32>
    %250 = arith.addf %248, %249 : vector<1x512xf32>
    %251 = vector.extract_strided_slice %250 {offsets = [0, 0], sizes = [1, 128], strides = [1, 1]} : vector<1x512xf32> to vector<1x128xf32>
    %252 = arith.negf %251 : vector<1x128xf32>
    %253 = math.exp %252 : vector<1x128xf32>
    %cst_62 = arith.constant 1.000000e+00 : f32
    %254 = vector.broadcast %cst_62 : f32 to vector<1x128xf32>
    %255 = arith.addf %254, %253 : vector<1x128xf32>
    %256 = arith.divf %254, %255 : vector<1x128xf32>
    %257 = vector.extract_strided_slice %250 {offsets = [0, 128], sizes = [1, 128], strides = [1, 1]} : vector<1x512xf32> to vector<1x128xf32>
    %258 = arith.negf %257 : vector<1x128xf32>
    %259 = math.exp %258 : vector<1x128xf32>
    %cst_63 = arith.constant 1.000000e+00 : f32
    %260 = vector.broadcast %cst_63 : f32 to vector<1x128xf32>
    %261 = arith.addf %260, %259 : vector<1x128xf32>
    %262 = arith.divf %260, %261 : vector<1x128xf32>
    %263 = vector.extract_strided_slice %250 {offsets = [0, 256], sizes = [1, 128], strides = [1, 1]} : vector<1x512xf32> to vector<1x128xf32>
    %264 = math.tanh %263 : vector<1x128xf32>
    %265 = vector.extract_strided_slice %250 {offsets = [0, 384], sizes = [1, 128], strides = [1, 1]} : vector<1x512xf32> to vector<1x128xf32>
    %266 = arith.negf %265 : vector<1x128xf32>
    %267 = math.exp %266 : vector<1x128xf32>
    %cst_64 = arith.constant 1.000000e+00 : f32
    %268 = vector.broadcast %cst_64 : f32 to vector<1x128xf32>
    %269 = arith.addf %268, %267 : vector<1x128xf32>
    %270 = arith.divf %268, %269 : vector<1x128xf32>
    %271 = arith.mulf %262, %247 : vector<1x128xf32>
    %272 = arith.mulf %256, %264 : vector<1x128xf32>
    %273 = arith.addf %271, %272 : vector<1x128xf32>
    %274 = math.tanh %273 : vector<1x128xf32>
    %275 = arith.mulf %270, %274 : vector<1x128xf32>
    %276 = vector.extract_strided_slice %245 {offsets = [1, 0], sizes = [1, 512], strides = [1, 1]} : vector<8x512xf32> to vector<1x512xf32>
    %cst_65 = arith.constant dense<0.000000e+00> : vector<1x512xf32>
    %277 = tpu.matmul %275, %241, %cst_65 {dimension_numbers = #tpu.dot_dimension_numbers<[1], [0], [0], [1], [0, 0, 1, 1], [], []>} : vector<1x128xf32>, vector<128x512xf32>, vector<1x512xf32> -> vector<1x512xf32>
    %278 = arith.addf %276, %277 : vector<1x512xf32>
    %279 = vector.extract_strided_slice %278 {offsets = [0, 0], sizes = [1, 128], strides = [1, 1]} : vector<1x512xf32> to vector<1x128xf32>
    %280 = arith.negf %279 : vector<1x128xf32>
    %281 = math.exp %280 : vector<1x128xf32>
    %cst_66 = arith.constant 1.000000e+00 : f32
    %282 = vector.broadcast %cst_66 : f32 to vector<1x128xf32>
    %283 = arith.addf %282, %281 : vector<1x128xf32>
    %284 = arith.divf %282, %283 : vector<1x128xf32>
    %285 = vector.extract_strided_slice %278 {offsets = [0, 128], sizes = [1, 128], strides = [1, 1]} : vector<1x512xf32> to vector<1x128xf32>
    %286 = arith.negf %285 : vector<1x128xf32>
    %287 = math.exp %286 : vector<1x128xf32>
    %cst_67 = arith.constant 1.000000e+00 : f32
    %288 = vector.broadcast %cst_67 : f32 to vector<1x128xf32>
    %289 = arith.addf %288, %287 : vector<1x128xf32>
    %290 = arith.divf %288, %289 : vector<1x128xf32>
    %291 = vector.extract_strided_slice %278 {offsets = [0, 256], sizes = [1, 128], strides = [1, 1]} : vector<1x512xf32> to vector<1x128xf32>
    %292 = math.tanh %291 : vector<1x128xf32>
    %293 = vector.extract_strided_slice %278 {offsets = [0, 384], sizes = [1, 128], strides = [1, 1]} : vector<1x512xf32> to vector<1x128xf32>
    %294 = arith.negf %293 : vector<1x128xf32>
    %295 = math.exp %294 : vector<1x128xf32>
    %cst_68 = arith.constant 1.000000e+00 : f32
    %296 = vector.broadcast %cst_68 : f32 to vector<1x128xf32>
    %297 = arith.addf %296, %295 : vector<1x128xf32>
    %298 = arith.divf %296, %297 : vector<1x128xf32>
    %299 = arith.mulf %290, %273 : vector<1x128xf32>
    %300 = arith.mulf %284, %292 : vector<1x128xf32>
    %301 = arith.addf %299, %300 : vector<1x128xf32>
    %302 = math.tanh %301 : vector<1x128xf32>
    %303 = arith.mulf %298, %302 : vector<1x128xf32>
    %304 = vector.extract_strided_slice %245 {offsets = [2, 0], sizes = [1, 512], strides = [1, 1]} : vector<8x512xf32> to vector<1x512xf32>
    %cst_69 = arith.constant dense<0.000000e+00> : vector<1x512xf32>
    %305 = tpu.matmul %303, %241, %cst_69 {dimension_numbers = #tpu.dot_dimension_numbers<[1], [0], [0], [1], [0, 0, 1, 1], [], []>} : vector<1x128xf32>, vector<128x512xf32>, vector<1x512xf32> -> vector<1x512xf32>
    %306 = arith.addf %304, %305 : vector<1x512xf32>
    %307 = vector.extract_strided_slice %306 {offsets = [0, 0], sizes = [1, 128], strides = [1, 1]} : vector<1x512xf32> to vector<1x128xf32>
    %308 = arith.negf %307 : vector<1x128xf32>
    %309 = math.exp %308 : vector<1x128xf32>
    %cst_70 = arith.constant 1.000000e+00 : f32
    %310 = vector.broadcast %cst_70 : f32 to vector<1x128xf32>
    %311 = arith.addf %310, %309 : vector<1x128xf32>
    %312 = arith.divf %310, %311 : vector<1x128xf32>
    %313 = vector.extract_strided_slice %306 {offsets = [0, 128], sizes = [1, 128], strides = [1, 1]} : vector<1x512xf32> to vector<1x128xf32>
    %314 = arith.negf %313 : vector<1x128xf32>
    %315 = math.exp %314 : vector<1x128xf32>
    %cst_71 = arith.constant 1.000000e+00 : f32
    %316 = vector.broadcast %cst_71 : f32 to vector<1x128xf32>
    %317 = arith.addf %316, %315 : vector<1x128xf32>
    %318 = arith.divf %316, %317 : vector<1x128xf32>
    %319 = vector.extract_strided_slice %306 {offsets = [0, 256], sizes = [1, 128], strides = [1, 1]} : vector<1x512xf32> to vector<1x128xf32>
    %320 = math.tanh %319 : vector<1x128xf32>
    %321 = vector.extract_strided_slice %306 {offsets = [0, 384], sizes = [1, 128], strides = [1, 1]} : vector<1x512xf32> to vector<1x128xf32>
    %322 = arith.negf %321 : vector<1x128xf32>
    %323 = math.exp %322 : vector<1x128xf32>
    %cst_72 = arith.constant 1.000000e+00 : f32
    %324 = vector.broadcast %cst_72 : f32 to vector<1x128xf32>
    %325 = arith.addf %324, %323 : vector<1x128xf32>
    %326 = arith.divf %324, %325 : vector<1x128xf32>
    %327 = arith.mulf %318, %301 : vector<1x128xf32>
    %328 = arith.mulf %312, %320 : vector<1x128xf32>
    %329 = arith.addf %327, %328 : vector<1x128xf32>
    %330 = math.tanh %329 : vector<1x128xf32>
    %331 = arith.mulf %326, %330 : vector<1x128xf32>
    %332 = vector.extract_strided_slice %245 {offsets = [3, 0], sizes = [1, 512], strides = [1, 1]} : vector<8x512xf32> to vector<1x512xf32>
    %cst_73 = arith.constant dense<0.000000e+00> : vector<1x512xf32>
    %333 = tpu.matmul %331, %241, %cst_73 {dimension_numbers = #tpu.dot_dimension_numbers<[1], [0], [0], [1], [0, 0, 1, 1], [], []>} : vector<1x128xf32>, vector<128x512xf32>, vector<1x512xf32> -> vector<1x512xf32>
    %334 = arith.addf %332, %333 : vector<1x512xf32>
    %335 = vector.extract_strided_slice %334 {offsets = [0, 0], sizes = [1, 128], strides = [1, 1]} : vector<1x512xf32> to vector<1x128xf32>
    %336 = arith.negf %335 : vector<1x128xf32>
    %337 = math.exp %336 : vector<1x128xf32>
    %cst_74 = arith.constant 1.000000e+00 : f32
    %338 = vector.broadcast %cst_74 : f32 to vector<1x128xf32>
    %339 = arith.addf %338, %337 : vector<1x128xf32>
    %340 = arith.divf %338, %339 : vector<1x128xf32>
    %341 = vector.extract_strided_slice %334 {offsets = [0, 128], sizes = [1, 128], strides = [1, 1]} : vector<1x512xf32> to vector<1x128xf32>
    %342 = arith.negf %341 : vector<1x128xf32>
    %343 = math.exp %342 : vector<1x128xf32>
    %cst_75 = arith.constant 1.000000e+00 : f32
    %344 = vector.broadcast %cst_75 : f32 to vector<1x128xf32>
    %345 = arith.addf %344, %343 : vector<1x128xf32>
    %346 = arith.divf %344, %345 : vector<1x128xf32>
    %347 = vector.extract_strided_slice %334 {offsets = [0, 256], sizes = [1, 128], strides = [1, 1]} : vector<1x512xf32> to vector<1x128xf32>
    %348 = math.tanh %347 : vector<1x128xf32>
    %349 = vector.extract_strided_slice %334 {offsets = [0, 384], sizes = [1, 128], strides = [1, 1]} : vector<1x512xf32> to vector<1x128xf32>
    %350 = arith.negf %349 : vector<1x128xf32>
    %351 = math.exp %350 : vector<1x128xf32>
    %cst_76 = arith.constant 1.000000e+00 : f32
    %352 = vector.broadcast %cst_76 : f32 to vector<1x128xf32>
    %353 = arith.addf %352, %351 : vector<1x128xf32>
    %354 = arith.divf %352, %353 : vector<1x128xf32>
    %355 = arith.mulf %346, %329 : vector<1x128xf32>
    %356 = arith.mulf %340, %348 : vector<1x128xf32>
    %357 = arith.addf %355, %356 : vector<1x128xf32>
    %358 = math.tanh %357 : vector<1x128xf32>
    %359 = arith.mulf %354, %358 : vector<1x128xf32>
    %360 = vector.extract_strided_slice %245 {offsets = [4, 0], sizes = [1, 512], strides = [1, 1]} : vector<8x512xf32> to vector<1x512xf32>
    %cst_77 = arith.constant dense<0.000000e+00> : vector<1x512xf32>
    %361 = tpu.matmul %359, %241, %cst_77 {dimension_numbers = #tpu.dot_dimension_numbers<[1], [0], [0], [1], [0, 0, 1, 1], [], []>} : vector<1x128xf32>, vector<128x512xf32>, vector<1x512xf32> -> vector<1x512xf32>
    %362 = arith.addf %360, %361 : vector<1x512xf32>
    %363 = vector.extract_strided_slice %362 {offsets = [0, 0], sizes = [1, 128], strides = [1, 1]} : vector<1x512xf32> to vector<1x128xf32>
    %364 = arith.negf %363 : vector<1x128xf32>
    %365 = math.exp %364 : vector<1x128xf32>
    %cst_78 = arith.constant 1.000000e+00 : f32
    %366 = vector.broadcast %cst_78 : f32 to vector<1x128xf32>
    %367 = arith.addf %366, %365 : vector<1x128xf32>
    %368 = arith.divf %366, %367 : vector<1x128xf32>
    %369 = vector.extract_strided_slice %362 {offsets = [0, 128], sizes = [1, 128], strides = [1, 1]} : vector<1x512xf32> to vector<1x128xf32>
    %370 = arith.negf %369 : vector<1x128xf32>
    %371 = math.exp %370 : vector<1x128xf32>
    %cst_79 = arith.constant 1.000000e+00 : f32
    %372 = vector.broadcast %cst_79 : f32 to vector<1x128xf32>
    %373 = arith.addf %372, %371 : vector<1x128xf32>
    %374 = arith.divf %372, %373 : vector<1x128xf32>
    %375 = vector.extract_strided_slice %362 {offsets = [0, 256], sizes = [1, 128], strides = [1, 1]} : vector<1x512xf32> to vector<1x128xf32>
    %376 = math.tanh %375 : vector<1x128xf32>
    %377 = vector.extract_strided_slice %362 {offsets = [0, 384], sizes = [1, 128], strides = [1, 1]} : vector<1x512xf32> to vector<1x128xf32>
    %378 = arith.negf %377 : vector<1x128xf32>
    %379 = math.exp %378 : vector<1x128xf32>
    %cst_80 = arith.constant 1.000000e+00 : f32
    %380 = vector.broadcast %cst_80 : f32 to vector<1x128xf32>
    %381 = arith.addf %380, %379 : vector<1x128xf32>
    %382 = arith.divf %380, %381 : vector<1x128xf32>
    %383 = arith.mulf %374, %357 : vector<1x128xf32>
    %384 = arith.mulf %368, %376 : vector<1x128xf32>
    %385 = arith.addf %383, %384 : vector<1x128xf32>
    %386 = math.tanh %385 : vector<1x128xf32>
    %387 = arith.mulf %382, %386 : vector<1x128xf32>
    %388 = vector.extract_strided_slice %245 {offsets = [5, 0], sizes = [1, 512], strides = [1, 1]} : vector<8x512xf32> to vector<1x512xf32>
    %cst_81 = arith.constant dense<0.000000e+00> : vector<1x512xf32>
    %389 = tpu.matmul %387, %241, %cst_81 {dimension_numbers = #tpu.dot_dimension_numbers<[1], [0], [0], [1], [0, 0, 1, 1], [], []>} : vector<1x128xf32>, vector<128x512xf32>, vector<1x512xf32> -> vector<1x512xf32>
    %390 = arith.addf %388, %389 : vector<1x512xf32>
    %391 = vector.extract_strided_slice %390 {offsets = [0, 0], sizes = [1, 128], strides = [1, 1]} : vector<1x512xf32> to vector<1x128xf32>
    %392 = arith.negf %391 : vector<1x128xf32>
    %393 = math.exp %392 : vector<1x128xf32>
    %cst_82 = arith.constant 1.000000e+00 : f32
    %394 = vector.broadcast %cst_82 : f32 to vector<1x128xf32>
    %395 = arith.addf %394, %393 : vector<1x128xf32>
    %396 = arith.divf %394, %395 : vector<1x128xf32>
    %397 = vector.extract_strided_slice %390 {offsets = [0, 128], sizes = [1, 128], strides = [1, 1]} : vector<1x512xf32> to vector<1x128xf32>
    %398 = arith.negf %397 : vector<1x128xf32>
    %399 = math.exp %398 : vector<1x128xf32>
    %cst_83 = arith.constant 1.000000e+00 : f32
    %400 = vector.broadcast %cst_83 : f32 to vector<1x128xf32>
    %401 = arith.addf %400, %399 : vector<1x128xf32>
    %402 = arith.divf %400, %401 : vector<1x128xf32>
    %403 = vector.extract_strided_slice %390 {offsets = [0, 256], sizes = [1, 128], strides = [1, 1]} : vector<1x512xf32> to vector<1x128xf32>
    %404 = math.tanh %403 : vector<1x128xf32>
    %405 = vector.extract_strided_slice %390 {offsets = [0, 384], sizes = [1, 128], strides = [1, 1]} : vector<1x512xf32> to vector<1x128xf32>
    %406 = arith.negf %405 : vector<1x128xf32>
    %407 = math.exp %406 : vector<1x128xf32>
    %cst_84 = arith.constant 1.000000e+00 : f32
    %408 = vector.broadcast %cst_84 : f32 to vector<1x128xf32>
    %409 = arith.addf %408, %407 : vector<1x128xf32>
    %410 = arith.divf %408, %409 : vector<1x128xf32>
    %411 = arith.mulf %402, %385 : vector<1x128xf32>
    %412 = arith.mulf %396, %404 : vector<1x128xf32>
    %413 = arith.addf %411, %412 : vector<1x128xf32>
    %414 = math.tanh %413 : vector<1x128xf32>
    %415 = arith.mulf %410, %414 : vector<1x128xf32>
    %416 = vector.extract_strided_slice %245 {offsets = [6, 0], sizes = [1, 512], strides = [1, 1]} : vector<8x512xf32> to vector<1x512xf32>
    %cst_85 = arith.constant dense<0.000000e+00> : vector<1x512xf32>
    %417 = tpu.matmul %415, %241, %cst_85 {dimension_numbers = #tpu.dot_dimension_numbers<[1], [0], [0], [1], [0, 0, 1, 1], [], []>} : vector<1x128xf32>, vector<128x512xf32>, vector<1x512xf32> -> vector<1x512xf32>
    %418 = arith.addf %416, %417 : vector<1x512xf32>
    %419 = vector.extract_strided_slice %418 {offsets = [0, 0], sizes = [1, 128], strides = [1, 1]} : vector<1x512xf32> to vector<1x128xf32>
    %420 = arith.negf %419 : vector<1x128xf32>
    %421 = math.exp %420 : vector<1x128xf32>
    %cst_86 = arith.constant 1.000000e+00 : f32
    %422 = vector.broadcast %cst_86 : f32 to vector<1x128xf32>
    %423 = arith.addf %422, %421 : vector<1x128xf32>
    %424 = arith.divf %422, %423 : vector<1x128xf32>
    %425 = vector.extract_strided_slice %418 {offsets = [0, 128], sizes = [1, 128], strides = [1, 1]} : vector<1x512xf32> to vector<1x128xf32>
    %426 = arith.negf %425 : vector<1x128xf32>
    %427 = math.exp %426 : vector<1x128xf32>
    %cst_87 = arith.constant 1.000000e+00 : f32
    %428 = vector.broadcast %cst_87 : f32 to vector<1x128xf32>
    %429 = arith.addf %428, %427 : vector<1x128xf32>
    %430 = arith.divf %428, %429 : vector<1x128xf32>
    %431 = vector.extract_strided_slice %418 {offsets = [0, 256], sizes = [1, 128], strides = [1, 1]} : vector<1x512xf32> to vector<1x128xf32>
    %432 = math.tanh %431 : vector<1x128xf32>
    %433 = vector.extract_strided_slice %418 {offsets = [0, 384], sizes = [1, 128], strides = [1, 1]} : vector<1x512xf32> to vector<1x128xf32>
    %434 = arith.negf %433 : vector<1x128xf32>
    %435 = math.exp %434 : vector<1x128xf32>
    %cst_88 = arith.constant 1.000000e+00 : f32
    %436 = vector.broadcast %cst_88 : f32 to vector<1x128xf32>
    %437 = arith.addf %436, %435 : vector<1x128xf32>
    %438 = arith.divf %436, %437 : vector<1x128xf32>
    %439 = arith.mulf %430, %413 : vector<1x128xf32>
    %440 = arith.mulf %424, %432 : vector<1x128xf32>
    %441 = arith.addf %439, %440 : vector<1x128xf32>
    %442 = math.tanh %441 : vector<1x128xf32>
    %443 = arith.mulf %438, %442 : vector<1x128xf32>
    %444 = vector.extract_strided_slice %245 {offsets = [7, 0], sizes = [1, 512], strides = [1, 1]} : vector<8x512xf32> to vector<1x512xf32>
    %cst_89 = arith.constant dense<0.000000e+00> : vector<1x512xf32>
    %445 = tpu.matmul %443, %241, %cst_89 {dimension_numbers = #tpu.dot_dimension_numbers<[1], [0], [0], [1], [0, 0, 1, 1], [], []>} : vector<1x128xf32>, vector<128x512xf32>, vector<1x512xf32> -> vector<1x512xf32>
    %446 = arith.addf %444, %445 : vector<1x512xf32>
    %447 = vector.extract_strided_slice %446 {offsets = [0, 0], sizes = [1, 128], strides = [1, 1]} : vector<1x512xf32> to vector<1x128xf32>
    %448 = arith.negf %447 : vector<1x128xf32>
    %449 = math.exp %448 : vector<1x128xf32>
    %cst_90 = arith.constant 1.000000e+00 : f32
    %450 = vector.broadcast %cst_90 : f32 to vector<1x128xf32>
    %451 = arith.addf %450, %449 : vector<1x128xf32>
    %452 = arith.divf %450, %451 : vector<1x128xf32>
    %453 = vector.extract_strided_slice %446 {offsets = [0, 128], sizes = [1, 128], strides = [1, 1]} : vector<1x512xf32> to vector<1x128xf32>
    %454 = arith.negf %453 : vector<1x128xf32>
    %455 = math.exp %454 : vector<1x128xf32>
    %cst_91 = arith.constant 1.000000e+00 : f32
    %456 = vector.broadcast %cst_91 : f32 to vector<1x128xf32>
    %457 = arith.addf %456, %455 : vector<1x128xf32>
    %458 = arith.divf %456, %457 : vector<1x128xf32>
    %459 = vector.extract_strided_slice %446 {offsets = [0, 256], sizes = [1, 128], strides = [1, 1]} : vector<1x512xf32> to vector<1x128xf32>
    %460 = math.tanh %459 : vector<1x128xf32>
    %461 = vector.extract_strided_slice %446 {offsets = [0, 384], sizes = [1, 128], strides = [1, 1]} : vector<1x512xf32> to vector<1x128xf32>
    %462 = arith.negf %461 : vector<1x128xf32>
    %463 = math.exp %462 : vector<1x128xf32>
    %cst_92 = arith.constant 1.000000e+00 : f32
    %464 = vector.broadcast %cst_92 : f32 to vector<1x128xf32>
    %465 = arith.addf %464, %463 : vector<1x128xf32>
    %466 = arith.divf %464, %465 : vector<1x128xf32>
    %467 = arith.mulf %458, %441 : vector<1x128xf32>
    %468 = arith.mulf %452, %460 : vector<1x128xf32>
    %469 = arith.addf %467, %468 : vector<1x128xf32>
    %470 = math.tanh %469 : vector<1x128xf32>
    %471 = arith.mulf %466, %470 : vector<1x128xf32>
    %c1_93 = arith.constant 1 : index
    %c0_94 = arith.constant 0 : index
    %472 = vector.load %arg9[%c1_93, %c0_94] : memref<2x128xf32, #tpu.memory_space<vmem>>, vector<1x128xf32>
    tpu.vector_store %arg9[%c1_93, %c0_94], %471 {strides = array<i32>} : memref<2x128xf32, #tpu.memory_space<vmem>>, vector<1x128xf32>,
    %c1_95 = arith.constant 1 : index
    %c0_96 = arith.constant 0 : index
    %473 = vector.load %arg10[%c1_95, %c0_96] : memref<2x128xf32, #tpu.memory_space<vmem>>, vector<1x128xf32>
    tpu.vector_store %arg10[%c1_95, %c0_96], %469 {strides = array<i32>} : memref<2x128xf32, #tpu.memory_space<vmem>>, vector<1x128xf32>,
    %474 = tpu.concatenate %275, %303, %331, %359, %387, %415, %443, %471 in 0 : vector<1x128xf32>, vector<1x128xf32>, vector<1x128xf32>, vector<1x128xf32>, vector<1x128xf32>, vector<1x128xf32>, vector<1x128xf32>, vector<1x128xf32> -> vector<8x128xf32>
    %c0_97 = arith.constant 0 : index
    %c0_98 = arith.constant 0 : index
    %475 = vector.load %arg6[%c0_97, %c0_98] : memref<128x128xf32, #tpu.memory_space<vmem>>, vector<128x128xf32>
    %cst_99 = arith.constant dense<0.000000e+00> : vector<8x128xf32>
    %476 = tpu.matmul %474, %475, %cst_99 {dimension_numbers = #tpu.dot_dimension_numbers<[1], [0], [0], [1], [0, 0, 1, 1], [], []>} : vector<8x128xf32>, vector<128x128xf32>, vector<8x128xf32> -> vector<8x128xf32>
    %c0_100 = arith.constant 0 : index
    %c0_101 = arith.constant 0 : index
    %477 = vector.load %arg7[%c0_100, %c0_101] : memref<1x128xf32, #tpu.memory_space<vmem>>, vector<1x128xf32>
    %478 = vector.broadcast %477 : vector<1x128xf32> to vector<8x128xf32>
    %479 = arith.addf %476, %478 : vector<8x128xf32>
    %480 = arith.negf %479 : vector<8x128xf32>
    %481 = math.exp %480 : vector<8x128xf32>
    %cst_102 = arith.constant 1.000000e+00 : f32
    %482 = vector.broadcast %cst_102 : f32 to vector<8x128xf32>
    %483 = arith.addf %482, %481 : vector<8x128xf32>
    %484 = arith.divf %482, %483 : vector<8x128xf32>
    %c0_103 = arith.constant 0 : index
    %c0_104 = arith.constant 0 : index
    %485 = vector.load %arg8[%c0_103, %c0_104] : memref<8x128xf32, #tpu.memory_space<vmem>>, vector<8x128xf32>
    tpu.vector_store %arg8[%c0_103, %c0_104], %484 {strides = array<i32>} : memref<8x128xf32, #tpu.memory_space<vmem>>, vector<8x128xf32>,
    return
  }
}

</mosaic_0001>

<llo_original>
// kernel: _predict_time_forward.1
$region0: #{_predict_time_forward.1}
  #allocation0 [shape = 'u32[]', space=smem, size = 0x4, offset = 0x4, fixed_abs, tag = 'smem constant byte address 0x4 - core index']
  #allocation1 [shape = 'u32[144,128]{1,0:T(1,128)}', space=vmem, size = 0x12000, scoped, tag = 'internal scratch']
  %s0 = inlined_call_operand.hbm [shape: f32[8,128], index: 0, kind: input, shape index: {}]
  %s1 = inlined_call_operand.hbm [shape: f32[2,128,512], index: 1, kind: input, shape index: {}]
  %s2 = inlined_call_operand.hbm [shape: f32[2,128,512], index: 2, kind: input, shape index: {}]
  %s3 = inlined_call_operand.vmem [shape: f32[2,512], index: 3, kind: input, shape index: {}]
  %s4 = inlined_call_operand.vmem [shape: f32[2,128], index: 4, kind: input, shape index: {}]
  %s5 = inlined_call_operand.vmem [shape: f32[2,128], index: 5, kind: input, shape index: {}]
  %s6 = inlined_call_operand.hbm [shape: f32[128,128], index: 6, kind: input, shape index: {}]
  %s7 = inlined_call_operand.vmem [shape: f32[1,128], index: 7, kind: input, shape index: {}]
  %s8 = inlined_call_operand.hbm [shape: f32[8,128], index: 8, kind: output, shape index: {0}]
  %s9 = inlined_call_operand.hbm [shape: f32[2,128], index: 9, kind: output, shape index: {1}]
  %s10 = inlined_call_operand.hbm [shape: f32[2,128], index: 10, kind: output, shape index: {2}]
  %11 = xla_tuple %s8, %s9, %s10
  %s12 = sld [smem:[#allocation0]]
  $region74: #{_predict_time_forward.1} parent=0
    _
  %s14 = ssub.s32 1, %s12
  %s15 = scalar_select 0, %s14, %s12
  $region1: #{_predict_time_forward.1} parent=0
    #allocation2 [shape = 'u8[4096]{0}', space=vmem, size = 0x1000, scoped, tag = 'input window, operand 0, single buffered']
    #allocation3 [shape = 's32[1]{0}', space=sflag, size = 0x4, scoped, tag = 'scoped memory for _predict_time_forward.1']
    #allocation4 [shape = 's32[1]{0}', space=sflag, size = 0x4, scoped, tag = 'scoped memory for _predict_time_forward.1']
    #allocation5 [shape = 'u8[524288]{0}', space=vmem, size = 0x80000, scoped, tag = 'input window, operand 1, single buffered']
    #allocation6 [shape = 's32[1]{0}', space=sflag, size = 0x4, scoped, tag = 'scoped memory for _predict_time_forward.1']
    #allocation7 [shape = 'u8[524288]{0}', space=vmem, size = 0x80000, scoped, tag = 'input window, operand 2, single buffered']
    #allocation8 [shape = 'u8[65536]{0}', space=vmem, size = 0x10000, scoped, tag = 'input window, operand 6, single buffered']
    #allocation9 [shape = 's32[1]{0}', space=sflag, size = 0x4, scoped, tag = 'scoped memory for _predict_time_forward.1']
    #allocation10 [shape = 'u8[4096]{0}', space=vmem, size = 0x1000, scoped, tag = 'output window, operand 0, single buffered']
    #allocation11 [shape = 'u8[1024]{0}', space=vmem, size = 0x400, scoped, tag = 'output window, operand 1, single buffered']
    #allocation12 [shape = 's32[1]{0}', space=sflag, size = 0x4, scoped, tag = 'scoped memory for _predict_time_forward.1']
    #allocation13 [shape = 'u8[1024]{0}', space=vmem, size = 0x400, scoped, tag = 'output window, operand 2, single buffered']
    %16 = vsyncpa [#allocation3], 0
    %17 = vsyncpa [#allocation6], 0
    %18 = vsyncpa [#allocation9], 0
    %19 = vsyncpa [#allocation4], 0
    %20 = vsyncpa [#allocation12], 0
    // Predicated region
    $region2: #{_predict_time_forward.1} parent=1 // pred_check
      _
    $region3: #{_predict_time_forward.1} parent=1 // pred_check_branch
      %22 = sbr.rel (0) target = $region5
    $region4: #{_predict_time_forward.1} parent=1 // pred_region
      %s24 = ssub.s32 128, 128
      %25 = vsyncadd [#allocation3], %s24
      %s27 = sshll.u32 [#allocation2], 4
      %s28 = int_to_ptr.vmem [resolvable:$true] %s27
      %30 = dma.hbm_to_vmem [thread:$0]  %s0, 128, %s28, [#allocation3]
    $region5: #{_predict_time_forward.1} parent=1 // pred_fallthru
      _
    // Predicated region
    $region6: #{_predict_time_forward.1} parent=1 // pred_check
      _
    $region7: #{_predict_time_forward.1} parent=1 // pred_check_branch
      %32 = sbr.rel (0) target = $region9
    $region8: #{_predict_time_forward.1} parent=1 // pred_region
      %s34 = ssub.s32 16384, 16384
      %35 = vsyncadd [#allocation6], %s34
      %s36 = sshll.u32 [#allocation5], 4
      %s37 = int_to_ptr.vmem [resolvable:$true] %s36
      %42 = dma.hbm_to_vmem [thread:$0]  %s1, 16384, %s37, [#allocation6], 512, 512, 32
    $region9: #{_predict_time_forward.1} parent=1 // pred_fallthru
      _
    // Predicated region
    $region10: #{_predict_time_forward.1} parent=1 // pred_check
      _
    $region11: #{_predict_time_forward.1} parent=1 // pred_check_branch
      %44 = sbr.rel (0) target = $region13
    $region12: #{_predict_time_forward.1} parent=1 // pred_region
      %s46 = ssub.s32 16384, 16384
      %47 = vsyncadd [#allocation6], %s46
      %s48 = sshll.u32 [#allocation7], 4
      %s49 = int_to_ptr.vmem [resolvable:$true] %s48
      %54 = dma.hbm_to_vmem [thread:$0]  %s2, 16384, %s49, [#allocation6], 512, 512, 32
    $region13: #{_predict_time_forward.1} parent=1 // pred_fallthru
      _
    // Predicated region
    $region14: #{_predict_time_forward.1} parent=1 // pred_check
      _
    $region15: #{_predict_time_forward.1} parent=1 // pred_check_branch
      %56 = sbr.rel (0) target = $region17
    $region16: #{_predict_time_forward.1} parent=1 // pred_region
      _
    $region17: #{_predict_time_forward.1} parent=1 // pred_fallthru
      _
    // Predicated region
    $region18: #{_predict_time_forward.1} parent=1 // pred_check
      _
    $region19: #{_predict_time_forward.1} parent=1 // pred_check_branch
      %58 = sbr.rel (0) target = $region21
    $region20: #{_predict_time_forward.1} parent=1 // pred_region
      _
    $region21: #{_predict_time_forward.1} parent=1 // pred_fallthru
      _
    // Predicated region
    $region22: #{_predict_time_forward.1} parent=1 // pred_check
      _
    $region23: #{_predict_time_forward.1} parent=1 // pred_check_branch
      %60 = sbr.rel (0) target = $region25
    $region24: #{_predict_time_forward.1} parent=1 // pred_region
      _
    $region25: #{_predict_time_forward.1} parent=1 // pred_fallthru
      _
    // Predicated region
    $region26: #{_predict_time_forward.1} parent=1 // pred_check
      _
    $region27: #{_predict_time_forward.1} parent=1 // pred_check_branch
      %62 = sbr.rel (0) target = $region29
    $region28: #{_predict_time_forward.1} parent=1 // pred_region
      %s64 = ssub.s32 2048, 2048
      %65 = vsyncadd [#allocation9], %s64
      %s66 = sshll.u32 [#allocation8], 4
      %s67 = int_to_ptr.vmem [resolvable:$true] %s66
      %72 = dma.hbm_to_vmem [thread:$0]  %s6, 2048, %s67, [#allocation9], 128, 128, 8
    $region29: #{_predict_time_forward.1} parent=1 // pred_fallthru
      _
    // Predicated region
    $region30: #{_predict_time_forward.1} parent=1 // pred_check
      _
    $region31: #{_predict_time_forward.1} parent=1 // pred_check_branch
      %74 = sbr.rel (0) target = $region33
    $region32: #{_predict_time_forward.1} parent=1 // pred_region
      _
    $region33: #{_predict_time_forward.1} parent=1 // pred_fallthru
      _
    // Predicated region
    $region34: #{_predict_time_forward.1} parent=1 // pred_check
      _
    $region35: #{_predict_time_forward.1} parent=1 // pred_check_branch
      %76 = sbr.rel (0) target = $region37
    $region36: #{_predict_time_forward.1} parent=1 // pred_region
      %77 = dma.done [#allocation3], 128
    $region37: #{_predict_time_forward.1} parent=1 // pred_fallthru
      _
    // Predicated region
    $region38: #{_predict_time_forward.1} parent=1 // pred_check
      _
    $region39: #{_predict_time_forward.1} parent=1 // pred_check_branch
      %79 = sbr.rel (0) target = $region41
    $region40: #{_predict_time_forward.1} parent=1 // pred_region
      %80 = dma.done [#allocation6], 16384
    $region41: #{_predict_time_forward.1} parent=1 // pred_fallthru
      _
    // Predicated region
    $region42: #{_predict_time_forward.1} parent=1 // pred_check
      _
    $region43: #{_predict_time_forward.1} parent=1 // pred_check_branch
      %82 = sbr.rel (0) target = $region45
    $region44: #{_predict_time_forward.1} parent=1 // pred_region
      %83 = dma.done [#allocation6], 16384
    $region45: #{_predict_time_forward.1} parent=1 // pred_fallthru
      _
    // Predicated region
    $region46: #{_predict_time_forward.1} parent=1 // pred_check
      _
    $region47: #{_predict_time_forward.1} parent=1 // pred_check_branch
      %85 = sbr.rel (0) target = $region49
    $region48: #{_predict_time_forward.1} parent=1 // pred_region
      %86 = dma.done [#allocation9], 2048
    $region49: #{_predict_time_forward.1} parent=1 // pred_fallthru
      _
    %v87 = vld [vmem:[#allocation2] sm:$0xff]
    %v88 = vld [vmem:[#allocation5] sm:$0xff]
    %v89 = vld [vmem:[#allocation5 + $0x8] sm:$0xff]
    %v90 = vld [vmem:[#allocation5 + $0x10] sm:$0xff]
    %v91 = vld [vmem:[#allocation5 + $0x18] sm:$0xff]
    %v92 = vld [vmem:[#allocation5 + $0x20] sm:$0xff]
    %v93 = vld [vmem:[#allocation5 + $0x28] sm:$0xff]
    %v94 = vld [vmem:[#allocation5 + $0x30] sm:$0xff]
    %v95 = vld [vmem:[#allocation5 + $0x38] sm:$0xff]
    %v96 = vld [vmem:[#allocation5 + $0x40] sm:$0xff]
    %v97 = vld [vmem:[#allocation5 + $0x48] sm:$0xff]
    %v98 = vld [vmem:[#allocation5 + $0x50] sm:$0xff]
    %v99 = vld [vmem:[#allocation5 + $0x58] sm:$0xff]
    %v100 = vld [vmem:[#allocation5 + $0x60] sm:$0xff]
    %v101 = vld [vmem:[#allocation5 + $0x68] sm:$0xff]
    %v102 = vld [vmem:[#allocation5 + $0x70] sm:$0xff]
    %v103 = vld [vmem:[#allocation5 + $0x78] sm:$0xff]
    %v104 = vld [vmem:[#allocation5 + $0x80] sm:$0xff]
    %v105 = vld [vmem:[#allocation5 + $0x88] sm:$0xff]
    %v106 = vld [vmem:[#allocation5 + $0x90] sm:$0xff]
    %v107 = vld [vmem:[#allocation5 + $0x98] sm:$0xff]
    %v108 = vld [vmem:[#allocation5 + $0xa0] sm:$0xff]
    %v109 = vld [vmem:[#allocation5 + $0xa8] sm:$0xff]
    %v110 = vld [vmem:[#allocation5 + $0xb0] sm:$0xff]
    %v111 = vld [vmem:[#allocation5 + $0xb8] sm:$0xff]
    %v112 = vld [vmem:[#allocation5 + $0xc0] sm:$0xff]
    %v113 = vld [vmem:[#allocation5 + $0xc8] sm:$0xff]
    %v114 = vld [vmem:[#allocation5 + $0xd0] sm:$0xff]
    %v115 = vld [vmem:[#allocation5 + $0xd8] sm:$0xff]
    %v116 = vld [vmem:[#allocation5 + $0xe0] sm:$0xff]
    %v117 = vld [vmem:[#allocation5 + $0xe8] sm:$0xff]
    %v118 = vld [vmem:[#allocation5 + $0xf0] sm:$0xff]
    %v119 = vld [vmem:[#allocation5 + $0xf8] sm:$0xff]
    %v120 = vld [vmem:[#allocation5 + $0x100] sm:$0xff]
    %v121 = vld [vmem:[#allocation5 + $0x108] sm:$0xff]
    %v122 = vld [vmem:[#allocation5 + $0x110] sm:$0xff]
    %v123 = vld [vmem:[#allocation5 + $0x118] sm:$0xff]
    %v124 = vld [vmem:[#allocation5 + $0x120] sm:$0xff]
    %v125 = vld [vmem:[#allocation5 + $0x128] sm:$0xff]
    %v126 = vld [vmem:[#allocation5 + $0x130] sm:$0xff]
    %v127 = vld [vmem:[#allocation5 + $0x138] sm:$0xff]
    %v128 = vld [vmem:[#allocation5 + $0x140] sm:$0xff]
    %v129 = vld [vmem:[#allocation5 + $0x148] sm:$0xff]
    %v130 = vld [vmem:[#allocation5 + $0x150] sm:$0xff]
    %v131 = vld [vmem:[#allocation5 + $0x158] sm:$0xff]
    %v132 = vld [vmem:[#allocation5 + $0x160] sm:$0xff]
    %v133 = vld [vmem:[#allocation5 + $0x168] sm:$0xff]
    %v134 = vld [vmem:[#allocation5 + $0x170] sm:$0xff]
    %v135 = vld [vmem:[#allocation5 + $0x178] sm:$0xff]
    %v136 = vld [vmem:[#allocation5 + $0x180] sm:$0xff]
    %v137 = vld [vmem:[#allocation5 + $0x188] sm:$0xff]
    %v138 = vld [vmem:[#allocation5 + $0x190] sm:$0xff]
    %v139 = vld [vmem:[#allocation5 + $0x198] sm:$0xff]
    %v140 = vld [vmem:[#allocation5 + $0x1a0] sm:$0xff]
    %v141 = vld [vmem:[#allocation5 + $0x1a8] sm:$0xff]
    %v142 = vld [vmem:[#allocation5 + $0x1b0] sm:$0xff]
    %v143 = vld [vmem:[#allocation5 + $0x1b8] sm:$0xff]
    %v144 = vld [vmem:[#allocation5 + $0x1c0] sm:$0xff]
    %v145 = vld [vmem:[#allocation5 + $0x1c8] sm:$0xff]
    %v146 = vld [vmem:[#allocation5 + $0x1d0] sm:$0xff]
    %v147 = vld [vmem:[#allocation5 + $0x1d8] sm:$0xff]
    %v148 = vld [vmem:[#allocation5 + $0x1e0] sm:$0xff]
    %v149 = vld [vmem:[#allocation5 + $0x1e8] sm:$0xff]
    %v150 = vld [vmem:[#allocation5 + $0x1f0] sm:$0xff]
    %v151 = vld [vmem:[#allocation5 + $0x1f8] sm:$0xff]
    %v152 = vld [vmem:[#allocation7] sm:$0xff]
    %v153 = vld [vmem:[#allocation7 + $0x8] sm:$0xff]
    %v154 = vld [vmem:[#allocation7 + $0x10] sm:$0xff]
    %v155 = vld [vmem:[#allocation7 + $0x18] sm:$0xff]
    %v156 = vld [vmem:[#allocation7 + $0x20] sm:$0xff]
    %v157 = vld [vmem:[#allocation7 + $0x28] sm:$0xff]
    %v158 = vld [vmem:[#allocation7 + $0x30] sm:$0xff]
    %v159 = vld [vmem:[#allocation7 + $0x38] sm:$0xff]
    %v160 = vld [vmem:[#allocation7 + $0x40] sm:$0xff]
    %v161 = vld [vmem:[#allocation7 + $0x48] sm:$0xff]
    %v162 = vld [vmem:[#allocation7 + $0x50] sm:$0xff]
    %v163 = vld [vmem:[#allocation7 + $0x58] sm:$0xff]
    %v164 = vld [vmem:[#allocation7 + $0x60] sm:$0xff]
    %v165 = vld [vmem:[#allocation7 + $0x68] sm:$0xff]
    %v166 = vld [vmem:[#allocation7 + $0x70] sm:$0xff]
    %v167 = vld [vmem:[#allocation7 + $0x78] sm:$0xff]
    %v168 = vld [vmem:[#allocation7 + $0x80] sm:$0xff]
    %v169 = vld [vmem:[#allocation7 + $0x88] sm:$0xff]
    %v170 = vld [vmem:[#allocation7 + $0x90] sm:$0xff]
    %v171 = vld [vmem:[#allocation7 + $0x98] sm:$0xff]
    %v172 = vld [vmem:[#allocation7 + $0xa0] sm:$0xff]
    %v173 = vld [vmem:[#allocation7 + $0xa8] sm:$0xff]
    %v174 = vld [vmem:[#allocation7 + $0xb0] sm:$0xff]
    %v175 = vld [vmem:[#allocation7 + $0xb8] sm:$0xff]
    %v176 = vld [vmem:[#allocation7 + $0xc0] sm:$0xff]
    %v177 = vld [vmem:[#allocation7 + $0xc8] sm:$0xff]
    %v178 = vld [vmem:[#allocation7 + $0xd0] sm:$0xff]
    %v179 = vld [vmem:[#allocation7 + $0xd8] sm:$0xff]
    %v180 = vld [vmem:[#allocation7 + $0xe0] sm:$0xff]
    %v181 = vld [vmem:[#allocation7 + $0xe8] sm:$0xff]
    %v182 = vld [vmem:[#allocation7 + $0xf0] sm:$0xff]
    %v183 = vld [vmem:[#allocation7 + $0xf8] sm:$0xff]
    %v184 = vld [vmem:[#allocation7 + $0x100] sm:$0xff]
    %v185 = vld [vmem:[#allocation7 + $0x108] sm:$0xff]
    %v186 = vld [vmem:[#allocation7 + $0x110] sm:$0xff]
    %v187 = vld [vmem:[#allocation7 + $0x118] sm:$0xff]
    %v188 = vld [vmem:[#allocation7 + $0x120] sm:$0xff]
    %v189 = vld [vmem:[#allocation7 + $0x128] sm:$0xff]
    %v190 = vld [vmem:[#allocation7 + $0x130] sm:$0xff]
    %v191 = vld [vmem:[#allocation7 + $0x138] sm:$0xff]
    %v192 = vld [vmem:[#allocation7 + $0x140] sm:$0xff]
    %v193 = vld [vmem:[#allocation7 + $0x148] sm:$0xff]
    %v194 = vld [vmem:[#allocation7 + $0x150] sm:$0xff]
    %v195 = vld [vmem:[#allocation7 + $0x158] sm:$0xff]
    %v196 = vld [vmem:[#allocation7 + $0x160] sm:$0xff]
    %v197 = vld [vmem:[#allocation7 + $0x168] sm:$0xff]
    %v198 = vld [vmem:[#allocation7 + $0x170] sm:$0xff]
    %v199 = vld [vmem:[#allocation7 + $0x178] sm:$0xff]
    %v200 = vld [vmem:[#allocation7 + $0x180] sm:$0xff]
    %v201 = vld [vmem:[#allocation7 + $0x188] sm:$0xff]
    %v202 = vld [vmem:[#allocation7 + $0x190] sm:$0xff]
    %v203 = vld [vmem:[#allocation7 + $0x198] sm:$0xff]
    %v204 = vld [vmem:[#allocation7 + $0x1a0] sm:$0xff]
    %v205 = vld [vmem:[#allocation7 + $0x1a8] sm:$0xff]
    %v206 = vld [vmem:[#allocation7 + $0x1b0] sm:$0xff]
    %v207 = vld [vmem:[#allocation7 + $0x1b8] sm:$0xff]
    %v208 = vld [vmem:[#allocation7 + $0x1c0] sm:$0xff]
    %v209 = vld [vmem:[#allocation7 + $0x1c8] sm:$0xff]
    %v210 = vld [vmem:[#allocation7 + $0x1d0] sm:$0xff]
    %v211 = vld [vmem:[#allocation7 + $0x1d8] sm:$0xff]
    %v212 = vld [vmem:[#allocation7 + $0x1e0] sm:$0xff]
    %v213 = vld [vmem:[#allocation7 + $0x1e8] sm:$0xff]
    %v214 = vld [vmem:[#allocation7 + $0x1f0] sm:$0xff]
    %v215 = vld [vmem:[#allocation7 + $0x1f8] sm:$0xff]
    %v216 = vld [vmem:[%s3] ss:$2 sm:$0xf]
    %v218 = vlaneseq
    %v219 = vshrl.u32 %v218, 7
    %v220 = vsub.s32 0, %v219
    %v221 = vrot.slane %v216, %v220
    %v222 = vlaneseq
    %v223 = vshrl.u32 %v222, 7
    %v224 = vsub.s32 1, %v223
    %v225 = vrot.slane %v216, %v224
    %v226 = vlaneseq
    %v227 = vshrl.u32 %v226, 7
    %v228 = vsub.s32 2, %v227
    %v229 = vrot.slane %v216, %v228
    %v230 = vlaneseq
    %v231 = vshrl.u32 %v230, 7
    %v232 = vsub.s32 3, %v231
    %v233 = vrot.slane %v216, %v232
    %238 = vmatprep.subr.mxu0 %v89
    %239 = vmatpush1.msra.mxu0 %v88
    %240 = vmatprep.subr.mxu0 %v93
    %241 = vmatpush1.msra.mxu0 %v92
    %242 = vmatprep.subr.mxu0 %v97
    %243 = vmatpush1.msra.mxu0 %v96
    %244 = vmatprep.subr.mxu0 %v101
    %245 = vmatpush1.msra.mxu0 %v100
    %246 = vmatprep.subr.mxu0 %v105
    %247 = vmatpush1.msra.mxu0 %v104
    %248 = vmatprep.subr.mxu0 %v109
    %249 = vmatpush1.msra.mxu0 %v108
    %250 = vmatprep.subr.mxu0 %v113
    %251 = vmatpush1.msra.mxu0 %v112
    %252 = vmatprep.subr.mxu0 %v117
    %253 = vmatpush1.msra.mxu0 %v116
    %254 = vmatprep.subr.mxu0 %v121
    %255 = vmatpush1.msra.mxu0 %v120
    %256 = vmatprep.subr.mxu0 %v125
    %257 = vmatpush1.msra.mxu0 %v124
    %258 = vmatprep.subr.mxu0 %v129
    %259 = vmatpush1.msra.mxu0 %v128
    %260 = vmatprep.subr.mxu0 %v133
    %261 = vmatpush1.msra.mxu0 %v132
    %262 = vmatprep.subr.mxu0 %v137
    %263 = vmatpush1.msra.mxu0 %v136
    %264 = vmatprep.subr.mxu0 %v141
    %265 = vmatpush1.msra.mxu0 %v140
    %266 = vmatprep.subr.mxu0 %v145
    %267 = vmatpush1.msra.mxu0 %v144
    %268 = vmatprep.subr.mxu0 %v149
    %269 = vmatpush1.msra.mxu0 %v148
    %270 = vmatprep.subr.mxu0 0.0
    %271 = vmatpush1.msra.mxu0 0.0
    %272 = vmatprep.subr.mxu0 0.0
    %273 = vmatpush1.msra.mxu0 0.0
    %274 = vmatprep.subr.mxu0 0.0
    %275 = vmatpush1.msra.mxu0 0.0
    %276 = vmatprep.subr.mxu0 0.0
    %277 = vmatpush1.msra.mxu0 0.0
    %278 = vmatprep.subr.mxu0 0.0
    %279 = vmatpush1.msra.mxu0 0.0
    %280 = vmatprep.subr.mxu0 0.0
    %281 = vmatpush1.msra.mxu0 0.0
    %282 = vmatprep.subr.mxu0 0.0
    %283 = vmatpush1.msra.mxu0 0.0
    %284 = vmatprep.subr.mxu0 0.0
    %285 = vmatpush1.msra.mxu0 0.0
    %286 = vmatprep.subr.mxu0 0.0
    %287 = vmatpush1.msra.mxu0 0.0
    %288 = vmatprep.subr.mxu0 0.0
    %289 = vmatpush1.msra.mxu0 0.0
    %290 = vmatprep.subr.mxu0 0.0
    %291 = vmatpush1.msra.mxu0 0.0
    %292 = vmatprep.subr.mxu0 0.0
    %293 = vmatpush1.msra.mxu0 0.0
    %294 = vmatprep.subr.mxu0 0.0
    %295 = vmatpush1.msra.mxu0 0.0
    %296 = vmatprep.subr.mxu0 0.0
    %297 = vmatpush1.msra.mxu0 0.0
    %298 = vmatprep.subr.mxu0 0.0
    %299 = vmatpush1.msra.mxu0 0.0
    %300 = vmatprep.subr.mxu0 0.0
    %301 = vmatpush1.msra.mxu0 0.0
    %302 = vmatprep.mubr.f32.mxu0 0.0
    %303 = vmatmul.mubr.f32.gmra.mrb[0].mxu0 %v87
    %v304 = vpop.f32.mrb[0].mxu0
    %v305 = vadd.f32 %v221, %v304
    %v306 = vpop.f32.mrb[0].mxu0
    %v307 = vadd.f32 %v225, %v306
    %308 = vdwg.mxu0
    %309 = vmatprep.subr.mxu0 %v91
    %310 = vmatpush1.msra.mxu0 %v90
    %311 = vmatprep.subr.mxu0 %v95
    %312 = vmatpush1.msra.mxu0 %v94
    %313 = vmatprep.subr.mxu0 %v99
    %314 = vmatpush1.msra.mxu0 %v98
    %315 = vmatprep.subr.mxu0 %v103
    %316 = vmatpush1.msra.mxu0 %v102
    %317 = vmatprep.subr.mxu0 %v107
    %318 = vmatpush1.msra.mxu0 %v106
    %319 = vmatprep.subr.mxu0 %v111
    %320 = vmatpush1.msra.mxu0 %v110
    %321 = vmatprep.subr.mxu0 %v115
    %322 = vmatpush1.msra.mxu0 %v114
    %323 = vmatprep.subr.mxu0 %v119
    %324 = vmatpush1.msra.mxu0 %v118
    %325 = vmatprep.subr.mxu0 %v123
    %326 = vmatpush1.msra.mxu0 %v122
    %327 = vmatprep.subr.mxu0 %v127
    %328 = vmatpush1.msra.mxu0 %v126
    %329 = vmatprep.subr.mxu0 %v131
    %330 = vmatpush1.msra.mxu0 %v130
    %331 = vmatprep.subr.mxu0 %v135
    %332 = vmatpush1.msra.mxu0 %v134
    %333 = vmatprep.subr.mxu0 %v139
    %334 = vmatpush1.msra.mxu0 %v138
    %335 = vmatprep.subr.mxu0 %v143
    %336 = vmatpush1.msra.mxu0 %v142
    %337 = vmatprep.subr.mxu0 %v147
    %338 = vmatpush1.msra.mxu0 %v146
    %339 = vmatprep.subr.mxu0 %v151
    %340 = vmatpush1.msra.mxu0 %v150
    %341 = vmatprep.subr.mxu0 0.0
    %342 = vmatpush1.msra.mxu0 0.0
    %343 = vmatprep.subr.mxu0 0.0
    %344 = vmatpush1.msra.mxu0 0.0
    %345 = vmatprep.subr.mxu0 0.0
    %346 = vmatpush1.msra.mxu0 0.0
    %347 = vmatprep.subr.mxu0 0.0
    %348 = vmatpush1.msra.mxu0 0.0
    %349 = vmatprep.subr.mxu0 0.0
    %350 = vmatpush1.msra.mxu0 0.0
    %351 = vmatprep.subr.mxu0 0.0
    %352 = vmatpush1.msra.mxu0 0.0
    %353 = vmatprep.subr.mxu0 0.0
    %354 = vmatpush1.msra.mxu0 0.0
    %355 = vmatprep.subr.mxu0 0.0
    %356 = vmatpush1.msra.mxu0 0.0
    %357 = vmatprep.subr.mxu0 0.0
    %358 = vmatpush1.msra.mxu0 0.0
    %359 = vmatprep.subr.mxu0 0.0
    %360 = vmatpush1.msra.mxu0 0.0
    %361 = vmatprep.subr.mxu0 0.0
    %362 = vmatpush1.msra.mxu0 0.0
    %363 = vmatprep.subr.mxu0 0.0
    %364 = vmatpush1.msra.mxu0 0.0
    %365 = vmatprep.subr.mxu0 0.0
    %366 = vmatpush1.msra.mxu0 0.0
    %367 = vmatprep.subr.mxu0 0.0
    %368 = vmatpush1.msra.mxu0 0.0
    %369 = vmatprep.subr.mxu0 0.0
    %370 = vmatpush1.msra.mxu0 0.0
    %371 = vmatprep.subr.mxu0 0.0
    %372 = vmatpush1.msra.mxu0 0.0
    %373 = vmatprep.mubr.f32.mxu0 0.0
    %374 = vmatmul.mubr.f32.gmra.mrb[0].mxu0 %v87
    %v375 = vpop.f32.mrb[0].mxu0
    %v376 = vadd.f32 %v229, %v375
    %v377 = vpop.f32.mrb[0].mxu0
    %v378 = vadd.f32 %v233, %v377
    %379 = vdwg.mxu0
    %v380 = vld [vmem:[%s4] sm:$0x1]
    %v381 = vld [vmem:[%s5] sm:$0x1]
    %382 = vmatprep.subr.mxu0 %v153
    %383 = vmatpush1.msra.mxu0 %v152
    %384 = vmatprep.subr.mxu0 %v157
    %385 = vmatpush1.msra.mxu0 %v156
    %386 = vmatprep.subr.mxu0 %v161
    %387 = vmatpush1.msra.mxu0 %v160
    %388 = vmatprep.subr.mxu0 %v165
    %389 = vmatpush1.msra.mxu0 %v164
    %390 = vmatprep.subr.mxu0 %v169
    %391 = vmatpush1.msra.mxu0 %v168
    %392 = vmatprep.subr.mxu0 %v173
    %393 = vmatpush1.msra.mxu0 %v172
    %394 = vmatprep.subr.mxu0 %v177
    %395 = vmatpush1.msra.mxu0 %v176
    %396 = vmatprep.subr.mxu0 %v181
    %397 = vmatpush1.msra.mxu0 %v180
    %398 = vmatprep.subr.mxu0 %v185
    %399 = vmatpush1.msra.mxu0 %v184
    %400 = vmatprep.subr.mxu0 %v189
    %401 = vmatpush1.msra.mxu0 %v188
    %402 = vmatprep.subr.mxu0 %v193
    %403 = vmatpush1.msra.mxu0 %v192
    %404 = vmatprep.subr.mxu0 %v197
    %405 = vmatpush1.msra.mxu0 %v196
    %406 = vmatprep.subr.mxu0 %v201
    %407 = vmatpush1.msra.mxu0 %v200
    %408 = vmatprep.subr.mxu0 %v205
    %409 = vmatpush1.msra.mxu0 %v204
    %410 = vmatprep.subr.mxu0 %v209
    %411 = vmatpush1.msra.mxu0 %v208
    %412 = vmatprep.subr.mxu0 %v213
    %413 = vmatpush1.msra.mxu0 %v212
    %414 = vmatprep.subr.mxu0 0.0
    %415 = vmatpush1.msra.mxu0 0.0
    %416 = vmatprep.subr.mxu0 0.0
    %417 = vmatpush1.msra.mxu0 0.0
    %418 = vmatprep.subr.mxu0 0.0
    %419 = vmatpush1.msra.mxu0 0.0
    %420 = vmatprep.subr.mxu0 0.0
    %421 = vmatpush1.msra.mxu0 0.0
    %422 = vmatprep.subr.mxu0 0.0
    %423 = vmatpush1.msra.mxu0 0.0
    %424 = vmatprep.subr.mxu0 0.0
    %425 = vmatpush1.msra.mxu0 0.0
    %426 = vmatprep.subr.mxu0 0.0
    %427 = vmatpush1.msra.mxu0 0.0
    %428 = vmatprep.subr.mxu0 0.0
    %429 = vmatpush1.msra.mxu0 0.0
    %430 = vmatprep.subr.mxu0 0.0
    %431 = vmatpush1.msra.mxu0 0.0
    %432 = vmatprep.subr.mxu0 0.0
    %433 = vmatpush1.msra.mxu0 0.0
    %434 = vmatprep.subr.mxu0 0.0
    %435 = vmatpush1.msra.mxu0 0.0
    %436 = vmatprep.subr.mxu0 0.0
    %437 = vmatpush1.msra.mxu0 0.0
    %438 = vmatprep.subr.mxu0 0.0
    %439 = vmatpush1.msra.mxu0 0.0
    %440 = vmatprep.subr.mxu0 0.0
    %441 = vmatpush1.msra.mxu0 0.0
    %442 = vmatprep.subr.mxu0 0.0
    %443 = vmatpush1.msra.mxu0 0.0
    %444 = vmatprep.subr.mxu0 0.0
    %445 = vmatpush1.msra.mxu0 0.0
    %446 = vmatprep.mubr.f32.mxu0 0.0
    %447 = vmatmul.mubr.f32.gmra.mrb[0].mxu0 %v380
    %v448 = vpop.f32.mrb[0].mxu0
    %v449 = vadd.f32 0.0, %v448
    %v450 = vpop.f32.mrb[0].mxu0
    %v451 = vadd.f32 0.0, %v450
    %452 = vdwg.mxu0
    %453 = vmatprep.subr.mxu0 %v155
    %454 = vmatpush1.msra.mxu0 %v154
    %455 = vmatprep.subr.mxu0 %v159
    %456 = vmatpush1.msra.mxu0 %v158
    %457 = vmatprep.subr.mxu0 %v163
    %458 = vmatpush1.msra.mxu0 %v162
    %459 = vmatprep.subr.mxu0 %v167
    %460 = vmatpush1.msra.mxu0 %v166
    %461 = vmatprep.subr.mxu0 %v171
    %462 = vmatpush1.msra.mxu0 %v170
    %463 = vmatprep.subr.mxu0 %v175
    %464 = vmatpush1.msra.mxu0 %v174
    %465 = vmatprep.subr.mxu0 %v179
    %466 = vmatpush1.msra.mxu0 %v178
    %467 = vmatprep.subr.mxu0 %v183
    %468 = vmatpush1.msra.mxu0 %v182
    %469 = vmatprep.subr.mxu0 %v187
    %470 = vmatpush1.msra.mxu0 %v186
    %471 = vmatprep.subr.mxu0 %v191
    %472 = vmatpush1.msra.mxu0 %v190
    %473 = vmatprep.subr.mxu0 %v195
    %474 = vmatpush1.msra.mxu0 %v194
    %475 = vmatprep.subr.mxu0 %v199
    %476 = vmatpush1.msra.mxu0 %v198
    %477 = vmatprep.subr.mxu0 %v203
    %478 = vmatpush1.msra.mxu0 %v202
    %479 = vmatprep.subr.mxu0 %v207
    %480 = vmatpush1.msra.mxu0 %v206
    %481 = vmatprep.subr.mxu0 %v211
    %482 = vmatpush1.msra.mxu0 %v210
    %483 = vmatprep.subr.mxu0 %v215
    %484 = vmatpush1.msra.mxu0 %v214
    %485 = vmatprep.subr.mxu0 0.0
    %486 = vmatpush1.msra.mxu0 0.0
    %487 = vmatprep.subr.mxu0 0.0
    %488 = vmatpush1.msra.mxu0 0.0
    %489 = vmatprep.subr.mxu0 0.0
    %490 = vmatpush1.msra.mxu0 0.0
    %491 = vmatprep.subr.mxu0 0.0
    %492 = vmatpush1.msra.mxu0 0.0
    %493 = vmatprep.subr.mxu0 0.0
    %494 = vmatpush1.msra.mxu0 0.0
    %495 = vmatprep.subr.mxu0 0.0
    %496 = vmatpush1.msra.mxu0 0.0
    %497 = vmatprep.subr.mxu0 0.0
    %498 = vmatpush1.msra.mxu0 0.0
    %499 = vmatprep.subr.mxu0 0.0
    %500 = vmatpush1.msra.mxu0 0.0
    %501 = vmatprep.subr.mxu0 0.0
    %502 = vmatpush1.msra.mxu0 0.0
    %503 = vmatprep.subr.mxu0 0.0
    %504 = vmatpush1.msra.mxu0 0.0
    %505 = vmatprep.subr.mxu0 0.0
    %506 = vmatpush1.msra.mxu0 0.0
    %507 = vmatprep.subr.mxu0 0.0
    %508 = vmatpush1.msra.mxu0 0.0
    %509 = vmatprep.subr.mxu0 0.0
    %510 = vmatpush1.msra.mxu0 0.0
    %511 = vmatprep.subr.mxu0 0.0
    %512 = vmatpush1.msra.mxu0 0.0
    %513 = vmatprep.subr.mxu0 0.0
    %514 = vmatpush1.msra.mxu0 0.0
    %515 = vmatprep.subr.mxu0 0.0
    %516 = vmatpush1.msra.mxu0 0.0
    %517 = vmatprep.mubr.f32.mxu0 0.0
    %518 = vmatmul.mubr.f32.gmra.mrb[0].mxu0 %v380
    %v519 = vpop.f32.mrb[0].mxu0
    %v520 = vadd.f32 0.0, %v519
    %v521 = vpop.f32.mrb[0].mxu0
    %v522 = vadd.f32 0.0, %v521
    %523 = vdwg.mxu0
    %v524 = vadd.f32 %v305, %v449
    %v525 = vadd.f32 %v307, %v451
    %v526 = vadd.f32 %v376, %v520
    %v527 = vadd.f32 %v378, %v522
    %v528 = vxor.u32 %v524, 2147483648
    %v529 = vmul.f32 %v528, 1.442695
    %v530 = vpow.pop %v529
    %v531 = vadd.f32 %v530, 1.0
    %v532 = vrcp.pop %v531
    %v533 = vmul.f32 1.0, %v532
    %v534 = vxor.u32 %v525, 2147483648
    %v535 = vmul.f32 %v534, 1.442695
    %v536 = vpow.pop %v535
    %v537 = vadd.f32 %v536, 1.0
    %v538 = vrcp.pop %v537
    %v539 = vmul.f32 1.0, %v538
    %v540 = vtanh.pop %v526
    %v541 = vxor.u32 %v527, 2147483648
    %v542 = vmul.f32 %v541, 1.442695
    %v543 = vpow.pop %v542
    %v544 = vadd.f32 %v543, 1.0
    %v545 = vrcp.pop %v544
    %v546 = vmul.f32 1.0, %v545
    %v547 = vmul.f32 %v539, %v381
    %v548 = vmul.f32 %v533, %v540
    %v549 = vadd.f32 %v547, %v548
    %v550 = vtanh.pop %v549
    %v551 = vmul.f32 %v546, %v550
    %552 = vmatprep.subr.mxu0 %v153
    %553 = vmatpush1.msra.mxu0 %v152
    %554 = vmatprep.subr.mxu0 %v157
    %555 = vmatpush1.msra.mxu0 %v156
    %556 = vmatprep.subr.mxu0 %v161
    %557 = vmatpush1.msra.mxu0 %v160
    %558 = vmatprep.subr.mxu0 %v165
    %559 = vmatpush1.msra.mxu0 %v164
    %560 = vmatprep.subr.mxu0 %v169
    %561 = vmatpush1.msra.mxu0 %v168
    %562 = vmatprep.subr.mxu0 %v173
    %563 = vmatpush1.msra.mxu0 %v172
    %564 = vmatprep.subr.mxu0 %v177
    %565 = vmatpush1.msra.mxu0 %v176
    %566 = vmatprep.subr.mxu0 %v181
    %567 = vmatpush1.msra.mxu0 %v180
    %568 = vmatprep.subr.mxu0 %v185
    %569 = vmatpush1.msra.mxu0 %v184
    %570 = vmatprep.subr.mxu0 %v189
    %571 = vmatpush1.msra.mxu0 %v188
    %572 = vmatprep.subr.mxu0 %v193
    %573 = vmatpush1.msra.mxu0 %v192
    %574 = vmatprep.subr.mxu0 %v197
    %575 = vmatpush1.msra.mxu0 %v196
    %576 = vmatprep.subr.mxu0 %v201
    %577 = vmatpush1.msra.mxu0 %v200
    %578 = vmatprep.subr.mxu0 %v205
    %579 = vmatpush1.msra.mxu0 %v204
    %580 = vmatprep.subr.mxu0 %v209
    %581 = vmatpush1.msra.mxu0 %v208
    %582 = vmatprep.subr.mxu0 %v213
    %583 = vmatpush1.msra.mxu0 %v212
    %584 = vmatprep.subr.mxu0 0.0
    %585 = vmatpush1.msra.mxu0 0.0
    %586 = vmatprep.subr.mxu0 0.0
    %587 = vmatpush1.msra.mxu0 0.0
    %588 = vmatprep.subr.mxu0 0.0
    %589 = vmatpush1.msra.mxu0 0.0
    %590 = vmatprep.subr.mxu0 0.0
    %591 = vmatpush1.msra.mxu0 0.0
    %592 = vmatprep.subr.mxu0 0.0
    %593 = vmatpush1.msra.mxu0 0.0
    %594 = vmatprep.subr.mxu0 0.0
    %595 = vmatpush1.msra.mxu0 0.0
    %596 = vmatprep.subr.mxu0 0.0
    %597 = vmatpush1.msra.mxu0 0.0
    %598 = vmatprep.subr.mxu0 0.0
    %599 = vmatpush1.msra.mxu0 0.0
    %600 = vmatprep.subr.mxu0 0.0
    %601 = vmatpush1.msra.mxu0 0.0
    %602 = vmatprep.subr.mxu0 0.0
    %603 = vmatpush1.msra.mxu0 0.0
    %604 = vmatprep.subr.mxu0 0.0
    %605 = vmatpush1.msra.mxu0 0.0
    %606 = vmatprep.subr.mxu0 0.0
    %607 = vmatpush1.msra.mxu0 0.0
    %608 = vmatprep.subr.mxu0 0.0
    %609 = vmatpush1.msra.mxu0 0.0
    %610 = vmatprep.subr.mxu0 0.0
    %611 = vmatpush1.msra.mxu0 0.0
    %612 = vmatprep.subr.mxu0 0.0
    %613 = vmatpush1.msra.mxu0 0.0
    %614 = vmatprep.subr.mxu0 0.0
    %615 = vmatpush1.msra.mxu0 0.0
    %616 = vmatprep.mubr.f32.mxu0 0.0
    %617 = vmatmul.mubr.f32.gmra.mrb[0].mxu0 %v551
    %v618 = vpop.f32.mrb[0].mxu0
    %v619 = vadd.f32 0.0, %v618
    %v620 = vpop.f32.mrb[0].mxu0
    %v621 = vadd.f32 0.0, %v620
    %622 = vdwg.mxu0
    %623 = vmatprep.subr.mxu0 %v155
    %624 = vmatpush1.msra.mxu0 %v154
    %625 = vmatprep.subr.mxu0 %v159
    %626 = vmatpush1.msra.mxu0 %v158
    %627 = vmatprep.subr.mxu0 %v163
    %628 = vmatpush1.msra.mxu0 %v162
    %629 = vmatprep.subr.mxu0 %v167
    %630 = vmatpush1.msra.mxu0 %v166
    %631 = vmatprep.subr.mxu0 %v171
    %632 = vmatpush1.msra.mxu0 %v170
    %633 = vmatprep.subr.mxu0 %v175
    %634 = vmatpush1.msra.mxu0 %v174
    %635 = vmatprep.subr.mxu0 %v179
    %636 = vmatpush1.msra.mxu0 %v178
    %637 = vmatprep.subr.mxu0 %v183
    %638 = vmatpush1.msra.mxu0 %v182
    %639 = vmatprep.subr.mxu0 %v187
    %640 = vmatpush1.msra.mxu0 %v186
    %641 = vmatprep.subr.mxu0 %v191
    %642 = vmatpush1.msra.mxu0 %v190
    %643 = vmatprep.subr.mxu0 %v195
    %644 = vmatpush1.msra.mxu0 %v194
    %645 = vmatprep.subr.mxu0 %v199
    %646 = vmatpush1.msra.mxu0 %v198
    %647 = vmatprep.subr.mxu0 %v203
    %648 = vmatpush1.msra.mxu0 %v202
    %649 = vmatprep.subr.mxu0 %v207
    %650 = vmatpush1.msra.mxu0 %v206
    %651 = vmatprep.subr.mxu0 %v211
    %652 = vmatpush1.msra.mxu0 %v210
    %653 = vmatprep.subr.mxu0 %v215
    %654 = vmatpush1.msra.mxu0 %v214
    %655 = vmatprep.subr.mxu0 0.0
    %656 = vmatpush1.msra.mxu0 0.0
    %657 = vmatprep.subr.mxu0 0.0
    %658 = vmatpush1.msra.mxu0 0.0
    %659 = vmatprep.subr.mxu0 0.0
    %660 = vmatpush1.msra.mxu0 0.0
    %661 = vmatprep.subr.mxu0 0.0
    %662 = vmatpush1.msra.mxu0 0.0
    %663 = vmatprep.subr.mxu0 0.0
    %664 = vmatpush1.msra.mxu0 0.0
    %665 = vmatprep.subr.mxu0 0.0
    %666 = vmatpush1.msra.mxu0 0.0
    %667 = vmatprep.subr.mxu0 0.0
    %668 = vmatpush1.msra.mxu0 0.0
    %669 = vmatprep.subr.mxu0 0.0
    %670 = vmatpush1.msra.mxu0 0.0
    %671 = vmatprep.subr.mxu0 0.0
    %672 = vmatpush1.msra.mxu0 0.0
    %673 = vmatprep.subr.mxu0 0.0
    %674 = vmatpush1.msra.mxu0 0.0
    %675 = vmatprep.subr.mxu0 0.0
    %676 = vmatpush1.msra.mxu0 0.0
    %677 = vmatprep.subr.mxu0 0.0
    %678 = vmatpush1.msra.mxu0 0.0
    %679 = vmatprep.subr.mxu0 0.0
    %680 = vmatpush1.msra.mxu0 0.0
    %681 = vmatprep.subr.mxu0 0.0
    %682 = vmatpush1.msra.mxu0 0.0
    %683 = vmatprep.subr.mxu0 0.0
    %684 = vmatpush1.msra.mxu0 0.0
    %685 = vmatprep.subr.mxu0 0.0
    %686 = vmatpush1.msra.mxu0 0.0
    %687 = vmatprep.mubr.f32.mxu0 0.0
    %688 = vmatmul.mubr.f32.gmra.mrb[0].mxu0 %v551
    %v689 = vpop.f32.mrb[0].mxu0
    %v690 = vadd.f32 0.0, %v689
    %v691 = vpop.f32.mrb[0].mxu0
    %v692 = vadd.f32 0.0, %v691
    %693 = vdwg.mxu0
    %v698 = vrot.slane %v619, 7
    %v699 = vrot.slane %v621, 7
    %v700 = vrot.slane %v690, 7
    %v701 = vrot.slane %v692, 7
    %v706 = vadd.f32 %v305, %v698
    %v707 = vadd.f32 %v307, %v699
    %v708 = vadd.f32 %v376, %v700
    %v709 = vadd.f32 %v378, %v701
    %v710 = vxor.u32 %v706, 2147483648
    %v711 = vmul.f32 %v710, 1.442695
    %v712 = vpow.pop %v711
    %v713 = vadd.f32 %v712, 1.0
    %v714 = vrcp.pop %v713
    %v715 = vmul.f32 1.0, %v714
    %v716 = vxor.u32 %v707, 2147483648
    %v717 = vmul.f32 %v716, 1.442695
    %v718 = vpow.pop %v717
    %v719 = vadd.f32 %v718, 1.0
    %v720 = vrcp.pop %v719
    %v721 = vmul.f32 1.0, %v720
    %v722 = vtanh.pop %v708
    %v723 = vxor.u32 %v709, 2147483648
    %v724 = vmul.f32 %v723, 1.442695
    %v725 = vpow.pop %v724
    %v726 = vadd.f32 %v725, 1.0
    %v727 = vrcp.pop %v726
    %v728 = vmul.f32 1.0, %v727
    %v730 = vrot.slane %v549, 7
    %v732 = vmul.f32 %v721, %v730
    %v733 = vmul.f32 %v715, %v722
    %v734 = vadd.f32 %v732, %v733
    %v735 = vtanh.pop %v734
    %v736 = vmul.f32 %v728, %v735
    %v738 = vrot.slane %v736, 1
    %740 = vmatprep.subr.mxu0 %v153
    %741 = vmatpush1.msra.mxu0 %v152
    %742 = vmatprep.subr.mxu0 %v157
    %743 = vmatpush1.msra.mxu0 %v156
    %744 = vmatprep.subr.mxu0 %v161
    %745 = vmatpush1.msra.mxu0 %v160
    %746 = vmatprep.subr.mxu0 %v165
    %747 = vmatpush1.msra.mxu0 %v164
    %748 = vmatprep.subr.mxu0 %v169
    %749 = vmatpush1.msra.mxu0 %v168
    %750 = vmatprep.subr.mxu0 %v173
    %751 = vmatpush1.msra.mxu0 %v172
    %752 = vmatprep.subr.mxu0 %v177
    %753 = vmatpush1.msra.mxu0 %v176
    %754 = vmatprep.subr.mxu0 %v181
    %755 = vmatpush1.msra.mxu0 %v180
    %756 = vmatprep.subr.mxu0 %v185
    %757 = vmatpush1.msra.mxu0 %v184
    %758 = vmatprep.subr.mxu0 %v189
    %759 = vmatpush1.msra.mxu0 %v188
    %760 = vmatprep.subr.mxu0 %v193
    %761 = vmatpush1.msra.mxu0 %v192
    %762 = vmatprep.subr.mxu0 %v197
    %763 = vmatpush1.msra.mxu0 %v196
    %764 = vmatprep.subr.mxu0 %v201
    %765 = vmatpush1.msra.mxu0 %v200
    %766 = vmatprep.subr.mxu0 %v205
    %767 = vmatpush1.msra.mxu0 %v204
    %768 = vmatprep.subr.mxu0 %v209
    %769 = vmatpush1.msra.mxu0 %v208
    %770 = vmatprep.subr.mxu0 %v213
    %771 = vmatpush1.msra.mxu0 %v212
    %772 = vmatprep.subr.mxu0 0.0
    %773 = vmatpush1.msra.mxu0 0.0
    %774 = vmatprep.subr.mxu0 0.0
    %775 = vmatpush1.msra.mxu0 0.0
    %776 = vmatprep.subr.mxu0 0.0
    %777 = vmatpush1.msra.mxu0 0.0
    %778 = vmatprep.subr.mxu0 0.0
    %779 = vmatpush1.msra.mxu0 0.0
    %780 = vmatprep.subr.mxu0 0.0
    %781 = vmatpush1.msra.mxu0 0.0
    %782 = vmatprep.subr.mxu0 0.0
    %783 = vmatpush1.msra.mxu0 0.0
    %784 = vmatprep.subr.mxu0 0.0
    %785 = vmatpush1.msra.mxu0 0.0
    %786 = vmatprep.subr.mxu0 0.0
    %787 = vmatpush1.msra.mxu0 0.0
    %788 = vmatprep.subr.mxu0 0.0
    %789 = vmatpush1.msra.mxu0 0.0
    %790 = vmatprep.subr.mxu0 0.0
    %791 = vmatpush1.msra.mxu0 0.0
    %792 = vmatprep.subr.mxu0 0.0
    %793 = vmatpush1.msra.mxu0 0.0
    %794 = vmatprep.subr.mxu0 0.0
    %795 = vmatpush1.msra.mxu0 0.0
    %796 = vmatprep.subr.mxu0 0.0
    %797 = vmatpush1.msra.mxu0 0.0
    %798 = vmatprep.subr.mxu0 0.0
    %799 = vmatpush1.msra.mxu0 0.0
    %800 = vmatprep.subr.mxu0 0.0
    %801 = vmatpush1.msra.mxu0 0.0
    %802 = vmatprep.subr.mxu0 0.0
    %803 = vmatpush1.msra.mxu0 0.0
    %804 = vmatprep.mubr.f32.mxu0 0.0
    %805 = vmatmul.mubr.f32.gmra.mrb[0].mxu0 %v738
    %v806 = vpop.f32.mrb[0].mxu0
    %v807 = vadd.f32 0.0, %v806
    %v808 = vpop.f32.mrb[0].mxu0
    %v809 = vadd.f32 0.0, %v808
    %810 = vdwg.mxu0
    %811 = vmatprep.subr.mxu0 %v155
    %812 = vmatpush1.msra.mxu0 %v154
    %813 = vmatprep.subr.mxu0 %v159
    %814 = vmatpush1.msra.mxu0 %v158
    %815 = vmatprep.subr.mxu0 %v163
    %816 = vmatpush1.msra.mxu0 %v162
    %817 = vmatprep.subr.mxu0 %v167
    %818 = vmatpush1.msra.mxu0 %v166
    %819 = vmatprep.subr.mxu0 %v171
    %820 = vmatpush1.msra.mxu0 %v170
    %821 = vmatprep.subr.mxu0 %v175
    %822 = vmatpush1.msra.mxu0 %v174
    %823 = vmatprep.subr.mxu0 %v179
    %824 = vmatpush1.msra.mxu0 %v178
    %825 = vmatprep.subr.mxu0 %v183
    %826 = vmatpush1.msra.mxu0 %v182
    %827 = vmatprep.subr.mxu0 %v187
    %828 = vmatpush1.msra.mxu0 %v186
    %829 = vmatprep.subr.mxu0 %v191
    %830 = vmatpush1.msra.mxu0 %v190
    %831 = vmatprep.subr.mxu0 %v195
    %832 = vmatpush1.msra.mxu0 %v194
    %833 = vmatprep.subr.mxu0 %v199
    %834 = vmatpush1.msra.mxu0 %v198
    %835 = vmatprep.subr.mxu0 %v203
    %836 = vmatpush1.msra.mxu0 %v202
    %837 = vmatprep.subr.mxu0 %v207
    %838 = vmatpush1.msra.mxu0 %v206
    %839 = vmatprep.subr.mxu0 %v211
    %840 = vmatpush1.msra.mxu0 %v210
    %841 = vmatprep.subr.mxu0 %v215
    %842 = vmatpush1.msra.mxu0 %v214
    %843 = vmatprep.subr.mxu0 0.0
    %844 = vmatpush1.msra.mxu0 0.0
    %845 = vmatprep.subr.mxu0 0.0
    %846 = vmatpush1.msra.mxu0 0.0
    %847 = vmatprep.subr.mxu0 0.0
    %848 = vmatpush1.msra.mxu0 0.0
    %849 = vmatprep.subr.mxu0 0.0
    %850 = vmatpush1.msra.mxu0 0.0
    %851 = vmatprep.subr.mxu0 0.0
    %852 = vmatpush1.msra.mxu0 0.0
    %853 = vmatprep.subr.mxu0 0.0
    %854 = vmatpush1.msra.mxu0 0.0
    %855 = vmatprep.subr.mxu0 0.0
    %856 = vmatpush1.msra.mxu0 0.0
    %857 = vmatprep.subr.mxu0 0.0
    %858 = vmatpush1.msra.mxu0 0.0
    %859 = vmatprep.subr.mxu0 0.0
    %860 = vmatpush1.msra.mxu0 0.0
    %861 = vmatprep.subr.mxu0 0.0
    %862 = vmatpush1.msra.mxu0 0.0
    %863 = vmatprep.subr.mxu0 0.0
    %864 = vmatpush1.msra.mxu0 0.0
    %865 = vmatprep.subr.mxu0 0.0
    %866 = vmatpush1.msra.mxu0 0.0
    %867 = vmatprep.subr.mxu0 0.0
    %868 = vmatpush1.msra.mxu0 0.0
    %869 = vmatprep.subr.mxu0 0.0
    %870 = vmatpush1.msra.mxu0 0.0
    %871 = vmatprep.subr.mxu0 0.0
    %872 = vmatpush1.msra.mxu0 0.0
    %873 = vmatprep.subr.mxu0 0.0
    %874 = vmatpush1.msra.mxu0 0.0
    %875 = vmatprep.mubr.f32.mxu0 0.0
    %876 = vmatmul.mubr.f32.gmra.mrb[0].mxu0 %v738
    %v877 = vpop.f32.mrb[0].mxu0
    %v878 = vadd.f32 0.0, %v877
    %v879 = vpop.f32.mrb[0].mxu0
    %v880 = vadd.f32 0.0, %v879
    %881 = vdwg.mxu0
    %v886 = vrot.slane %v807, 6
    %v887 = vrot.slane %v809, 6
    %v888 = vrot.slane %v878, 6
    %v889 = vrot.slane %v880, 6
    %v894 = vadd.f32 %v305, %v886
    %v895 = vadd.f32 %v307, %v887
    %v896 = vadd.f32 %v376, %v888
    %v897 = vadd.f32 %v378, %v889
    %v898 = vxor.u32 %v894, 2147483648
    %v899 = vmul.f32 %v898, 1.442695
    %v900 = vpow.pop %v899
    %v901 = vadd.f32 %v900, 1.0
    %v902 = vrcp.pop %v901
    %v903 = vmul.f32 1.0, %v902
    %v904 = vxor.u32 %v895, 2147483648
    %v905 = vmul.f32 %v904, 1.442695
    %v906 = vpow.pop %v905
    %v907 = vadd.f32 %v906, 1.0
    %v908 = vrcp.pop %v907
    %v909 = vmul.f32 1.0, %v908
    %v910 = vtanh.pop %v896
    %v911 = vxor.u32 %v897, 2147483648
    %v912 = vmul.f32 %v911, 1.442695
    %v913 = vpow.pop %v912
    %v914 = vadd.f32 %v913, 1.0
    %v915 = vrcp.pop %v914
    %v916 = vmul.f32 1.0, %v915
    %v918 = vrot.slane %v734, 7
    %v920 = vmul.f32 %v909, %v918
    %v921 = vmul.f32 %v903, %v910
    %v922 = vadd.f32 %v920, %v921
    %v923 = vtanh.pop %v922
    %v924 = vmul.f32 %v916, %v923
    %v926 = vrot.slane %v924, 2
    %928 = vmatprep.subr.mxu0 %v153
    %929 = vmatpush1.msra.mxu0 %v152
    %930 = vmatprep.subr.mxu0 %v157
    %931 = vmatpush1.msra.mxu0 %v156
    %932 = vmatprep.subr.mxu0 %v161
    %933 = vmatpush1.msra.mxu0 %v160
    %934 = vmatprep.subr.mxu0 %v165
    %935 = vmatpush1.msra.mxu0 %v164
    %936 = vmatprep.subr.mxu0 %v169
    %937 = vmatpush1.msra.mxu0 %v168
    %938 = vmatprep.subr.mxu0 %v173
    %939 = vmatpush1.msra.mxu0 %v172
    %940 = vmatprep.subr.mxu0 %v177
    %941 = vmatpush1.msra.mxu0 %v176
    %942 = vmatprep.subr.mxu0 %v181
    %943 = vmatpush1.msra.mxu0 %v180
    %944 = vmatprep.subr.mxu0 %v185
    %945 = vmatpush1.msra.mxu0 %v184
    %946 = vmatprep.subr.mxu0 %v189
    %947 = vmatpush1.msra.mxu0 %v188
    %948 = vmatprep.subr.mxu0 %v193
    %949 = vmatpush1.msra.mxu0 %v192
    %950 = vmatprep.subr.mxu0 %v197
    %951 = vmatpush1.msra.mxu0 %v196
    %952 = vmatprep.subr.mxu0 %v201
    %953 = vmatpush1.msra.mxu0 %v200
    %954 = vmatprep.subr.mxu0 %v205
    %955 = vmatpush1.msra.mxu0 %v204
    %956 = vmatprep.subr.mxu0 %v209
    %957 = vmatpush1.msra.mxu0 %v208
    %958 = vmatprep.subr.mxu0 %v213
    %959 = vmatpush1.msra.mxu0 %v212
    %960 = vmatprep.subr.mxu0 0.0
    %961 = vmatpush1.msra.mxu0 0.0
    %962 = vmatprep.subr.mxu0 0.0
    %963 = vmatpush1.msra.mxu0 0.0
    %964 = vmatprep.subr.mxu0 0.0
    %965 = vmatpush1.msra.mxu0 0.0
    %966 = vmatprep.subr.mxu0 0.0
    %967 = vmatpush1.msra.mxu0 0.0
    %968 = vmatprep.subr.mxu0 0.0
    %969 = vmatpush1.msra.mxu0 0.0
    %970 = vmatprep.subr.mxu0 0.0
    %971 = vmatpush1.msra.mxu0 0.0
    %972 = vmatprep.subr.mxu0 0.0
    %973 = vmatpush1.msra.mxu0 0.0
    %974 = vmatprep.subr.mxu0 0.0
    %975 = vmatpush1.msra.mxu0 0.0
    %976 = vmatprep.subr.mxu0 0.0
    %977 = vmatpush1.msra.mxu0 0.0
    %978 = vmatprep.subr.mxu0 0.0
    %979 = vmatpush1.msra.mxu0 0.0
    %980 = vmatprep.subr.mxu0 0.0
    %981 = vmatpush1.msra.mxu0 0.0
    %982 = vmatprep.subr.mxu0 0.0
    %983 = vmatpush1.msra.mxu0 0.0
    %984 = vmatprep.subr.mxu0 0.0
    %985 = vmatpush1.msra.mxu0 0.0
    %986 = vmatprep.subr.mxu0 0.0
    %987 = vmatpush1.msra.mxu0 0.0
    %988 = vmatprep.subr.mxu0 0.0
    %989 = vmatpush1.msra.mxu0 0.0
    %990 = vmatprep.subr.mxu0 0.0
    %991 = vmatpush1.msra.mxu0 0.0
    %992 = vmatprep.mubr.f32.mxu0 0.0
    %993 = vmatmul.mubr.f32.gmra.mrb[0].mxu0 %v926
    %v994 = vpop.f32.mrb[0].mxu0
    %v995 = vadd.f32 0.0, %v994
    %v996 = vpop.f32.mrb[0].mxu0
    %v997 = vadd.f32 0.0, %v996
    %998 = vdwg.mxu0
    %999 = vmatprep.subr.mxu0 %v155
    %1000 = vmatpush1.msra.mxu0 %v154
    %1001 = vmatprep.subr.mxu0 %v159
    %1002 = vmatpush1.msra.mxu0 %v158
    %1003 = vmatprep.subr.mxu0 %v163
    %1004 = vmatpush1.msra.mxu0 %v162
    %1005 = vmatprep.subr.mxu0 %v167
    %1006 = vmatpush1.msra.mxu0 %v166
    %1007 = vmatprep.subr.mxu0 %v171
    %1008 = vmatpush1.msra.mxu0 %v170
    %1009 = vmatprep.subr.mxu0 %v175
    %1010 = vmatpush1.msra.mxu0 %v174
    %1011 = vmatprep.subr.mxu0 %v179
    %1012 = vmatpush1.msra.mxu0 %v178
    %1013 = vmatprep.subr.mxu0 %v183
    %1014 = vmatpush1.msra.mxu0 %v182
    %1015 = vmatprep.subr.mxu0 %v187
    %1016 = vmatpush1.msra.mxu0 %v186
    %1017 = vmatprep.subr.mxu0 %v191
    %1018 = vmatpush1.msra.mxu0 %v190
    %1019 = vmatprep.subr.mxu0 %v195
    %1020 = vmatpush1.msra.mxu0 %v194
    %1021 = vmatprep.subr.mxu0 %v199
    %1022 = vmatpush1.msra.mxu0 %v198
    %1023 = vmatprep.subr.mxu0 %v203
    %1024 = vmatpush1.msra.mxu0 %v202
    %1025 = vmatprep.subr.mxu0 %v207
    %1026 = vmatpush1.msra.mxu0 %v206
    %1027 = vmatprep.subr.mxu0 %v211
    %1028 = vmatpush1.msra.mxu0 %v210
    %1029 = vmatprep.subr.mxu0 %v215
    %1030 = vmatpush1.msra.mxu0 %v214
    %1031 = vmatprep.subr.mxu0 0.0
    %1032 = vmatpush1.msra.mxu0 0.0
    %1033 = vmatprep.subr.mxu0 0.0
    %1034 = vmatpush1.msra.mxu0 0.0
    %1035 = vmatprep.subr.mxu0 0.0
    %1036 = vmatpush1.msra.mxu0 0.0
    %1037 = vmatprep.subr.mxu0 0.0
    %1038 = vmatpush1.msra.mxu0 0.0
    %1039 = vmatprep.subr.mxu0 0.0
    %1040 = vmatpush1.msra.mxu0 0.0
    %1041 = vmatprep.subr.mxu0 0.0
    %1042 = vmatpush1.msra.mxu0 0.0
    %1043 = vmatprep.subr.mxu0 0.0
    %1044 = vmatpush1.msra.mxu0 0.0
    %1045 = vmatprep.subr.mxu0 0.0
    %1046 = vmatpush1.msra.mxu0 0.0
    %1047 = vmatprep.subr.mxu0 0.0
    %1048 = vmatpush1.msra.mxu0 0.0
    %1049 = vmatprep.subr.mxu0 0.0
    %1050 = vmatpush1.msra.mxu0 0.0
    %1051 = vmatprep.subr.mxu0 0.0
    %1052 = vmatpush1.msra.mxu0 0.0
    %1053 = vmatprep.subr.mxu0 0.0
    %1054 = vmatpush1.msra.mxu0 0.0
    %1055 = vmatprep.subr.mxu0 0.0
    %1056 = vmatpush1.msra.mxu0 0.0
    %1057 = vmatprep.subr.mxu0 0.0
    %1058 = vmatpush1.msra.mxu0 0.0
    %1059 = vmatprep.subr.mxu0 0.0
    %1060 = vmatpush1.msra.mxu0 0.0
    %1061 = vmatprep.subr.mxu0 0.0
    %1062 = vmatpush1.msra.mxu0 0.0
    %1063 = vmatprep.mubr.f32.mxu0 0.0
    %1064 = vmatmul.mubr.f32.gmra.mrb[0].mxu0 %v926
    %v1065 = vpop.f32.mrb[0].mxu0
    %v1066 = vadd.f32 0.0, %v1065
    %v1067 = vpop.f32.mrb[0].mxu0
    %v1068 = vadd.f32 0.0, %v1067
    %1069 = vdwg.mxu0
    %v1074 = vrot.slane %v995, 5
    %v1075 = vrot.slane %v997, 5
    %v1076 = vrot.slane %v1066, 5
    %v1077 = vrot.slane %v1068, 5
    %v1082 = vadd.f32 %v305, %v1074
    %v1083 = vadd.f32 %v307, %v1075
    %v1084 = vadd.f32 %v376, %v1076
    %v1085 = vadd.f32 %v378, %v1077
    %v1086 = vxor.u32 %v1082, 2147483648
    %v1087 = vmul.f32 %v1086, 1.442695
    %v1088 = vpow.pop %v1087
    %v1089 = vadd.f32 %v1088, 1.0
    %v1090 = vrcp.pop %v1089
    %v1091 = vmul.f32 1.0, %v1090
    %v1092 = vxor.u32 %v1083, 2147483648
    %v1093 = vmul.f32 %v1092, 1.442695
    %v1094 = vpow.pop %v1093
    %v1095 = vadd.f32 %v1094, 1.0
    %v1096 = vrcp.pop %v1095
    %v1097 = vmul.f32 1.0, %v1096
    %v1098 = vtanh.pop %v1084
    %v1099 = vxor.u32 %v1085, 2147483648
    %v1100 = vmul.f32 %v1099, 1.442695
    %v1101 = vpow.pop %v1100
    %v1102 = vadd.f32 %v1101, 1.0
    %v1103 = vrcp.pop %v1102
    %v1104 = vmul.f32 1.0, %v1103
    %v1106 = vrot.slane %v922, 7
    %v1108 = vmul.f32 %v1097, %v1106
    %v1109 = vmul.f32 %v1091, %v1098
    %v1110 = vadd.f32 %v1108, %v1109
    %v1111 = vtanh.pop %v1110
    %v1112 = vmul.f32 %v1104, %v1111
    %v1114 = vrot.slane %v1112, 3
    %1116 = vmatprep.subr.mxu0 %v153
    %1117 = vmatpush1.msra.mxu0 %v152
    %1118 = vmatprep.subr.mxu0 %v157
    %1119 = vmatpush1.msra.mxu0 %v156
    %1120 = vmatprep.subr.mxu0 %v161
    %1121 = vmatpush1.msra.mxu0 %v160
    %1122 = vmatprep.subr.mxu0 %v165
    %1123 = vmatpush1.msra.mxu0 %v164
    %1124 = vmatprep.subr.mxu0 %v169
    %1125 = vmatpush1.msra.mxu0 %v168
    %1126 = vmatprep.subr.mxu0 %v173
    %1127 = vmatpush1.msra.mxu0 %v172
    %1128 = vmatprep.subr.mxu0 %v177
    %1129 = vmatpush1.msra.mxu0 %v176
    %1130 = vmatprep.subr.mxu0 %v181
    %1131 = vmatpush1.msra.mxu0 %v180
    %1132 = vmatprep.subr.mxu0 %v185
    %1133 = vmatpush1.msra.mxu0 %v184
    %1134 = vmatprep.subr.mxu0 %v189
    %1135 = vmatpush1.msra.mxu0 %v188
    %1136 = vmatprep.subr.mxu0 %v193
    %1137 = vmatpush1.msra.mxu0 %v192
    %1138 = vmatprep.subr.mxu0 %v197
    %1139 = vmatpush1.msra.mxu0 %v196
    %1140 = vmatprep.subr.mxu0 %v201
    %1141 = vmatpush1.msra.mxu0 %v200
    %1142 = vmatprep.subr.mxu0 %v205
    %1143 = vmatpush1.msra.mxu0 %v204
    %1144 = vmatprep.subr.mxu0 %v209
    %1145 = vmatpush1.msra.mxu0 %v208
    %1146 = vmatprep.subr.mxu0 %v213
    %1147 = vmatpush1.msra.mxu0 %v212
    %1148 = vmatprep.subr.mxu0 0.0
    %1149 = vmatpush1.msra.mxu0 0.0
    %1150 = vmatprep.subr.mxu0 0.0
    %1151 = vmatpush1.msra.mxu0 0.0
    %1152 = vmatprep.subr.mxu0 0.0
    %1153 = vmatpush1.msra.mxu0 0.0
    %1154 = vmatprep.subr.mxu0 0.0
    %1155 = vmatpush1.msra.mxu0 0.0
    %1156 = vmatprep.subr.mxu0 0.0
    %1157 = vmatpush1.msra.mxu0 0.0
    %1158 = vmatprep.subr.mxu0 0.0
    %1159 = vmatpush1.msra.mxu0 0.0
    %1160 = vmatprep.subr.mxu0 0.0
    %1161 = vmatpush1.msra.mxu0 0.0
    %1162 = vmatprep.subr.mxu0 0.0
    %1163 = vmatpush1.msra.mxu0 0.0
    %1164 = vmatprep.subr.mxu0 0.0
    %1165 = vmatpush1.msra.mxu0 0.0
    %1166 = vmatprep.subr.mxu0 0.0
    %1167 = vmatpush1.msra.mxu0 0.0
    %1168 = vmatprep.subr.mxu0 0.0
    %1169 = vmatpush1.msra.mxu0 0.0
    %1170 = vmatprep.subr.mxu0 0.0
    %1171 = vmatpush1.msra.mxu0 0.0
    %1172 = vmatprep.subr.mxu0 0.0
    %1173 = vmatpush1.msra.mxu0 0.0
    %1174 = vmatprep.subr.mxu0 0.0
    %1175 = vmatpush1.msra.mxu0 0.0
    %1176 = vmatprep.subr.mxu0 0.0
    %1177 = vmatpush1.msra.mxu0 0.0
    %1178 = vmatprep.subr.mxu0 0.0
    %1179 = vmatpush1.msra.mxu0 0.0
    %1180 = vmatprep.mubr.f32.mxu0 0.0
    %1181 = vmatmul.mubr.f32.gmra.mrb[0].mxu0 %v1114
    %v1182 = vpop.f32.mrb[0].mxu0
    %v1183 = vadd.f32 0.0, %v1182
    %v1184 = vpop.f32.mrb[0].mxu0
    %v1185 = vadd.f32 0.0, %v1184
    %1186 = vdwg.mxu0
    %1187 = vmatprep.subr.mxu0 %v155
    %1188 = vmatpush1.msra.mxu0 %v154
    %1189 = vmatprep.subr.mxu0 %v159
    %1190 = vmatpush1.msra.mxu0 %v158
    %1191 = vmatprep.subr.mxu0 %v163
    %1192 = vmatpush1.msra.mxu0 %v162
    %1193 = vmatprep.subr.mxu0 %v167
    %1194 = vmatpush1.msra.mxu0 %v166
    %1195 = vmatprep.subr.mxu0 %v171
    %1196 = vmatpush1.msra.mxu0 %v170
    %1197 = vmatprep.subr.mxu0 %v175
    %1198 = vmatpush1.msra.mxu0 %v174
    %1199 = vmatprep.subr.mxu0 %v179
    %1200 = vmatpush1.msra.mxu0 %v178
    %1201 = vmatprep.subr.mxu0 %v183
    %1202 = vmatpush1.msra.mxu0 %v182
    %1203 = vmatprep.subr.mxu0 %v187
    %1204 = vmatpush1.msra.mxu0 %v186
    %1205 = vmatprep.subr.mxu0 %v191
    %1206 = vmatpush1.msra.mxu0 %v190
    %1207 = vmatprep.subr.mxu0 %v195
    %1208 = vmatpush1.msra.mxu0 %v194
    %1209 = vmatprep.subr.mxu0 %v199
    %1210 = vmatpush1.msra.mxu0 %v198
    %1211 = vmatprep.subr.mxu0 %v203
    %1212 = vmatpush1.msra.mxu0 %v202
    %1213 = vmatprep.subr.mxu0 %v207
    %1214 = vmatpush1.msra.mxu0 %v206
    %1215 = vmatprep.subr.mxu0 %v211
    %1216 = vmatpush1.msra.mxu0 %v210
    %1217 = vmatprep.subr.mxu0 %v215
    %1218 = vmatpush1.msra.mxu0 %v214
    %1219 = vmatprep.subr.mxu0 0.0
    %1220 = vmatpush1.msra.mxu0 0.0
    %1221 = vmatprep.subr.mxu0 0.0
    %1222 = vmatpush1.msra.mxu0 0.0
    %1223 = vmatprep.subr.mxu0 0.0
    %1224 = vmatpush1.msra.mxu0 0.0
    %1225 = vmatprep.subr.mxu0 0.0
    %1226 = vmatpush1.msra.mxu0 0.0
    %1227 = vmatprep.subr.mxu0 0.0
    %1228 = vmatpush1.msra.mxu0 0.0
    %1229 = vmatprep.subr.mxu0 0.0
    %1230 = vmatpush1.msra.mxu0 0.0
    %1231 = vmatprep.subr.mxu0 0.0
    %1232 = vmatpush1.msra.mxu0 0.0
    %1233 = vmatprep.subr.mxu0 0.0
    %1234 = vmatpush1.msra.mxu0 0.0
    %1235 = vmatprep.subr.mxu0 0.0
    %1236 = vmatpush1.msra.mxu0 0.0
    %1237 = vmatprep.subr.mxu0 0.0
    %1238 = vmatpush1.msra.mxu0 0.0
    %1239 = vmatprep.subr.mxu0 0.0
    %1240 = vmatpush1.msra.mxu0 0.0
    %1241 = vmatprep.subr.mxu0 0.0
    %1242 = vmatpush1.msra.mxu0 0.0
    %1243 = vmatprep.subr.mxu0 0.0
    %1244 = vmatpush1.msra.mxu0 0.0
    %1245 = vmatprep.subr.mxu0 0.0
    %1246 = vmatpush1.msra.mxu0 0.0
    %1247 = vmatprep.subr.mxu0 0.0
    %1248 = vmatpush1.msra.mxu0 0.0
    %1249 = vmatprep.subr.mxu0 0.0
    %1250 = vmatpush1.msra.mxu0 0.0
    %1251 = vmatprep.mubr.f32.mxu0 0.0
    %1252 = vmatmul.mubr.f32.gmra.mrb[0].mxu0 %v1114
    %v1253 = vpop.f32.mrb[0].mxu0
    %v1254 = vadd.f32 0.0, %v1253
    %v1255 = vpop.f32.mrb[0].mxu0
    %v1256 = vadd.f32 0.0, %v1255
    %1257 = vdwg.mxu0
    %v1262 = vrot.slane %v1183, 4
    %v1263 = vrot.slane %v1185, 4
    %v1264 = vrot.slane %v1254, 4
    %v1265 = vrot.slane %v1256, 4
    %v1270 = vadd.f32 %v305, %v1262
    %v1271 = vadd.f32 %v307, %v1263
    %v1272 = vadd.f32 %v376, %v1264
    %v1273 = vadd.f32 %v378, %v1265
    %v1274 = vxor.u32 %v1270, 2147483648
    %v1275 = vmul.f32 %v1274, 1.442695
    %v1276 = vpow.pop %v1275
    %v1277 = vadd.f32 %v1276, 1.0
    %v1278 = vrcp.pop %v1277
    %v1279 = vmul.f32 1.0, %v1278
    %v1280 = vxor.u32 %v1271, 2147483648
    %v1281 = vmul.f32 %v1280, 1.442695
    %v1282 = vpow.pop %v1281
    %v1283 = vadd.f32 %v1282, 1.0
    %v1284 = vrcp.pop %v1283
    %v1285 = vmul.f32 1.0, %v1284
    %v1286 = vtanh.pop %v1272
    %v1287 = vxor.u32 %v1273, 2147483648
    %v1288 = vmul.f32 %v1287, 1.442695
    %v1289 = vpow.pop %v1288
    %v1290 = vadd.f32 %v1289, 1.0
    %v1291 = vrcp.pop %v1290
    %v1292 = vmul.f32 1.0, %v1291
    %v1294 = vrot.slane %v1110, 7
    %v1296 = vmul.f32 %v1285, %v1294
    %v1297 = vmul.f32 %v1279, %v1286
    %v1298 = vadd.f32 %v1296, %v1297
    %v1299 = vtanh.pop %v1298
    %v1300 = vmul.f32 %v1292, %v1299
    %v1302 = vrot.slane %v1300, 4
    %1304 = vmatprep.subr.mxu0 %v153
    %1305 = vmatpush1.msra.mxu0 %v152
    %1306 = vmatprep.subr.mxu0 %v157
    %1307 = vmatpush1.msra.mxu0 %v156
    %1308 = vmatprep.subr.mxu0 %v161
    %1309 = vmatpush1.msra.mxu0 %v160
    %1310 = vmatprep.subr.mxu0 %v165
    %1311 = vmatpush1.msra.mxu0 %v164
    %1312 = vmatprep.subr.mxu0 %v169
    %1313 = vmatpush1.msra.mxu0 %v168
    %1314 = vmatprep.subr.mxu0 %v173
    %1315 = vmatpush1.msra.mxu0 %v172
    %1316 = vmatprep.subr.mxu0 %v177
    %1317 = vmatpush1.msra.mxu0 %v176
    %1318 = vmatprep.subr.mxu0 %v181
    %1319 = vmatpush1.msra.mxu0 %v180
    %1320 = vmatprep.subr.mxu0 %v185
    %1321 = vmatpush1.msra.mxu0 %v184
    %1322 = vmatprep.subr.mxu0 %v189
    %1323 = vmatpush1.msra.mxu0 %v188
    %1324 = vmatprep.subr.mxu0 %v193
    %1325 = vmatpush1.msra.mxu0 %v192
    %1326 = vmatprep.subr.mxu0 %v197
    %1327 = vmatpush1.msra.mxu0 %v196
    %1328 = vmatprep.subr.mxu0 %v201
    %1329 = vmatpush1.msra.mxu0 %v200
    %1330 = vmatprep.subr.mxu0 %v205
    %1331 = vmatpush1.msra.mxu0 %v204
    %1332 = vmatprep.subr.mxu0 %v209
    %1333 = vmatpush1.msra.mxu0 %v208
    %1334 = vmatprep.subr.mxu0 %v213
    %1335 = vmatpush1.msra.mxu0 %v212
    %1336 = vmatprep.subr.mxu0 0.0
    %1337 = vmatpush1.msra.mxu0 0.0
    %1338 = vmatprep.subr.mxu0 0.0
    %1339 = vmatpush1.msra.mxu0 0.0
    %1340 = vmatprep.subr.mxu0 0.0
    %1341 = vmatpush1.msra.mxu0 0.0
    %1342 = vmatprep.subr.mxu0 0.0
    %1343 = vmatpush1.msra.mxu0 0.0
    %1344 = vmatprep.subr.mxu0 0.0
    %1345 = vmatpush1.msra.mxu0 0.0
    %1346 = vmatprep.subr.mxu0 0.0
    %1347 = vmatpush1.msra.mxu0 0.0
    %1348 = vmatprep.subr.mxu0 0.0
    %1349 = vmatpush1.msra.mxu0 0.0
    %1350 = vmatprep.subr.mxu0 0.0
    %1351 = vmatpush1.msra.mxu0 0.0
    %1352 = vmatprep.subr.mxu0 0.0
    %1353 = vmatpush1.msra.mxu0 0.0
    %1354 = vmatprep.subr.mxu0 0.0
    %1355 = vmatpush1.msra.mxu0 0.0
    %1356 = vmatprep.subr.mxu0 0.0
    %1357 = vmatpush1.msra.mxu0 0.0
    %1358 = vmatprep.subr.mxu0 0.0
    %1359 = vmatpush1.msra.mxu0 0.0
    %1360 = vmatprep.subr.mxu0 0.0
    %1361 = vmatpush1.msra.mxu0 0.0
    %1362 = vmatprep.subr.mxu0 0.0
    %1363 = vmatpush1.msra.mxu0 0.0
    %1364 = vmatprep.subr.mxu0 0.0
    %1365 = vmatpush1.msra.mxu0 0.0
    %1366 = vmatprep.subr.mxu0 0.0
    %1367 = vmatpush1.msra.mxu0 0.0
    %1368 = vmatprep.mubr.f32.mxu0 0.0
    %1369 = vmatmul.mubr.f32.gmra.mrb[0].mxu0 %v1302
    %v1370 = vpop.f32.mrb[0].mxu0
    %v1371 = vadd.f32 0.0, %v1370
    %v1372 = vpop.f32.mrb[0].mxu0
    %v1373 = vadd.f32 0.0, %v1372
    %1374 = vdwg.mxu0
    %1375 = vmatprep.subr.mxu0 %v155
    %1376 = vmatpush1.msra.mxu0 %v154
    %1377 = vmatprep.subr.mxu0 %v159
    %1378 = vmatpush1.msra.mxu0 %v158
    %1379 = vmatprep.subr.mxu0 %v163
    %1380 = vmatpush1.msra.mxu0 %v162
    %1381 = vmatprep.subr.mxu0 %v167
    %1382 = vmatpush1.msra.mxu0 %v166
    %1383 = vmatprep.subr.mxu0 %v171
    %1384 = vmatpush1.msra.mxu0 %v170
    %1385 = vmatprep.subr.mxu0 %v175
    %1386 = vmatpush1.msra.mxu0 %v174
    %1387 = vmatprep.subr.mxu0 %v179
    %1388 = vmatpush1.msra.mxu0 %v178
    %1389 = vmatprep.subr.mxu0 %v183
    %1390 = vmatpush1.msra.mxu0 %v182
    %1391 = vmatprep.subr.mxu0 %v187
    %1392 = vmatpush1.msra.mxu0 %v186
    %1393 = vmatprep.subr.mxu0 %v191
    %1394 = vmatpush1.msra.mxu0 %v190
    %1395 = vmatprep.subr.mxu0 %v195
    %1396 = vmatpush1.msra.mxu0 %v194
    %1397 = vmatprep.subr.mxu0 %v199
    %1398 = vmatpush1.msra.mxu0 %v198
    %1399 = vmatprep.subr.mxu0 %v203
    %1400 = vmatpush1.msra.mxu0 %v202
    %1401 = vmatprep.subr.mxu0 %v207
    %1402 = vmatpush1.msra.mxu0 %v206
    %1403 = vmatprep.subr.mxu0 %v211
    %1404 = vmatpush1.msra.mxu0 %v210
    %1405 = vmatprep.subr.mxu0 %v215
    %1406 = vmatpush1.msra.mxu0 %v214
    %1407 = vmatprep.subr.mxu0 0.0
    %1408 = vmatpush1.msra.mxu0 0.0
    %1409 = vmatprep.subr.mxu0 0.0
    %1410 = vmatpush1.msra.mxu0 0.0
    %1411 = vmatprep.subr.mxu0 0.0
    %1412 = vmatpush1.msra.mxu0 0.0
    %1413 = vmatprep.subr.mxu0 0.0
    %1414 = vmatpush1.msra.mxu0 0.0
    %1415 = vmatprep.subr.mxu0 0.0
    %1416 = vmatpush1.msra.mxu0 0.0
    %1417 = vmatprep.subr.mxu0 0.0
    %1418 = vmatpush1.msra.mxu0 0.0
    %1419 = vmatprep.subr.mxu0 0.0
    %1420 = vmatpush1.msra.mxu0 0.0
    %1421 = vmatprep.subr.mxu0 0.0
    %1422 = vmatpush1.msra.mxu0 0.0
    %1423 = vmatprep.subr.mxu0 0.0
    %1424 = vmatpush1.msra.mxu0 0.0
    %1425 = vmatprep.subr.mxu0 0.0
    %1426 = vmatpush1.msra.mxu0 0.0
    %1427 = vmatprep.subr.mxu0 0.0
    %1428 = vmatpush1.msra.mxu0 0.0
    %1429 = vmatprep.subr.mxu0 0.0
    %1430 = vmatpush1.msra.mxu0 0.0
    %1431 = vmatprep.subr.mxu0 0.0
    %1432 = vmatpush1.msra.mxu0 0.0
    %1433 = vmatprep.subr.mxu0 0.0
    %1434 = vmatpush1.msra.mxu0 0.0
    %1435 = vmatprep.subr.mxu0 0.0
    %1436 = vmatpush1.msra.mxu0 0.0
    %1437 = vmatprep.subr.mxu0 0.0
    %1438 = vmatpush1.msra.mxu0 0.0
    %1439 = vmatprep.mubr.f32.mxu0 0.0
    %1440 = vmatmul.mubr.f32.gmra.mrb[0].mxu0 %v1302
    %v1441 = vpop.f32.mrb[0].mxu0
    %v1442 = vadd.f32 0.0, %v1441
    %v1443 = vpop.f32.mrb[0].mxu0
    %v1444 = vadd.f32 0.0, %v1443
    %1445 = vdwg.mxu0
    %v1450 = vrot.slane %v1371, 3
    %v1451 = vrot.slane %v1373, 3
    %v1452 = vrot.slane %v1442, 3
    %v1453 = vrot.slane %v1444, 3
    %v1458 = vadd.f32 %v305, %v1450
    %v1459 = vadd.f32 %v307, %v1451
    %v1460 = vadd.f32 %v376, %v1452
    %v1461 = vadd.f32 %v378, %v1453
    %v1462 = vxor.u32 %v1458, 2147483648
    %v1463 = vmul.f32 %v1462, 1.442695
    %v1464 = vpow.pop %v1463
    %v1465 = vadd.f32 %v1464, 1.0
    %v1466 = vrcp.pop %v1465
    %v1467 = vmul.f32 1.0, %v1466
    %v1468 = vxor.u32 %v1459, 2147483648
    %v1469 = vmul.f32 %v1468, 1.442695
    %v1470 = vpow.pop %v1469
    %v1471 = vadd.f32 %v1470, 1.0
    %v1472 = vrcp.pop %v1471
    %v1473 = vmul.f32 1.0, %v1472
    %v1474 = vtanh.pop %v1460
    %v1475 = vxor.u32 %v1461, 2147483648
    %v1476 = vmul.f32 %v1475, 1.442695
    %v1477 = vpow.pop %v1476
    %v1478 = vadd.f32 %v1477, 1.0
    %v1479 = vrcp.pop %v1478
    %v1480 = vmul.f32 1.0, %v1479
    %v1482 = vrot.slane %v1298, 7
    %v1484 = vmul.f32 %v1473, %v1482
    %v1485 = vmul.f32 %v1467, %v1474
    %v1486 = vadd.f32 %v1484, %v1485
    %v1487 = vtanh.pop %v1486
    %v1488 = vmul.f32 %v1480, %v1487
    %v1490 = vrot.slane %v1488, 5
    %1492 = vmatprep.subr.mxu0 %v153
    %1493 = vmatpush1.msra.mxu0 %v152
    %1494 = vmatprep.subr.mxu0 %v157
    %1495 = vmatpush1.msra.mxu0 %v156
    %1496 = vmatprep.subr.mxu0 %v161
    %1497 = vmatpush1.msra.mxu0 %v160
    %1498 = vmatprep.subr.mxu0 %v165
    %1499 = vmatpush1.msra.mxu0 %v164
    %1500 = vmatprep.subr.mxu0 %v169
    %1501 = vmatpush1.msra.mxu0 %v168
    %1502 = vmatprep.subr.mxu0 %v173
    %1503 = vmatpush1.msra.mxu0 %v172
    %1504 = vmatprep.subr.mxu0 %v177
    %1505 = vmatpush1.msra.mxu0 %v176
    %1506 = vmatprep.subr.mxu0 %v181
    %1507 = vmatpush1.msra.mxu0 %v180
    %1508 = vmatprep.subr.mxu0 %v185
    %1509 = vmatpush1.msra.mxu0 %v184
    %1510 = vmatprep.subr.mxu0 %v189
    %1511 = vmatpush1.msra.mxu0 %v188
    %1512 = vmatprep.subr.mxu0 %v193
    %1513 = vmatpush1.msra.mxu0 %v192
    %1514 = vmatprep.subr.mxu0 %v197
    %1515 = vmatpush1.msra.mxu0 %v196
    %1516 = vmatprep.subr.mxu0 %v201
    %1517 = vmatpush1.msra.mxu0 %v200
    %1518 = vmatprep.subr.mxu0 %v205
    %1519 = vmatpush1.msra.mxu0 %v204
    %1520 = vmatprep.subr.mxu0 %v209
    %1521 = vmatpush1.msra.mxu0 %v208
    %1522 = vmatprep.subr.mxu0 %v213
    %1523 = vmatpush1.msra.mxu0 %v212
    %1524 = vmatprep.subr.mxu0 0.0
    %1525 = vmatpush1.msra.mxu0 0.0
    %1526 = vmatprep.subr.mxu0 0.0
    %1527 = vmatpush1.msra.mxu0 0.0
    %1528 = vmatprep.subr.mxu0 0.0
    %1529 = vmatpush1.msra.mxu0 0.0
    %1530 = vmatprep.subr.mxu0 0.0
    %1531 = vmatpush1.msra.mxu0 0.0
    %1532 = vmatprep.subr.mxu0 0.0
    %1533 = vmatpush1.msra.mxu0 0.0
    %1534 = vmatprep.subr.mxu0 0.0
    %1535 = vmatpush1.msra.mxu0 0.0
    %1536 = vmatprep.subr.mxu0 0.0
    %1537 = vmatpush1.msra.mxu0 0.0
    %1538 = vmatprep.subr.mxu0 0.0
    %1539 = vmatpush1.msra.mxu0 0.0
    %1540 = vmatprep.subr.mxu0 0.0
    %1541 = vmatpush1.msra.mxu0 0.0
    %1542 = vmatprep.subr.mxu0 0.0
    %1543 = vmatpush1.msra.mxu0 0.0
    %1544 = vmatprep.subr.mxu0 0.0
    %1545 = vmatpush1.msra.mxu0 0.0
    %1546 = vmatprep.subr.mxu0 0.0
    %1547 = vmatpush1.msra.mxu0 0.0
    %1548 = vmatprep.subr.mxu0 0.0
    %1549 = vmatpush1.msra.mxu0 0.0
    %1550 = vmatprep.subr.mxu0 0.0
    %1551 = vmatpush1.msra.mxu0 0.0
    %1552 = vmatprep.subr.mxu0 0.0
    %1553 = vmatpush1.msra.mxu0 0.0
    %1554 = vmatprep.subr.mxu0 0.0
    %1555 = vmatpush1.msra.mxu0 0.0
    %1556 = vmatprep.mubr.f32.mxu0 0.0
    %1557 = vmatmul.mubr.f32.gmra.mrb[0].mxu0 %v1490
    %v1558 = vpop.f32.mrb[0].mxu0
    %v1559 = vadd.f32 0.0, %v1558
    %v1560 = vpop.f32.mrb[0].mxu0
    %v1561 = vadd.f32 0.0, %v1560
    %1562 = vdwg.mxu0
    %1563 = vmatprep.subr.mxu0 %v155
    %1564 = vmatpush1.msra.mxu0 %v154
    %1565 = vmatprep.subr.mxu0 %v159
    %1566 = vmatpush1.msra.mxu0 %v158
    %1567 = vmatprep.subr.mxu0 %v163
    %1568 = vmatpush1.msra.mxu0 %v162
    %1569 = vmatprep.subr.mxu0 %v167
    %1570 = vmatpush1.msra.mxu0 %v166
    %1571 = vmatprep.subr.mxu0 %v171
    %1572 = vmatpush1.msra.mxu0 %v170
    %1573 = vmatprep.subr.mxu0 %v175
    %1574 = vmatpush1.msra.mxu0 %v174
    %1575 = vmatprep.subr.mxu0 %v179
    %1576 = vmatpush1.msra.mxu0 %v178
    %1577 = vmatprep.subr.mxu0 %v183
    %1578 = vmatpush1.msra.mxu0 %v182
    %1579 = vmatprep.subr.mxu0 %v187
    %1580 = vmatpush1.msra.mxu0 %v186
    %1581 = vmatprep.subr.mxu0 %v191
    %1582 = vmatpush1.msra.mxu0 %v190
    %1583 = vmatprep.subr.mxu0 %v195
    %1584 = vmatpush1.msra.mxu0 %v194
    %1585 = vmatprep.subr.mxu0 %v199
    %1586 = vmatpush1.msra.mxu0 %v198
    %1587 = vmatprep.subr.mxu0 %v203
    %1588 = vmatpush1.msra.mxu0 %v202
    %1589 = vmatprep.subr.mxu0 %v207
    %1590 = vmatpush1.msra.mxu0 %v206
    %1591 = vmatprep.subr.mxu0 %v211
    %1592 = vmatpush1.msra.mxu0 %v210
    %1593 = vmatprep.subr.mxu0 %v215
    %1594 = vmatpush1.msra.mxu0 %v214
    %1595 = vmatprep.subr.mxu0 0.0
    %1596 = vmatpush1.msra.mxu0 0.0
    %1597 = vmatprep.subr.mxu0 0.0
    %1598 = vmatpush1.msra.mxu0 0.0
    %1599 = vmatprep.subr.mxu0 0.0
    %1600 = vmatpush1.msra.mxu0 0.0
    %1601 = vmatprep.subr.mxu0 0.0
    %1602 = vmatpush1.msra.mxu0 0.0
    %1603 = vmatprep.subr.mxu0 0.0
    %1604 = vmatpush1.msra.mxu0 0.0
    %1605 = vmatprep.subr.mxu0 0.0
    %1606 = vmatpush1.msra.mxu0 0.0
    %1607 = vmatprep.subr.mxu0 0.0
    %1608 = vmatpush1.msra.mxu0 0.0
    %1609 = vmatprep.subr.mxu0 0.0
    %1610 = vmatpush1.msra.mxu0 0.0
    %1611 = vmatprep.subr.mxu0 0.0
    %1612 = vmatpush1.msra.mxu0 0.0
    %1613 = vmatprep.subr.mxu0 0.0
    %1614 = vmatpush1.msra.mxu0 0.0
    %1615 = vmatprep.subr.mxu0 0.0
    %1616 = vmatpush1.msra.mxu0 0.0
    %1617 = vmatprep.subr.mxu0 0.0
    %1618 = vmatpush1.msra.mxu0 0.0
    %1619 = vmatprep.subr.mxu0 0.0
    %1620 = vmatpush1.msra.mxu0 0.0
    %1621 = vmatprep.subr.mxu0 0.0
    %1622 = vmatpush1.msra.mxu0 0.0
    %1623 = vmatprep.subr.mxu0 0.0
    %1624 = vmatpush1.msra.mxu0 0.0
    %1625 = vmatprep.subr.mxu0 0.0
    %1626 = vmatpush1.msra.mxu0 0.0
    %1627 = vmatprep.mubr.f32.mxu0 0.0
    %1628 = vmatmul.mubr.f32.gmra.mrb[0].mxu0 %v1490
    %v1629 = vpop.f32.mrb[0].mxu0
    %v1630 = vadd.f32 0.0, %v1629
    %v1631 = vpop.f32.mrb[0].mxu0
    %v1632 = vadd.f32 0.0, %v1631
    %1633 = vdwg.mxu0
    %v1638 = vrot.slane %v1559, 2
    %v1639 = vrot.slane %v1561, 2
    %v1640 = vrot.slane %v1630, 2
    %v1641 = vrot.slane %v1632, 2
    %v1646 = vadd.f32 %v305, %v1638
    %v1647 = vadd.f32 %v307, %v1639
    %v1648 = vadd.f32 %v376, %v1640
    %v1649 = vadd.f32 %v378, %v1641
    %v1650 = vxor.u32 %v1646, 2147483648
    %v1651 = vmul.f32 %v1650, 1.442695
    %v1652 = vpow.pop %v1651
    %v1653 = vadd.f32 %v1652, 1.0
    %v1654 = vrcp.pop %v1653
    %v1655 = vmul.f32 1.0, %v1654
    %v1656 = vxor.u32 %v1647, 2147483648
    %v1657 = vmul.f32 %v1656, 1.442695
    %v1658 = vpow.pop %v1657
    %v1659 = vadd.f32 %v1658, 1.0
    %v1660 = vrcp.pop %v1659
    %v1661 = vmul.f32 1.0, %v1660
    %v1662 = vtanh.pop %v1648
    %v1663 = vxor.u32 %v1649, 2147483648
    %v1664 = vmul.f32 %v1663, 1.442695
    %v1665 = vpow.pop %v1664
    %v1666 = vadd.f32 %v1665, 1.0
    %v1667 = vrcp.pop %v1666
    %v1668 = vmul.f32 1.0, %v1667
    %v1670 = vrot.slane %v1486, 7
    %v1672 = vmul.f32 %v1661, %v1670
    %v1673 = vmul.f32 %v1655, %v1662
    %v1674 = vadd.f32 %v1672, %v1673
    %v1675 = vtanh.pop %v1674
    %v1676 = vmul.f32 %v1668, %v1675
    %v1678 = vrot.slane %v1676, 6
    %1680 = vmatprep.subr.mxu0 %v153
    %1681 = vmatpush1.msra.mxu0 %v152
    %1682 = vmatprep.subr.mxu0 %v157
    %1683 = vmatpush1.msra.mxu0 %v156
    %1684 = vmatprep.subr.mxu0 %v161
    %1685 = vmatpush1.msra.mxu0 %v160
    %1686 = vmatprep.subr.mxu0 %v165
    %1687 = vmatpush1.msra.mxu0 %v164
    %1688 = vmatprep.subr.mxu0 %v169
    %1689 = vmatpush1.msra.mxu0 %v168
    %1690 = vmatprep.subr.mxu0 %v173
    %1691 = vmatpush1.msra.mxu0 %v172
    %1692 = vmatprep.subr.mxu0 %v177
    %1693 = vmatpush1.msra.mxu0 %v176
    %1694 = vmatprep.subr.mxu0 %v181
    %1695 = vmatpush1.msra.mxu0 %v180
    %1696 = vmatprep.subr.mxu0 %v185
    %1697 = vmatpush1.msra.mxu0 %v184
    %1698 = vmatprep.subr.mxu0 %v189
    %1699 = vmatpush1.msra.mxu0 %v188
    %1700 = vmatprep.subr.mxu0 %v193
    %1701 = vmatpush1.msra.mxu0 %v192
    %1702 = vmatprep.subr.mxu0 %v197
    %1703 = vmatpush1.msra.mxu0 %v196
    %1704 = vmatprep.subr.mxu0 %v201
    %1705 = vmatpush1.msra.mxu0 %v200
    %1706 = vmatprep.subr.mxu0 %v205
    %1707 = vmatpush1.msra.mxu0 %v204
    %1708 = vmatprep.subr.mxu0 %v209
    %1709 = vmatpush1.msra.mxu0 %v208
    %1710 = vmatprep.subr.mxu0 %v213
    %1711 = vmatpush1.msra.mxu0 %v212
    %1712 = vmatprep.subr.mxu0 0.0
    %1713 = vmatpush1.msra.mxu0 0.0
    %1714 = vmatprep.subr.mxu0 0.0
    %1715 = vmatpush1.msra.mxu0 0.0
    %1716 = vmatprep.subr.mxu0 0.0
    %1717 = vmatpush1.msra.mxu0 0.0
    %1718 = vmatprep.subr.mxu0 0.0
    %1719 = vmatpush1.msra.mxu0 0.0
    %1720 = vmatprep.subr.mxu0 0.0
    %1721 = vmatpush1.msra.mxu0 0.0
    %1722 = vmatprep.subr.mxu0 0.0
    %1723 = vmatpush1.msra.mxu0 0.0
    %1724 = vmatprep.subr.mxu0 0.0
    %1725 = vmatpush1.msra.mxu0 0.0
    %1726 = vmatprep.subr.mxu0 0.0
    %1727 = vmatpush1.msra.mxu0 0.0
    %1728 = vmatprep.subr.mxu0 0.0
    %1729 = vmatpush1.msra.mxu0 0.0
    %1730 = vmatprep.subr.mxu0 0.0
    %1731 = vmatpush1.msra.mxu0 0.0
    %1732 = vmatprep.subr.mxu0 0.0
    %1733 = vmatpush1.msra.mxu0 0.0
    %1734 = vmatprep.subr.mxu0 0.0
    %1735 = vmatpush1.msra.mxu0 0.0
    %1736 = vmatprep.subr.mxu0 0.0
    %1737 = vmatpush1.msra.mxu0 0.0
    %1738 = vmatprep.subr.mxu0 0.0
    %1739 = vmatpush1.msra.mxu0 0.0
    %1740 = vmatprep.subr.mxu0 0.0
    %1741 = vmatpush1.msra.mxu0 0.0
    %1742 = vmatprep.subr.mxu0 0.0
    %1743 = vmatpush1.msra.mxu0 0.0
    %1744 = vmatprep.mubr.f32.mxu0 0.0
    %1745 = vmatmul.mubr.f32.gmra.mrb[0].mxu0 %v1678
    %v1746 = vpop.f32.mrb[0].mxu0
    %v1747 = vadd.f32 0.0, %v1746
    %v1748 = vpop.f32.mrb[0].mxu0
    %v1749 = vadd.f32 0.0, %v1748
    %1750 = vdwg.mxu0
    %1751 = vmatprep.subr.mxu0 %v155
    %1752 = vmatpush1.msra.mxu0 %v154
    %1753 = vmatprep.subr.mxu0 %v159
    %1754 = vmatpush1.msra.mxu0 %v158
    %1755 = vmatprep.subr.mxu0 %v163
    %1756 = vmatpush1.msra.mxu0 %v162
    %1757 = vmatprep.subr.mxu0 %v167
    %1758 = vmatpush1.msra.mxu0 %v166
    %1759 = vmatprep.subr.mxu0 %v171
    %1760 = vmatpush1.msra.mxu0 %v170
    %1761 = vmatprep.subr.mxu0 %v175
    %1762 = vmatpush1.msra.mxu0 %v174
    %1763 = vmatprep.subr.mxu0 %v179
    %1764 = vmatpush1.msra.mxu0 %v178
    %1765 = vmatprep.subr.mxu0 %v183
    %1766 = vmatpush1.msra.mxu0 %v182
    %1767 = vmatprep.subr.mxu0 %v187
    %1768 = vmatpush1.msra.mxu0 %v186
    %1769 = vmatprep.subr.mxu0 %v191
    %1770 = vmatpush1.msra.mxu0 %v190
    %1771 = vmatprep.subr.mxu0 %v195
    %1772 = vmatpush1.msra.mxu0 %v194
    %1773 = vmatprep.subr.mxu0 %v199
    %1774 = vmatpush1.msra.mxu0 %v198
    %1775 = vmatprep.subr.mxu0 %v203
    %1776 = vmatpush1.msra.mxu0 %v202
    %1777 = vmatprep.subr.mxu0 %v207
    %1778 = vmatpush1.msra.mxu0 %v206
    %1779 = vmatprep.subr.mxu0 %v211
    %1780 = vmatpush1.msra.mxu0 %v210
    %1781 = vmatprep.subr.mxu0 %v215
    %1782 = vmatpush1.msra.mxu0 %v214
    %1783 = vmatprep.subr.mxu0 0.0
    %1784 = vmatpush1.msra.mxu0 0.0
    %1785 = vmatprep.subr.mxu0 0.0
    %1786 = vmatpush1.msra.mxu0 0.0
    %1787 = vmatprep.subr.mxu0 0.0
    %1788 = vmatpush1.msra.mxu0 0.0
    %1789 = vmatprep.subr.mxu0 0.0
    %1790 = vmatpush1.msra.mxu0 0.0
    %1791 = vmatprep.subr.mxu0 0.0
    %1792 = vmatpush1.msra.mxu0 0.0
    %1793 = vmatprep.subr.mxu0 0.0
    %1794 = vmatpush1.msra.mxu0 0.0
    %1795 = vmatprep.subr.mxu0 0.0
    %1796 = vmatpush1.msra.mxu0 0.0
    %1797 = vmatprep.subr.mxu0 0.0
    %1798 = vmatpush1.msra.mxu0 0.0
    %1799 = vmatprep.subr.mxu0 0.0
    %1800 = vmatpush1.msra.mxu0 0.0
    %1801 = vmatprep.subr.mxu0 0.0
    %1802 = vmatpush1.msra.mxu0 0.0
    %1803 = vmatprep.subr.mxu0 0.0
    %1804 = vmatpush1.msra.mxu0 0.0
    %1805 = vmatprep.subr.mxu0 0.0
    %1806 = vmatpush1.msra.mxu0 0.0
    %1807 = vmatprep.subr.mxu0 0.0
    %1808 = vmatpush1.msra.mxu0 0.0
    %1809 = vmatprep.subr.mxu0 0.0
    %1810 = vmatpush1.msra.mxu0 0.0
    %1811 = vmatprep.subr.mxu0 0.0
    %1812 = vmatpush1.msra.mxu0 0.0
    %1813 = vmatprep.subr.mxu0 0.0
    %1814 = vmatpush1.msra.mxu0 0.0
    %1815 = vmatprep.mubr.f32.mxu0 0.0
    %1816 = vmatmul.mubr.f32.gmra.mrb[0].mxu0 %v1678
    %v1817 = vpop.f32.mrb[0].mxu0
    %v1818 = vadd.f32 0.0, %v1817
    %v1819 = vpop.f32.mrb[0].mxu0
    %v1820 = vadd.f32 0.0, %v1819
    %1821 = vdwg.mxu0
    %v1826 = vrot.slane %v1747, 1
    %v1827 = vrot.slane %v1749, 1
    %v1828 = vrot.slane %v1818, 1
    %v1829 = vrot.slane %v1820, 1
    %v1834 = vadd.f32 %v305, %v1826
    %v1835 = vadd.f32 %v307, %v1827
    %v1836 = vadd.f32 %v376, %v1828
    %v1837 = vadd.f32 %v378, %v1829
    %v1838 = vxor.u32 %v1834, 2147483648
    %v1839 = vmul.f32 %v1838, 1.442695
    %v1840 = vpow.pop %v1839
    %v1841 = vadd.f32 %v1840, 1.0
    %v1842 = vrcp.pop %v1841
    %v1843 = vmul.f32 1.0, %v1842
    %v1844 = vxor.u32 %v1835, 2147483648
    %v1845 = vmul.f32 %v1844, 1.442695
    %v1846 = vpow.pop %v1845
    %v1847 = vadd.f32 %v1846, 1.0
    %v1848 = vrcp.pop %v1847
    %v1849 = vmul.f32 1.0, %v1848
    %v1850 = vtanh.pop %v1836
    %v1851 = vxor.u32 %v1837, 2147483648
    %v1852 = vmul.f32 %v1851, 1.442695
    %v1853 = vpow.pop %v1852
    %v1854 = vadd.f32 %v1853, 1.0
    %v1855 = vrcp.pop %v1854
    %v1856 = vmul.f32 1.0, %v1855
    %v1858 = vrot.slane %v1674, 7
    %v1860 = vmul.f32 %v1849, %v1858
    %v1861 = vmul.f32 %v1843, %v1850
    %v1862 = vadd.f32 %v1860, %v1861
    %v1863 = vtanh.pop %v1862
    %v1864 = vmul.f32 %v1856, %v1863
    %1865 = vst [vmem:[#allocation11 - $0x7] sm:$0x80] %v1864
    %1866 = vst [vmem:[#allocation13 - $0x7] sm:$0x80] %v1862
    %vm1867 = vcmask 1040384
    %v1868 = vsel %vm1867, %v551, %v736
    %vm1869 = vcmask 1041408
    %v1870 = vsel %vm1869, %v1868, %v924
    %vm1871 = vcmask 1042432
    %v1872 = vsel %vm1871, %v1870, %v1112
    %vm1873 = vcmask 1043456
    %v1874 = vsel %vm1873, %v1872, %v1300
    %vm1875 = vcmask 1044480
    %v1876 = vsel %vm1875, %v1874, %v1488
    %vm1877 = vcmask 1045504
    %v1878 = vsel %vm1877, %v1876, %v1676
    %vm1879 = vcmask 1046528
    %v1880 = vsel %vm1879, %v1878, %v1864
    %s1881 = scalar_lea.vmem [#allocation5], 512
    %v1882 = vld [vmem:[%s1881] sm:$0xff]
    %v1883 = vld [vmem:[%s1881 + $0x8] sm:$0xff]
    %v1884 = vld [vmem:[%s1881 + $0x10] sm:$0xff]
    %v1885 = vld [vmem:[%s1881 + $0x18] sm:$0xff]
    %v1886 = vld [vmem:[%s1881 + $0x20] sm:$0xff]
    %v1887 = vld [vmem:[%s1881 + $0x28] sm:$0xff]
    %v1888 = vld [vmem:[%s1881 + $0x30] sm:$0xff]
    %v1889 = vld [vmem:[%s1881 + $0x38] sm:$0xff]
    %v1890 = vld [vmem:[%s1881 + $0x40] sm:$0xff]
    %v1891 = vld [vmem:[%s1881 + $0x48] sm:$0xff]
    %v1892 = vld [vmem:[%s1881 + $0x50] sm:$0xff]
    %v1893 = vld [vmem:[%s1881 + $0x58] sm:$0xff]
    %v1894 = vld [vmem:[%s1881 + $0x60] sm:$0xff]
    %v1895 = vld [vmem:[%s1881 + $0x68] sm:$0xff]
    %v1896 = vld [vmem:[%s1881 + $0x70] sm:$0xff]
    %v1897 = vld [vmem:[%s1881 + $0x78] sm:$0xff]
    %v1898 = vld [vmem:[%s1881 + $0x80] sm:$0xff]
    %v1899 = vld [vmem:[%s1881 + $0x88] sm:$0xff]
    %v1900 = vld [vmem:[%s1881 + $0x90] sm:$0xff]
    %v1901 = vld [vmem:[%s1881 + $0x98] sm:$0xff]
    %v1902 = vld [vmem:[%s1881 + $0xa0] sm:$0xff]
    %v1903 = vld [vmem:[%s1881 + $0xa8] sm:$0xff]
    %v1904 = vld [vmem:[%s1881 + $0xb0] sm:$0xff]
    %v1905 = vld [vmem:[%s1881 + $0xb8] sm:$0xff]
    %v1906 = vld [vmem:[%s1881 + $0xc0] sm:$0xff]
    %v1907 = vld [vmem:[%s1881 + $0xc8] sm:$0xff]
    %v1908 = vld [vmem:[%s1881 + $0xd0] sm:$0xff]
    %v1909 = vld [vmem:[%s1881 + $0xd8] sm:$0xff]
    %v1910 = vld [vmem:[%s1881 + $0xe0] sm:$0xff]
    %v1911 = vld [vmem:[%s1881 + $0xe8] sm:$0xff]
    %v1912 = vld [vmem:[%s1881 + $0xf0] sm:$0xff]
    %v1913 = vld [vmem:[%s1881 + $0xf8] sm:$0xff]
    %v1914 = vld [vmem:[%s1881 + $0x100] sm:$0xff]
    %v1915 = vld [vmem:[%s1881 + $0x108] sm:$0xff]
    %v1916 = vld [vmem:[%s1881 + $0x110] sm:$0xff]
    %v1917 = vld [vmem:[%s1881 + $0x118] sm:$0xff]
    %v1918 = vld [vmem:[%s1881 + $0x120] sm:$0xff]
    %v1919 = vld [vmem:[%s1881 + $0x128] sm:$0xff]
    %v1920 = vld [vmem:[%s1881 + $0x130] sm:$0xff]
    %v1921 = vld [vmem:[%s1881 + $0x138] sm:$0xff]
    %v1922 = vld [vmem:[%s1881 + $0x140] sm:$0xff]
    %v1923 = vld [vmem:[%s1881 + $0x148] sm:$0xff]
    %v1924 = vld [vmem:[%s1881 + $0x150] sm:$0xff]
    %v1925 = vld [vmem:[%s1881 + $0x158] sm:$0xff]
    %v1926 = vld [vmem:[%s1881 + $0x160] sm:$0xff]
    %v1927 = vld [vmem:[%s1881 + $0x168] sm:$0xff]
    %v1928 = vld [vmem:[%s1881 + $0x170] sm:$0xff]
    %v1929 = vld [vmem:[%s1881 + $0x178] sm:$0xff]
    %v1930 = vld [vmem:[%s1881 + $0x180] sm:$0xff]
    %v1931 = vld [vmem:[%s1881 + $0x188] sm:$0xff]
    %v1932 = vld [vmem:[%s1881 + $0x190] sm:$0xff]
    %v1933 = vld [vmem:[%s1881 + $0x198] sm:$0xff]
    %v1934 = vld [vmem:[%s1881 + $0x1a0] sm:$0xff]
    %v1935 = vld [vmem:[%s1881 + $0x1a8] sm:$0xff]
    %v1936 = vld [vmem:[%s1881 + $0x1b0] sm:$0xff]
    %v1937 = vld [vmem:[%s1881 + $0x1b8] sm:$0xff]
    %v1938 = vld [vmem:[%s1881 + $0x1c0] sm:$0xff]
    %v1939 = vld [vmem:[%s1881 + $0x1c8] sm:$0xff]
    %v1940 = vld [vmem:[%s1881 + $0x1d0] sm:$0xff]
    %v1941 = vld [vmem:[%s1881 + $0x1d8] sm:$0xff]
    %v1942 = vld [vmem:[%s1881 + $0x1e0] sm:$0xff]
    %v1943 = vld [vmem:[%s1881 + $0x1e8] sm:$0xff]
    %v1944 = vld [vmem:[%s1881 + $0x1f0] sm:$0xff]
    %v1945 = vld [vmem:[%s1881 + $0x1f8] sm:$0xff]
    %s1946 = scalar_lea.vmem [#allocation7], 512
    %v1947 = vld [vmem:[%s1946] sm:$0xff]
    %v1948 = vld [vmem:[%s1946 + $0x8] sm:$0xff]
    %v1949 = vld [vmem:[%s1946 + $0x10] sm:$0xff]
    %v1950 = vld [vmem:[%s1946 + $0x18] sm:$0xff]
    %v1951 = vld [vmem:[%s1946 + $0x20] sm:$0xff]
    %v1952 = vld [vmem:[%s1946 + $0x28] sm:$0xff]
    %v1953 = vld [vmem:[%s1946 + $0x30] sm:$0xff]
    %v1954 = vld [vmem:[%s1946 + $0x38] sm:$0xff]
    %v1955 = vld [vmem:[%s1946 + $0x40] sm:$0xff]
    %v1956 = vld [vmem:[%s1946 + $0x48] sm:$0xff]
    %v1957 = vld [vmem:[%s1946 + $0x50] sm:$0xff]
    %v1958 = vld [vmem:[%s1946 + $0x58] sm:$0xff]
    %v1959 = vld [vmem:[%s1946 + $0x60] sm:$0xff]
    %v1960 = vld [vmem:[%s1946 + $0x68] sm:$0xff]
    %v1961 = vld [vmem:[%s1946 + $0x70] sm:$0xff]
    %v1962 = vld [vmem:[%s1946 + $0x78] sm:$0xff]
    %v1963 = vld [vmem:[%s1946 + $0x80] sm:$0xff]
    %v1964 = vld [vmem:[%s1946 + $0x88] sm:$0xff]
    %v1965 = vld [vmem:[%s1946 + $0x90] sm:$0xff]
    %v1966 = vld [vmem:[%s1946 + $0x98] sm:$0xff]
    %v1967 = vld [vmem:[%s1946 + $0xa0] sm:$0xff]
    %v1968 = vld [vmem:[%s1946 + $0xa8] sm:$0xff]
    %v1969 = vld [vmem:[%s1946 + $0xb0] sm:$0xff]
    %v1970 = vld [vmem:[%s1946 + $0xb8] sm:$0xff]
    %v1971 = vld [vmem:[%s1946 + $0xc0] sm:$0xff]
    %v1972 = vld [vmem:[%s1946 + $0xc8] sm:$0xff]
    %v1973 = vld [vmem:[%s1946 + $0xd0] sm:$0xff]
    %v1974 = vld [vmem:[%s1946 + $0xd8] sm:$0xff]
    %v1975 = vld [vmem:[%s1946 + $0xe0] sm:$0xff]
    %v1976 = vld [vmem:[%s1946 + $0xe8] sm:$0xff]
    %v1977 = vld [vmem:[%s1946 + $0xf0] sm:$0xff]
    %v1978 = vld [vmem:[%s1946 + $0xf8] sm:$0xff]
    %v1979 = vld [vmem:[%s1946 + $0x100] sm:$0xff]
    %v1980 = vld [vmem:[%s1946 + $0x108] sm:$0xff]
    %v1981 = vld [vmem:[%s1946 + $0x110] sm:$0xff]
    %v1982 = vld [vmem:[%s1946 + $0x118] sm:$0xff]
    %v1983 = vld [vmem:[%s1946 + $0x120] sm:$0xff]
    %v1984 = vld [vmem:[%s1946 + $0x128] sm:$0xff]
    %v1985 = vld [vmem:[%s1946 + $0x130] sm:$0xff]
    %v1986 = vld [vmem:[%s1946 + $0x138] sm:$0xff]
    %v1987 = vld [vmem:[%s1946 + $0x140] sm:$0xff]
    %v1988 = vld [vmem:[%s1946 + $0x148] sm:$0xff]
    %v1989 = vld [vmem:[%s1946 + $0x150] sm:$0xff]
    %v1990 = vld [vmem:[%s1946 + $0x158] sm:$0xff]
    %v1991 = vld [vmem:[%s1946 + $0x160] sm:$0xff]
    %v1992 = vld [vmem:[%s1946 + $0x168] sm:$0xff]
    %v1993 = vld [vmem:[%s1946 + $0x170] sm:$0xff]
    %v1994 = vld [vmem:[%s1946 + $0x178] sm:$0xff]
    %v1995 = vld [vmem:[%s1946 + $0x180] sm:$0xff]
    %v1996 = vld [vmem:[%s1946 + $0x188] sm:$0xff]
    %v1997 = vld [vmem:[%s1946 + $0x190] sm:$0xff]
    %v1998 = vld [vmem:[%s1946 + $0x198] sm:$0xff]
    %v1999 = vld [vmem:[%s1946 + $0x1a0] sm:$0xff]
    %v2000 = vld [vmem:[%s1946 + $0x1a8] sm:$0xff]
    %v2001 = vld [vmem:[%s1946 + $0x1b0] sm:$0xff]
    %v2002 = vld [vmem:[%s1946 + $0x1b8] sm:$0xff]
    %v2003 = vld [vmem:[%s1946 + $0x1c0] sm:$0xff]
    %v2004 = vld [vmem:[%s1946 + $0x1c8] sm:$0xff]
    %v2005 = vld [vmem:[%s1946 + $0x1d0] sm:$0xff]
    %v2006 = vld [vmem:[%s1946 + $0x1d8] sm:$0xff]
    %v2007 = vld [vmem:[%s1946 + $0x1e0] sm:$0xff]
    %v2008 = vld [vmem:[%s1946 + $0x1e8] sm:$0xff]
    %v2009 = vld [vmem:[%s1946 + $0x1f0] sm:$0xff]
    %v2010 = vld [vmem:[%s1946 + $0x1f8] sm:$0xff]
    %s2011 = scalar_lea.vmem %s3, 1
    %v2012 = vld [vmem:[%s2011] ss:$2 sm:$0xf]
    %v2014 = vlaneseq
    %v2015 = vshrl.u32 %v2014, 7
    %v2016 = vsub.s32 0, %v2015
    %v2017 = vrot.slane %v2012, %v2016
    %v2018 = vlaneseq
    %v2019 = vshrl.u32 %v2018, 7
    %v2020 = vsub.s32 1, %v2019
    %v2021 = vrot.slane %v2012, %v2020
    %v2022 = vlaneseq
    %v2023 = vshrl.u32 %v2022, 7
    %v2024 = vsub.s32 2, %v2023
    %v2025 = vrot.slane %v2012, %v2024
    %v2026 = vlaneseq
    %v2027 = vshrl.u32 %v2026, 7
    %v2028 = vsub.s32 3, %v2027
    %v2029 = vrot.slane %v2012, %v2028
    %2034 = vmatprep.subr.mxu0 %v1883
    %2035 = vmatpush1.msra.mxu0 %v1882
    %2036 = vmatprep.subr.mxu0 %v1887
    %2037 = vmatpush1.msra.mxu0 %v1886
    %2038 = vmatprep.subr.mxu0 %v1891
    %2039 = vmatpush1.msra.mxu0 %v1890
    %2040 = vmatprep.subr.mxu0 %v1895
    %2041 = vmatpush1.msra.mxu0 %v1894
    %2042 = vmatprep.subr.mxu0 %v1899
    %2043 = vmatpush1.msra.mxu0 %v1898
    %2044 = vmatprep.subr.mxu0 %v1903
    %2045 = vmatpush1.msra.mxu0 %v1902
    %2046 = vmatprep.subr.mxu0 %v1907
    %2047 = vmatpush1.msra.mxu0 %v1906
    %2048 = vmatprep.subr.mxu0 %v1911
    %2049 = vmatpush1.msra.mxu0 %v1910
    %2050 = vmatprep.subr.mxu0 %v1915
    %2051 = vmatpush1.msra.mxu0 %v1914
    %2052 = vmatprep.subr.mxu0 %v1919
    %2053 = vmatpush1.msra.mxu0 %v1918
    %2054 = vmatprep.subr.mxu0 %v1923
    %2055 = vmatpush1.msra.mxu0 %v1922
    %2056 = vmatprep.subr.mxu0 %v1927
    %2057 = vmatpush1.msra.mxu0 %v1926
    %2058 = vmatprep.subr.mxu0 %v1931
    %2059 = vmatpush1.msra.mxu0 %v1930
    %2060 = vmatprep.subr.mxu0 %v1935
    %2061 = vmatpush1.msra.mxu0 %v1934
    %2062 = vmatprep.subr.mxu0 %v1939
    %2063 = vmatpush1.msra.mxu0 %v1938
    %2064 = vmatprep.subr.mxu0 %v1943
    %2065 = vmatpush1.msra.mxu0 %v1942
    %2066 = vmatprep.subr.mxu0 0.0
    %2067 = vmatpush1.msra.mxu0 0.0
    %2068 = vmatprep.subr.mxu0 0.0
    %2069 = vmatpush1.msra.mxu0 0.0
    %2070 = vmatprep.subr.mxu0 0.0
    %2071 = vmatpush1.msra.mxu0 0.0
    %2072 = vmatprep.subr.mxu0 0.0
    %2073 = vmatpush1.msra.mxu0 0.0
    %2074 = vmatprep.subr.mxu0 0.0
    %2075 = vmatpush1.msra.mxu0 0.0
    %2076 = vmatprep.subr.mxu0 0.0
    %2077 = vmatpush1.msra.mxu0 0.0
    %2078 = vmatprep.subr.mxu0 0.0
    %2079 = vmatpush1.msra.mxu0 0.0
    %2080 = vmatprep.subr.mxu0 0.0
    %2081 = vmatpush1.msra.mxu0 0.0
    %2082 = vmatprep.subr.mxu0 0.0
    %2083 = vmatpush1.msra.mxu0 0.0
    %2084 = vmatprep.subr.mxu0 0.0
    %2085 = vmatpush1.msra.mxu0 0.0
    %2086 = vmatprep.subr.mxu0 0.0
    %2087 = vmatpush1.msra.mxu0 0.0
    %2088 = vmatprep.subr.mxu0 0.0
    %2089 = vmatpush1.msra.mxu0 0.0
    %2090 = vmatprep.subr.mxu0 0.0
    %2091 = vmatpush1.msra.mxu0 0.0
    %2092 = vmatprep.subr.mxu0 0.0
    %2093 = vmatpush1.msra.mxu0 0.0
    %2094 = vmatprep.subr.mxu0 0.0
    %2095 = vmatpush1.msra.mxu0 0.0
    %2096 = vmatprep.subr.mxu0 0.0
    %2097 = vmatpush1.msra.mxu0 0.0
    %2098 = vmatprep.mubr.f32.mxu0 0.0
    %2099 = vmatmul.mubr.f32.gmra.mrb[0].mxu0 %v1880
    %v2100 = vpop.f32.mrb[0].mxu0
    %v2101 = vadd.f32 %v2017, %v2100
    %v2102 = vpop.f32.mrb[0].mxu0
    %v2103 = vadd.f32 %v2021, %v2102
    %2104 = vdwg.mxu0
    %2105 = vmatprep.subr.mxu0 %v1885
    %2106 = vmatpush1.msra.mxu0 %v1884
    %2107 = vmatprep.subr.mxu0 %v1889
    %2108 = vmatpush1.msra.mxu0 %v1888
    %2109 = vmatprep.subr.mxu0 %v1893
    %2110 = vmatpush1.msra.mxu0 %v1892
    %2111 = vmatprep.subr.mxu0 %v1897
    %2112 = vmatpush1.msra.mxu0 %v1896
    %2113 = vmatprep.subr.mxu0 %v1901
    %2114 = vmatpush1.msra.mxu0 %v1900
    %2115 = vmatprep.subr.mxu0 %v1905
    %2116 = vmatpush1.msra.mxu0 %v1904
    %2117 = vmatprep.subr.mxu0 %v1909
    %2118 = vmatpush1.msra.mxu0 %v1908
    %2119 = vmatprep.subr.mxu0 %v1913
    %2120 = vmatpush1.msra.mxu0 %v1912
    %2121 = vmatprep.subr.mxu0 %v1917
    %2122 = vmatpush1.msra.mxu0 %v1916
    %2123 = vmatprep.subr.mxu0 %v1921
    %2124 = vmatpush1.msra.mxu0 %v1920
    %2125 = vmatprep.subr.mxu0 %v1925
    %2126 = vmatpush1.msra.mxu0 %v1924
    %2127 = vmatprep.subr.mxu0 %v1929
    %2128 = vmatpush1.msra.mxu0 %v1928
    %2129 = vmatprep.subr.mxu0 %v1933
    %2130 = vmatpush1.msra.mxu0 %v1932
    %2131 = vmatprep.subr.mxu0 %v1937
    %2132 = vmatpush1.msra.mxu0 %v1936
    %2133 = vmatprep.subr.mxu0 %v1941
    %2134 = vmatpush1.msra.mxu0 %v1940
    %2135 = vmatprep.subr.mxu0 %v1945
    %2136 = vmatpush1.msra.mxu0 %v1944
    %2137 = vmatprep.subr.mxu0 0.0
    %2138 = vmatpush1.msra.mxu0 0.0
    %2139 = vmatprep.subr.mxu0 0.0
    %2140 = vmatpush1.msra.mxu0 0.0
    %2141 = vmatprep.subr.mxu0 0.0
    %2142 = vmatpush1.msra.mxu0 0.0
    %2143 = vmatprep.subr.mxu0 0.0
    %2144 = vmatpush1.msra.mxu0 0.0
    %2145 = vmatprep.subr.mxu0 0.0
    %2146 = vmatpush1.msra.mxu0 0.0
    %2147 = vmatprep.subr.mxu0 0.0
    %2148 = vmatpush1.msra.mxu0 0.0
    %2149 = vmatprep.subr.mxu0 0.0
    %2150 = vmatpush1.msra.mxu0 0.0
    %2151 = vmatprep.subr.mxu0 0.0
    %2152 = vmatpush1.msra.mxu0 0.0
    %2153 = vmatprep.subr.mxu0 0.0
    %2154 = vmatpush1.msra.mxu0 0.0
    %2155 = vmatprep.subr.mxu0 0.0
    %2156 = vmatpush1.msra.mxu0 0.0
    %2157 = vmatprep.subr.mxu0 0.0
    %2158 = vmatpush1.msra.mxu0 0.0
    %2159 = vmatprep.subr.mxu0 0.0
    %2160 = vmatpush1.msra.mxu0 0.0
    %2161 = vmatprep.subr.mxu0 0.0
    %2162 = vmatpush1.msra.mxu0 0.0
    %2163 = vmatprep.subr.mxu0 0.0
    %2164 = vmatpush1.msra.mxu0 0.0
    %2165 = vmatprep.subr.mxu0 0.0
    %2166 = vmatpush1.msra.mxu0 0.0
    %2167 = vmatprep.subr.mxu0 0.0
    %2168 = vmatpush1.msra.mxu0 0.0
    %2169 = vmatprep.mubr.f32.mxu0 0.0
    %2170 = vmatmul.mubr.f32.gmra.mrb[0].mxu0 %v1880
    %v2171 = vpop.f32.mrb[0].mxu0
    %v2172 = vadd.f32 %v2025, %v2171
    %v2173 = vpop.f32.mrb[0].mxu0
    %v2174 = vadd.f32 %v2029, %v2173
    %2175 = vdwg.mxu0
    %v2176 = vld [vmem:[%s4 + $0x1] sm:$0x1]
    %v2177 = vld [vmem:[%s5 + $0x1] sm:$0x1]
    %2178 = vmatprep.subr.mxu0 %v1948
    %2179 = vmatpush1.msra.mxu0 %v1947
    %2180 = vmatprep.subr.mxu0 %v1952
    %2181 = vmatpush1.msra.mxu0 %v1951
    %2182 = vmatprep.subr.mxu0 %v1956
    %2183 = vmatpush1.msra.mxu0 %v1955
    %2184 = vmatprep.subr.mxu0 %v1960
    %2185 = vmatpush1.msra.mxu0 %v1959
    %2186 = vmatprep.subr.mxu0 %v1964
    %2187 = vmatpush1.msra.mxu0 %v1963
    %2188 = vmatprep.subr.mxu0 %v1968
    %2189 = vmatpush1.msra.mxu0 %v1967
    %2190 = vmatprep.subr.mxu0 %v1972
    %2191 = vmatpush1.msra.mxu0 %v1971
    %2192 = vmatprep.subr.mxu0 %v1976
    %2193 = vmatpush1.msra.mxu0 %v1975
    %2194 = vmatprep.subr.mxu0 %v1980
    %2195 = vmatpush1.msra.mxu0 %v1979
    %2196 = vmatprep.subr.mxu0 %v1984
    %2197 = vmatpush1.msra.mxu0 %v1983
    %2198 = vmatprep.subr.mxu0 %v1988
    %2199 = vmatpush1.msra.mxu0 %v1987
    %2200 = vmatprep.subr.mxu0 %v1992
    %2201 = vmatpush1.msra.mxu0 %v1991
    %2202 = vmatprep.subr.mxu0 %v1996
    %2203 = vmatpush1.msra.mxu0 %v1995
    %2204 = vmatprep.subr.mxu0 %v2000
    %2205 = vmatpush1.msra.mxu0 %v1999
    %2206 = vmatprep.subr.mxu0 %v2004
    %2207 = vmatpush1.msra.mxu0 %v2003
    %2208 = vmatprep.subr.mxu0 %v2008
    %2209 = vmatpush1.msra.mxu0 %v2007
    %2210 = vmatprep.subr.mxu0 0.0
    %2211 = vmatpush1.msra.mxu0 0.0
    %2212 = vmatprep.subr.mxu0 0.0
    %2213 = vmatpush1.msra.mxu0 0.0
    %2214 = vmatprep.subr.mxu0 0.0
    %2215 = vmatpush1.msra.mxu0 0.0
    %2216 = vmatprep.subr.mxu0 0.0
    %2217 = vmatpush1.msra.mxu0 0.0
    %2218 = vmatprep.subr.mxu0 0.0
    %2219 = vmatpush1.msra.mxu0 0.0
    %2220 = vmatprep.subr.mxu0 0.0
    %2221 = vmatpush1.msra.mxu0 0.0
    %2222 = vmatprep.subr.mxu0 0.0
    %2223 = vmatpush1.msra.mxu0 0.0
    %2224 = vmatprep.subr.mxu0 0.0
    %2225 = vmatpush1.msra.mxu0 0.0
    %2226 = vmatprep.subr.mxu0 0.0
    %2227 = vmatpush1.msra.mxu0 0.0
    %2228 = vmatprep.subr.mxu0 0.0
    %2229 = vmatpush1.msra.mxu0 0.0
    %2230 = vmatprep.subr.mxu0 0.0
    %2231 = vmatpush1.msra.mxu0 0.0
    %2232 = vmatprep.subr.mxu0 0.0
    %2233 = vmatpush1.msra.mxu0 0.0
    %2234 = vmatprep.subr.mxu0 0.0
    %2235 = vmatpush1.msra.mxu0 0.0
    %2236 = vmatprep.subr.mxu0 0.0
    %2237 = vmatpush1.msra.mxu0 0.0
    %2238 = vmatprep.subr.mxu0 0.0
    %2239 = vmatpush1.msra.mxu0 0.0
    %2240 = vmatprep.subr.mxu0 0.0
    %2241 = vmatpush1.msra.mxu0 0.0
    %2242 = vmatprep.mubr.f32.mxu0 0.0
    %2243 = vmatmul.mubr.f32.gmra.mrb[0].mxu0 %v2176
    %v2244 = vpop.f32.mrb[0].mxu0
    %v2245 = vadd.f32 0.0, %v2244
    %v2246 = vpop.f32.mrb[0].mxu0
    %v2247 = vadd.f32 0.0, %v2246
    %2248 = vdwg.mxu0
    %2249 = vmatprep.subr.mxu0 %v1950
    %2250 = vmatpush1.msra.mxu0 %v1949
    %2251 = vmatprep.subr.mxu0 %v1954
    %2252 = vmatpush1.msra.mxu0 %v1953
    %2253 = vmatprep.subr.mxu0 %v1958
    %2254 = vmatpush1.msra.mxu0 %v1957
    %2255 = vmatprep.subr.mxu0 %v1962
    %2256 = vmatpush1.msra.mxu0 %v1961
    %2257 = vmatprep.subr.mxu0 %v1966
    %2258 = vmatpush1.msra.mxu0 %v1965
    %2259 = vmatprep.subr.mxu0 %v1970
    %2260 = vmatpush1.msra.mxu0 %v1969
    %2261 = vmatprep.subr.mxu0 %v1974
    %2262 = vmatpush1.msra.mxu0 %v1973
    %2263 = vmatprep.subr.mxu0 %v1978
    %2264 = vmatpush1.msra.mxu0 %v1977
    %2265 = vmatprep.subr.mxu0 %v1982
    %2266 = vmatpush1.msra.mxu0 %v1981
    %2267 = vmatprep.subr.mxu0 %v1986
    %2268 = vmatpush1.msra.mxu0 %v1985
    %2269 = vmatprep.subr.mxu0 %v1990
    %2270 = vmatpush1.msra.mxu0 %v1989
    %2271 = vmatprep.subr.mxu0 %v1994
    %2272 = vmatpush1.msra.mxu0 %v1993
    %2273 = vmatprep.subr.mxu0 %v1998
    %2274 = vmatpush1.msra.mxu0 %v1997
    %2275 = vmatprep.subr.mxu0 %v2002
    %2276 = vmatpush1.msra.mxu0 %v2001
    %2277 = vmatprep.subr.mxu0 %v2006
    %2278 = vmatpush1.msra.mxu0 %v2005
    %2279 = vmatprep.subr.mxu0 %v2010
    %2280 = vmatpush1.msra.mxu0 %v2009
    %2281 = vmatprep.subr.mxu0 0.0
    %2282 = vmatpush1.msra.mxu0 0.0
    %2283 = vmatprep.subr.mxu0 0.0
    %2284 = vmatpush1.msra.mxu0 0.0
    %2285 = vmatprep.subr.mxu0 0.0
    %2286 = vmatpush1.msra.mxu0 0.0
    %2287 = vmatprep.subr.mxu0 0.0
    %2288 = vmatpush1.msra.mxu0 0.0
    %2289 = vmatprep.subr.mxu0 0.0
    %2290 = vmatpush1.msra.mxu0 0.0
    %2291 = vmatprep.subr.mxu0 0.0
    %2292 = vmatpush1.msra.mxu0 0.0
    %2293 = vmatprep.subr.mxu0 0.0
    %2294 = vmatpush1.msra.mxu0 0.0
    %2295 = vmatprep.subr.mxu0 0.0
    %2296 = vmatpush1.msra.mxu0 0.0
    %2297 = vmatprep.subr.mxu0 0.0
    %2298 = vmatpush1.msra.mxu0 0.0
    %2299 = vmatprep.subr.mxu0 0.0
    %2300 = vmatpush1.msra.mxu0 0.0
    %2301 = vmatprep.subr.mxu0 0.0
    %2302 = vmatpush1.msra.mxu0 0.0
    %2303 = vmatprep.subr.mxu0 0.0
    %2304 = vmatpush1.msra.mxu0 0.0
    %2305 = vmatprep.subr.mxu0 0.0
    %2306 = vmatpush1.msra.mxu0 0.0
    %2307 = vmatprep.subr.mxu0 0.0
    %2308 = vmatpush1.msra.mxu0 0.0
    %2309 = vmatprep.subr.mxu0 0.0
    %2310 = vmatpush1.msra.mxu0 0.0
    %2311 = vmatprep.subr.mxu0 0.0
    %2312 = vmatpush1.msra.mxu0 0.0
    %2313 = vmatprep.mubr.f32.mxu0 0.0
    %2314 = vmatmul.mubr.f32.gmra.mrb[0].mxu0 %v2176
    %v2315 = vpop.f32.mrb[0].mxu0
    %v2316 = vadd.f32 0.0, %v2315
    %v2317 = vpop.f32.mrb[0].mxu0
    %v2318 = vadd.f32 0.0, %v2317
    %2319 = vdwg.mxu0
    %v2320 = vadd.f32 %v2101, %v2245
    %v2321 = vadd.f32 %v2103, %v2247
    %v2322 = vadd.f32 %v2172, %v2316
    %v2323 = vadd.f32 %v2174, %v2318
    %v2324 = vxor.u32 %v2320, 2147483648
    %v2325 = vmul.f32 %v2324, 1.442695
    %v2326 = vpow.pop %v2325
    %v2327 = vadd.f32 %v2326, 1.0
    %v2328 = vrcp.pop %v2327
    %v2329 = vmul.f32 1.0, %v2328
    %v2330 = vxor.u32 %v2321, 2147483648
    %v2331 = vmul.f32 %v2330, 1.442695
    %v2332 = vpow.pop %v2331
    %v2333 = vadd.f32 %v2332, 1.0
    %v2334 = vrcp.pop %v2333
    %v2335 = vmul.f32 1.0, %v2334
    %v2336 = vtanh.pop %v2322
    %v2337 = vxor.u32 %v2323, 2147483648
    %v2338 = vmul.f32 %v2337, 1.442695
    %v2339 = vpow.pop %v2338
    %v2340 = vadd.f32 %v2339, 1.0
    %v2341 = vrcp.pop %v2340
    %v2342 = vmul.f32 1.0, %v2341
    %v2343 = vmul.f32 %v2335, %v2177
    %v2344 = vmul.f32 %v2329, %v2336
    %v2345 = vadd.f32 %v2343, %v2344
    %v2346 = vtanh.pop %v2345
    %v2347 = vmul.f32 %v2342, %v2346
    %2348 = vmatprep.subr.mxu0 %v1948
    %2349 = vmatpush1.msra.mxu0 %v1947
    %2350 = vmatprep.subr.mxu0 %v1952
    %2351 = vmatpush1.msra.mxu0 %v1951
    %2352 = vmatprep.subr.mxu0 %v1956
    %2353 = vmatpush1.msra.mxu0 %v1955
    %2354 = vmatprep.subr.mxu0 %v1960
    %2355 = vmatpush1.msra.mxu0 %v1959
    %2356 = vmatprep.subr.mxu0 %v1964
    %2357 = vmatpush1.msra.mxu0 %v1963
    %2358 = vmatprep.subr.mxu0 %v1968
    %2359 = vmatpush1.msra.mxu0 %v1967
    %2360 = vmatprep.subr.mxu0 %v1972
    %2361 = vmatpush1.msra.mxu0 %v1971
    %2362 = vmatprep.subr.mxu0 %v1976
    %2363 = vmatpush1.msra.mxu0 %v1975
    %2364 = vmatprep.subr.mxu0 %v1980
    %2365 = vmatpush1.msra.mxu0 %v1979
    %2366 = vmatprep.subr.mxu0 %v1984
    %2367 = vmatpush1.msra.mxu0 %v1983
    %2368 = vmatprep.subr.mxu0 %v1988
    %2369 = vmatpush1.msra.mxu0 %v1987
    %2370 = vmatprep.subr.mxu0 %v1992
    %2371 = vmatpush1.msra.mxu0 %v1991
    %2372 = vmatprep.subr.mxu0 %v1996
    %2373 = vmatpush1.msra.mxu0 %v1995
    %2374 = vmatprep.subr.mxu0 %v2000
    %2375 = vmatpush1.msra.mxu0 %v1999
    %2376 = vmatprep.subr.mxu0 %v2004
    %2377 = vmatpush1.msra.mxu0 %v2003
    %2378 = vmatprep.subr.mxu0 %v2008
    %2379 = vmatpush1.msra.mxu0 %v2007
    %2380 = vmatprep.subr.mxu0 0.0
    %2381 = vmatpush1.msra.mxu0 0.0
    %2382 = vmatprep.subr.mxu0 0.0
    %2383 = vmatpush1.msra.mxu0 0.0
    %2384 = vmatprep.subr.mxu0 0.0
    %2385 = vmatpush1.msra.mxu0 0.0
    %2386 = vmatprep.subr.mxu0 0.0
    %2387 = vmatpush1.msra.mxu0 0.0
    %2388 = vmatprep.subr.mxu0 0.0
    %2389 = vmatpush1.msra.mxu0 0.0
    %2390 = vmatprep.subr.mxu0 0.0
    %2391 = vmatpush1.msra.mxu0 0.0
    %2392 = vmatprep.subr.mxu0 0.0
    %2393 = vmatpush1.msra.mxu0 0.0
    %2394 = vmatprep.subr.mxu0 0.0
    %2395 = vmatpush1.msra.mxu0 0.0
    %2396 = vmatprep.subr.mxu0 0.0
    %2397 = vmatpush1.msra.mxu0 0.0
    %2398 = vmatprep.subr.mxu0 0.0
    %2399 = vmatpush1.msra.mxu0 0.0
    %2400 = vmatprep.subr.mxu0 0.0
    %2401 = vmatpush1.msra.mxu0 0.0
    %2402 = vmatprep.subr.mxu0 0.0
    %2403 = vmatpush1.msra.mxu0 0.0
    %2404 = vmatprep.subr.mxu0 0.0
    %2405 = vmatpush1.msra.mxu0 0.0
    %2406 = vmatprep.subr.mxu0 0.0
    %2407 = vmatpush1.msra.mxu0 0.0
    %2408 = vmatprep.subr.mxu0 0.0
    %2409 = vmatpush1.msra.mxu0 0.0
    %2410 = vmatprep.subr.mxu0 0.0
    %2411 = vmatpush1.msra.mxu0 0.0
    %2412 = vmatprep.mubr.f32.mxu0 0.0
    %2413 = vmatmul.mubr.f32.gmra.mrb[0].mxu0 %v2347
    %v2414 = vpop.f32.mrb[0].mxu0
    %v2415 = vadd.f32 0.0, %v2414
    %v2416 = vpop.f32.mrb[0].mxu0
    %v2417 = vadd.f32 0.0, %v2416
    %2418 = vdwg.mxu0
    %2419 = vmatprep.subr.mxu0 %v1950
    %2420 = vmatpush1.msra.mxu0 %v1949
    %2421 = vmatprep.subr.mxu0 %v1954
    %2422 = vmatpush1.msra.mxu0 %v1953
    %2423 = vmatprep.subr.mxu0 %v1958
    %2424 = vmatpush1.msra.mxu0 %v1957
    %2425 = vmatprep.subr.mxu0 %v1962
    %2426 = vmatpush1.msra.mxu0 %v1961
    %2427 = vmatprep.subr.mxu0 %v1966
    %2428 = vmatpush1.msra.mxu0 %v1965
    %2429 = vmatprep.subr.mxu0 %v1970
    %2430 = vmatpush1.msra.mxu0 %v1969
    %2431 = vmatprep.subr.mxu0 %v1974
    %2432 = vmatpush1.msra.mxu0 %v1973
    %2433 = vmatprep.subr.mxu0 %v1978
    %2434 = vmatpush1.msra.mxu0 %v1977
    %2435 = vmatprep.subr.mxu0 %v1982
    %2436 = vmatpush1.msra.mxu0 %v1981
    %2437 = vmatprep.subr.mxu0 %v1986
    %2438 = vmatpush1.msra.mxu0 %v1985
    %2439 = vmatprep.subr.mxu0 %v1990
    %2440 = vmatpush1.msra.mxu0 %v1989
    %2441 = vmatprep.subr.mxu0 %v1994
    %2442 = vmatpush1.msra.mxu0 %v1993
    %2443 = vmatprep.subr.mxu0 %v1998
    %2444 = vmatpush1.msra.mxu0 %v1997
    %2445 = vmatprep.subr.mxu0 %v2002
    %2446 = vmatpush1.msra.mxu0 %v2001
    %2447 = vmatprep.subr.mxu0 %v2006
    %2448 = vmatpush1.msra.mxu0 %v2005
    %2449 = vmatprep.subr.mxu0 %v2010
    %2450 = vmatpush1.msra.mxu0 %v2009
    %2451 = vmatprep.subr.mxu0 0.0
    %2452 = vmatpush1.msra.mxu0 0.0
    %2453 = vmatprep.subr.mxu0 0.0
    %2454 = vmatpush1.msra.mxu0 0.0
    %2455 = vmatprep.subr.mxu0 0.0
    %2456 = vmatpush1.msra.mxu0 0.0
    %2457 = vmatprep.subr.mxu0 0.0
    %2458 = vmatpush1.msra.mxu0 0.0
    %2459 = vmatprep.subr.mxu0 0.0
    %2460 = vmatpush1.msra.mxu0 0.0
    %2461 = vmatprep.subr.mxu0 0.0
    %2462 = vmatpush1.msra.mxu0 0.0
    %2463 = vmatprep.subr.mxu0 0.0
    %2464 = vmatpush1.msra.mxu0 0.0
    %2465 = vmatprep.subr.mxu0 0.0
    %2466 = vmatpush1.msra.mxu0 0.0
    %2467 = vmatprep.subr.mxu0 0.0
    %2468 = vmatpush1.msra.mxu0 0.0
    %2469 = vmatprep.subr.mxu0 0.0
    %2470 = vmatpush1.msra.mxu0 0.0
    %2471 = vmatprep.subr.mxu0 0.0
    %2472 = vmatpush1.msra.mxu0 0.0
    %2473 = vmatprep.subr.mxu0 0.0
    %2474 = vmatpush1.msra.mxu0 0.0
    %2475 = vmatprep.subr.mxu0 0.0
    %2476 = vmatpush1.msra.mxu0 0.0
    %2477 = vmatprep.subr.mxu0 0.0
    %2478 = vmatpush1.msra.mxu0 0.0
    %2479 = vmatprep.subr.mxu0 0.0
    %2480 = vmatpush1.msra.mxu0 0.0
    %2481 = vmatprep.subr.mxu0 0.0
    %2482 = vmatpush1.msra.mxu0 0.0
    %2483 = vmatprep.mubr.f32.mxu0 0.0
    %2484 = vmatmul.mubr.f32.gmra.mrb[0].mxu0 %v2347
    %v2485 = vpop.f32.mrb[0].mxu0
    %v2486 = vadd.f32 0.0, %v2485
    %v2487 = vpop.f32.mrb[0].mxu0
    %v2488 = vadd.f32 0.0, %v2487
    %2489 = vdwg.mxu0
    %v2494 = vrot.slane %v2415, 7
    %v2495 = vrot.slane %v2417, 7
    %v2496 = vrot.slane %v2486, 7
    %v2497 = vrot.slane %v2488, 7
    %v2502 = vadd.f32 %v2101, %v2494
    %v2503 = vadd.f32 %v2103, %v2495
    %v2504 = vadd.f32 %v2172, %v2496
    %v2505 = vadd.f32 %v2174, %v2497
    %v2506 = vxor.u32 %v2502, 2147483648
    %v2507 = vmul.f32 %v2506, 1.442695
    %v2508 = vpow.pop %v2507
    %v2509 = vadd.f32 %v2508, 1.0
    %v2510 = vrcp.pop %v2509
    %v2511 = vmul.f32 1.0, %v2510
    %v2512 = vxor.u32 %v2503, 2147483648
    %v2513 = vmul.f32 %v2512, 1.442695
    %v2514 = vpow.pop %v2513
    %v2515 = vadd.f32 %v2514, 1.0
    %v2516 = vrcp.pop %v2515
    %v2517 = vmul.f32 1.0, %v2516
    %v2518 = vtanh.pop %v2504
    %v2519 = vxor.u32 %v2505, 2147483648
    %v2520 = vmul.f32 %v2519, 1.442695
    %v2521 = vpow.pop %v2520
    %v2522 = vadd.f32 %v2521, 1.0
    %v2523 = vrcp.pop %v2522
    %v2524 = vmul.f32 1.0, %v2523
    %v2526 = vrot.slane %v2345, 7
    %v2528 = vmul.f32 %v2517, %v2526
    %v2529 = vmul.f32 %v2511, %v2518
    %v2530 = vadd.f32 %v2528, %v2529
    %v2531 = vtanh.pop %v2530
    %v2532 = vmul.f32 %v2524, %v2531
    %v2534 = vrot.slane %v2532, 1
    %2536 = vmatprep.subr.mxu0 %v1948
    %2537 = vmatpush1.msra.mxu0 %v1947
    %2538 = vmatprep.subr.mxu0 %v1952
    %2539 = vmatpush1.msra.mxu0 %v1951
    %2540 = vmatprep.subr.mxu0 %v1956
    %2541 = vmatpush1.msra.mxu0 %v1955
    %2542 = vmatprep.subr.mxu0 %v1960
    %2543 = vmatpush1.msra.mxu0 %v1959
    %2544 = vmatprep.subr.mxu0 %v1964
    %2545 = vmatpush1.msra.mxu0 %v1963
    %2546 = vmatprep.subr.mxu0 %v1968
    %2547 = vmatpush1.msra.mxu0 %v1967
    %2548 = vmatprep.subr.mxu0 %v1972
    %2549 = vmatpush1.msra.mxu0 %v1971
    %2550 = vmatprep.subr.mxu0 %v1976
    %2551 = vmatpush1.msra.mxu0 %v1975
    %2552 = vmatprep.subr.mxu0 %v1980
    %2553 = vmatpush1.msra.mxu0 %v1979
    %2554 = vmatprep.subr.mxu0 %v1984
    %2555 = vmatpush1.msra.mxu0 %v1983
    %2556 = vmatprep.subr.mxu0 %v1988
    %2557 = vmatpush1.msra.mxu0 %v1987
    %2558 = vmatprep.subr.mxu0 %v1992
    %2559 = vmatpush1.msra.mxu0 %v1991
    %2560 = vmatprep.subr.mxu0 %v1996
    %2561 = vmatpush1.msra.mxu0 %v1995
    %2562 = vmatprep.subr.mxu0 %v2000
    %2563 = vmatpush1.msra.mxu0 %v1999
    %2564 = vmatprep.subr.mxu0 %v2004
    %2565 = vmatpush1.msra.mxu0 %v2003
    %2566 = vmatprep.subr.mxu0 %v2008
    %2567 = vmatpush1.msra.mxu0 %v2007
    %2568 = vmatprep.subr.mxu0 0.0
    %2569 = vmatpush1.msra.mxu0 0.0
    %2570 = vmatprep.subr.mxu0 0.0
    %2571 = vmatpush1.msra.mxu0 0.0
    %2572 = vmatprep.subr.mxu0 0.0
    %2573 = vmatpush1.msra.mxu0 0.0
    %2574 = vmatprep.subr.mxu0 0.0
    %2575 = vmatpush1.msra.mxu0 0.0
    %2576 = vmatprep.subr.mxu0 0.0
    %2577 = vmatpush1.msra.mxu0 0.0
    %2578 = vmatprep.subr.mxu0 0.0
    %2579 = vmatpush1.msra.mxu0 0.0
    %2580 = vmatprep.subr.mxu0 0.0
    %2581 = vmatpush1.msra.mxu0 0.0
    %2582 = vmatprep.subr.mxu0 0.0
    %2583 = vmatpush1.msra.mxu0 0.0
    %2584 = vmatprep.subr.mxu0 0.0
    %2585 = vmatpush1.msra.mxu0 0.0
    %2586 = vmatprep.subr.mxu0 0.0
    %2587 = vmatpush1.msra.mxu0 0.0
    %2588 = vmatprep.subr.mxu0 0.0
    %2589 = vmatpush1.msra.mxu0 0.0
    %2590 = vmatprep.subr.mxu0 0.0
    %2591 = vmatpush1.msra.mxu0 0.0
    %2592 = vmatprep.subr.mxu0 0.0
    %2593 = vmatpush1.msra.mxu0 0.0
    %2594 = vmatprep.subr.mxu0 0.0
    %2595 = vmatpush1.msra.mxu0 0.0
    %2596 = vmatprep.subr.mxu0 0.0
    %2597 = vmatpush1.msra.mxu0 0.0
    %2598 = vmatprep.subr.mxu0 0.0
    %2599 = vmatpush1.msra.mxu0 0.0
    %2600 = vmatprep.mubr.f32.mxu0 0.0
    %2601 = vmatmul.mubr.f32.gmra.mrb[0].mxu0 %v2534
    %v2602 = vpop.f32.mrb[0].mxu0
    %v2603 = vadd.f32 0.0, %v2602
    %v2604 = vpop.f32.mrb[0].mxu0
    %v2605 = vadd.f32 0.0, %v2604
    %2606 = vdwg.mxu0
    %2607 = vmatprep.subr.mxu0 %v1950
    %2608 = vmatpush1.msra.mxu0 %v1949
    %2609 = vmatprep.subr.mxu0 %v1954
    %2610 = vmatpush1.msra.mxu0 %v1953
    %2611 = vmatprep.subr.mxu0 %v1958
    %2612 = vmatpush1.msra.mxu0 %v1957
    %2613 = vmatprep.subr.mxu0 %v1962
    %2614 = vmatpush1.msra.mxu0 %v1961
    %2615 = vmatprep.subr.mxu0 %v1966
    %2616 = vmatpush1.msra.mxu0 %v1965
    %2617 = vmatprep.subr.mxu0 %v1970
    %2618 = vmatpush1.msra.mxu0 %v1969
    %2619 = vmatprep.subr.mxu0 %v1974
    %2620 = vmatpush1.msra.mxu0 %v1973
    %2621 = vmatprep.subr.mxu0 %v1978
    %2622 = vmatpush1.msra.mxu0 %v1977
    %2623 = vmatprep.subr.mxu0 %v1982
    %2624 = vmatpush1.msra.mxu0 %v1981
    %2625 = vmatprep.subr.mxu0 %v1986
    %2626 = vmatpush1.msra.mxu0 %v1985
    %2627 = vmatprep.subr.mxu0 %v1990
    %2628 = vmatpush1.msra.mxu0 %v1989
    %2629 = vmatprep.subr.mxu0 %v1994
    %2630 = vmatpush1.msra.mxu0 %v1993
    %2631 = vmatprep.subr.mxu0 %v1998
    %2632 = vmatpush1.msra.mxu0 %v1997
    %2633 = vmatprep.subr.mxu0 %v2002
    %2634 = vmatpush1.msra.mxu0 %v2001
    %2635 = vmatprep.subr.mxu0 %v2006
    %2636 = vmatpush1.msra.mxu0 %v2005
    %2637 = vmatprep.subr.mxu0 %v2010
    %2638 = vmatpush1.msra.mxu0 %v2009
    %2639 = vmatprep.subr.mxu0 0.0
    %2640 = vmatpush1.msra.mxu0 0.0
    %2641 = vmatprep.subr.mxu0 0.0
    %2642 = vmatpush1.msra.mxu0 0.0
    %2643 = vmatprep.subr.mxu0 0.0
    %2644 = vmatpush1.msra.mxu0 0.0
    %2645 = vmatprep.subr.mxu0 0.0
    %2646 = vmatpush1.msra.mxu0 0.0
    %2647 = vmatprep.subr.mxu0 0.0
    %2648 = vmatpush1.msra.mxu0 0.0
    %2649 = vmatprep.subr.mxu0 0.0
    %2650 = vmatpush1.msra.mxu0 0.0
    %2651 = vmatprep.subr.mxu0 0.0
    %2652 = vmatpush1.msra.mxu0 0.0
    %2653 = vmatprep.subr.mxu0 0.0
    %2654 = vmatpush1.msra.mxu0 0.0
    %2655 = vmatprep.subr.mxu0 0.0
    %2656 = vmatpush1.msra.mxu0 0.0
    %2657 = vmatprep.subr.mxu0 0.0
    %2658 = vmatpush1.msra.mxu0 0.0
    %2659 = vmatprep.subr.mxu0 0.0
    %2660 = vmatpush1.msra.mxu0 0.0
    %2661 = vmatprep.subr.mxu0 0.0
    %2662 = vmatpush1.msra.mxu0 0.0
    %2663 = vmatprep.subr.mxu0 0.0
    %2664 = vmatpush1.msra.mxu0 0.0
    %2665 = vmatprep.subr.mxu0 0.0
    %2666 = vmatpush1.msra.mxu0 0.0
    %2667 = vmatprep.subr.mxu0 0.0
    %2668 = vmatpush1.msra.mxu0 0.0
    %2669 = vmatprep.subr.mxu0 0.0
    %2670 = vmatpush1.msra.mxu0 0.0
    %2671 = vmatprep.mubr.f32.mxu0 0.0
    %2672 = vmatmul.mubr.f32.gmra.mrb[0].mxu0 %v2534
    %v2673 = vpop.f32.mrb[0].mxu0
    %v2674 = vadd.f32 0.0, %v2673
    %v2675 = vpop.f32.mrb[0].mxu0
    %v2676 = vadd.f32 0.0, %v2675
    %2677 = vdwg.mxu0
    %v2682 = vrot.slane %v2603, 6
    %v2683 = vrot.slane %v2605, 6
    %v2684 = vrot.slane %v2674, 6
    %v2685 = vrot.slane %v2676, 6
    %v2690 = vadd.f32 %v2101, %v2682
    %v2691 = vadd.f32 %v2103, %v2683
    %v2692 = vadd.f32 %v2172, %v2684
    %v2693 = vadd.f32 %v2174, %v2685
    %v2694 = vxor.u32 %v2690, 2147483648
    %v2695 = vmul.f32 %v2694, 1.442695
    %v2696 = vpow.pop %v2695
    %v2697 = vadd.f32 %v2696, 1.0
    %v2698 = vrcp.pop %v2697
    %v2699 = vmul.f32 1.0, %v2698
    %v2700 = vxor.u32 %v2691, 2147483648
    %v2701 = vmul.f32 %v2700, 1.442695
    %v2702 = vpow.pop %v2701
    %v2703 = vadd.f32 %v2702, 1.0
    %v2704 = vrcp.pop %v2703
    %v2705 = vmul.f32 1.0, %v2704
    %v2706 = vtanh.pop %v2692
    %v2707 = vxor.u32 %v2693, 2147483648
    %v2708 = vmul.f32 %v2707, 1.442695
    %v2709 = vpow.pop %v2708
    %v2710 = vadd.f32 %v2709, 1.0
    %v2711 = vrcp.pop %v2710
    %v2712 = vmul.f32 1.0, %v2711
    %v2714 = vrot.slane %v2530, 7
    %v2716 = vmul.f32 %v2705, %v2714
    %v2717 = vmul.f32 %v2699, %v2706
    %v2718 = vadd.f32 %v2716, %v2717
    %v2719 = vtanh.pop %v2718
    %v2720 = vmul.f32 %v2712, %v2719
    %v2722 = vrot.slane %v2720, 2
    %2724 = vmatprep.subr.mxu0 %v1948
    %2725 = vmatpush1.msra.mxu0 %v1947
    %2726 = vmatprep.subr.mxu0 %v1952
    %2727 = vmatpush1.msra.mxu0 %v1951
    %2728 = vmatprep.subr.mxu0 %v1956
    %2729 = vmatpush1.msra.mxu0 %v1955
    %2730 = vmatprep.subr.mxu0 %v1960
    %2731 = vmatpush1.msra.mxu0 %v1959
    %2732 = vmatprep.subr.mxu0 %v1964
    %2733 = vmatpush1.msra.mxu0 %v1963
    %2734 = vmatprep.subr.mxu0 %v1968
    %2735 = vmatpush1.msra.mxu0 %v1967
    %2736 = vmatprep.subr.mxu0 %v1972
    %2737 = vmatpush1.msra.mxu0 %v1971
    %2738 = vmatprep.subr.mxu0 %v1976
    %2739 = vmatpush1.msra.mxu0 %v1975
    %2740 = vmatprep.subr.mxu0 %v1980
    %2741 = vmatpush1.msra.mxu0 %v1979
    %2742 = vmatprep.subr.mxu0 %v1984
    %2743 = vmatpush1.msra.mxu0 %v1983
    %2744 = vmatprep.subr.mxu0 %v1988
    %2745 = vmatpush1.msra.mxu0 %v1987
    %2746 = vmatprep.subr.mxu0 %v1992
    %2747 = vmatpush1.msra.mxu0 %v1991
    %2748 = vmatprep.subr.mxu0 %v1996
    %2749 = vmatpush1.msra.mxu0 %v1995
    %2750 = vmatprep.subr.mxu0 %v2000
    %2751 = vmatpush1.msra.mxu0 %v1999
    %2752 = vmatprep.subr.mxu0 %v2004
    %2753 = vmatpush1.msra.mxu0 %v2003
    %2754 = vmatprep.subr.mxu0 %v2008
    %2755 = vmatpush1.msra.mxu0 %v2007
    %2756 = vmatprep.subr.mxu0 0.0
    %2757 = vmatpush1.msra.mxu0 0.0
    %2758 = vmatprep.subr.mxu0 0.0
    %2759 = vmatpush1.msra.mxu0 0.0
    %2760 = vmatprep.subr.mxu0 0.0
    %2761 = vmatpush1.msra.mxu0 0.0
    %2762 = vmatprep.subr.mxu0 0.0
    %2763 = vmatpush1.msra.mxu0 0.0
    %2764 = vmatprep.subr.mxu0 0.0
    %2765 = vmatpush1.msra.mxu0 0.0
    %2766 = vmatprep.subr.mxu0 0.0
    %2767 = vmatpush1.msra.mxu0 0.0
    %2768 = vmatprep.subr.mxu0 0.0
    %2769 = vmatpush1.msra.mxu0 0.0
    %2770 = vmatprep.subr.mxu0 0.0
    %2771 = vmatpush1.msra.mxu0 0.0
    %2772 = vmatprep.subr.mxu0 0.0
    %2773 = vmatpush1.msra.mxu0 0.0
    %2774 = vmatprep.subr.mxu0 0.0
    %2775 = vmatpush1.msra.mxu0 0.0
    %2776 = vmatprep.subr.mxu0 0.0
    %2777 = vmatpush1.msra.mxu0 0.0
    %2778 = vmatprep.subr.mxu0 0.0
    %2779 = vmatpush1.msra.mxu0 0.0
    %2780 = vmatprep.subr.mxu0 0.0
    %2781 = vmatpush1.msra.mxu0 0.0
    %2782 = vmatprep.subr.mxu0 0.0
    %2783 = vmatpush1.msra.mxu0 0.0
    %2784 = vmatprep.subr.mxu0 0.0
    %2785 = vmatpush1.msra.mxu0 0.0
    %2786 = vmatprep.subr.mxu0 0.0
    %2787 = vmatpush1.msra.mxu0 0.0
    %2788 = vmatprep.mubr.f32.mxu0 0.0
    %2789 = vmatmul.mubr.f32.gmra.mrb[0].mxu0 %v2722
    %v2790 = vpop.f32.mrb[0].mxu0
    %v2791 = vadd.f32 0.0, %v2790
    %v2792 = vpop.f32.mrb[0].mxu0
    %v2793 = vadd.f32 0.0, %v2792
    %2794 = vdwg.mxu0
    %2795 = vmatprep.subr.mxu0 %v1950
    %2796 = vmatpush1.msra.mxu0 %v1949
    %2797 = vmatprep.subr.mxu0 %v1954
    %2798 = vmatpush1.msra.mxu0 %v1953
    %2799 = vmatprep.subr.mxu0 %v1958
    %2800 = vmatpush1.msra.mxu0 %v1957
    %2801 = vmatprep.subr.mxu0 %v1962
    %2802 = vmatpush1.msra.mxu0 %v1961
    %2803 = vmatprep.subr.mxu0 %v1966
    %2804 = vmatpush1.msra.mxu0 %v1965
    %2805 = vmatprep.subr.mxu0 %v1970
    %2806 = vmatpush1.msra.mxu0 %v1969
    %2807 = vmatprep.subr.mxu0 %v1974
    %2808 = vmatpush1.msra.mxu0 %v1973
    %2809 = vmatprep.subr.mxu0 %v1978
    %2810 = vmatpush1.msra.mxu0 %v1977
    %2811 = vmatprep.subr.mxu0 %v1982
    %2812 = vmatpush1.msra.mxu0 %v1981
    %2813 = vmatprep.subr.mxu0 %v1986
    %2814 = vmatpush1.msra.mxu0 %v1985
    %2815 = vmatprep.subr.mxu0 %v1990
    %2816 = vmatpush1.msra.mxu0 %v1989
    %2817 = vmatprep.subr.mxu0 %v1994
    %2818 = vmatpush1.msra.mxu0 %v1993
    %2819 = vmatprep.subr.mxu0 %v1998
    %2820 = vmatpush1.msra.mxu0 %v1997
    %2821 = vmatprep.subr.mxu0 %v2002
    %2822 = vmatpush1.msra.mxu0 %v2001
    %2823 = vmatprep.subr.mxu0 %v2006
    %2824 = vmatpush1.msra.mxu0 %v2005
    %2825 = vmatprep.subr.mxu0 %v2010
    %2826 = vmatpush1.msra.mxu0 %v2009
    %2827 = vmatprep.subr.mxu0 0.0
    %2828 = vmatpush1.msra.mxu0 0.0
    %2829 = vmatprep.subr.mxu0 0.0
    %2830 = vmatpush1.msra.mxu0 0.0
    %2831 = vmatprep.subr.mxu0 0.0
    %2832 = vmatpush1.msra.mxu0 0.0
    %2833 = vmatprep.subr.mxu0 0.0
    %2834 = vmatpush1.msra.mxu0 0.0
    %2835 = vmatprep.subr.mxu0 0.0
    %2836 = vmatpush1.msra.mxu0 0.0
    %2837 = vmatprep.subr.mxu0 0.0
    %2838 = vmatpush1.msra.mxu0 0.0
    %2839 = vmatprep.subr.mxu0 0.0
    %2840 = vmatpush1.msra.mxu0 0.0
    %2841 = vmatprep.subr.mxu0 0.0
    %2842 = vmatpush1.msra.mxu0 0.0
    %2843 = vmatprep.subr.mxu0 0.0
    %2844 = vmatpush1.msra.mxu0 0.0
    %2845 = vmatprep.subr.mxu0 0.0
    %2846 = vmatpush1.msra.mxu0 0.0
    %2847 = vmatprep.subr.mxu0 0.0
    %2848 = vmatpush1.msra.mxu0 0.0
    %2849 = vmatprep.subr.mxu0 0.0
    %2850 = vmatpush1.msra.mxu0 0.0
    %2851 = vmatprep.subr.mxu0 0.0
    %2852 = vmatpush1.msra.mxu0 0.0
    %2853 = vmatprep.subr.mxu0 0.0
    %2854 = vmatpush1.msra.mxu0 0.0
    %2855 = vmatprep.subr.mxu0 0.0
    %2856 = vmatpush1.msra.mxu0 0.0
    %2857 = vmatprep.subr.mxu0 0.0
    %2858 = vmatpush1.msra.mxu0 0.0
    %2859 = vmatprep.mubr.f32.mxu0 0.0
    %2860 = vmatmul.mubr.f32.gmra.mrb[0].mxu0 %v2722
    %v2861 = vpop.f32.mrb[0].mxu0
    %v2862 = vadd.f32 0.0, %v2861
    %v2863 = vpop.f32.mrb[0].mxu0
    %v2864 = vadd.f32 0.0, %v2863
    %2865 = vdwg.mxu0
    %v2870 = vrot.slane %v2791, 5
    %v2871 = vrot.slane %v2793, 5
    %v2872 = vrot.slane %v2862, 5
    %v2873 = vrot.slane %v2864, 5
    %v2878 = vadd.f32 %v2101, %v2870
    %v2879 = vadd.f32 %v2103, %v2871
    %v2880 = vadd.f32 %v2172, %v2872
    %v2881 = vadd.f32 %v2174, %v2873
    %v2882 = vxor.u32 %v2878, 2147483648
    %v2883 = vmul.f32 %v2882, 1.442695
    %v2884 = vpow.pop %v2883
    %v2885 = vadd.f32 %v2884, 1.0
    %v2886 = vrcp.pop %v2885
    %v2887 = vmul.f32 1.0, %v2886
    %v2888 = vxor.u32 %v2879, 2147483648
    %v2889 = vmul.f32 %v2888, 1.442695
    %v2890 = vpow.pop %v2889
    %v2891 = vadd.f32 %v2890, 1.0
    %v2892 = vrcp.pop %v2891
    %v2893 = vmul.f32 1.0, %v2892
    %v2894 = vtanh.pop %v2880
    %v2895 = vxor.u32 %v2881, 2147483648
    %v2896 = vmul.f32 %v2895, 1.442695
    %v2897 = vpow.pop %v2896
    %v2898 = vadd.f32 %v2897, 1.0
    %v2899 = vrcp.pop %v2898
    %v2900 = vmul.f32 1.0, %v2899
    %v2902 = vrot.slane %v2718, 7
    %v2904 = vmul.f32 %v2893, %v2902
    %v2905 = vmul.f32 %v2887, %v2894
    %v2906 = vadd.f32 %v2904, %v2905
    %v2907 = vtanh.pop %v2906
    %v2908 = vmul.f32 %v2900, %v2907
    %v2910 = vrot.slane %v2908, 3
    %2912 = vmatprep.subr.mxu0 %v1948
    %2913 = vmatpush1.msra.mxu0 %v1947
    %2914 = vmatprep.subr.mxu0 %v1952
    %2915 = vmatpush1.msra.mxu0 %v1951
    %2916 = vmatprep.subr.mxu0 %v1956
    %2917 = vmatpush1.msra.mxu0 %v1955
    %2918 = vmatprep.subr.mxu0 %v1960
    %2919 = vmatpush1.msra.mxu0 %v1959
    %2920 = vmatprep.subr.mxu0 %v1964
    %2921 = vmatpush1.msra.mxu0 %v1963
    %2922 = vmatprep.subr.mxu0 %v1968
    %2923 = vmatpush1.msra.mxu0 %v1967
    %2924 = vmatprep.subr.mxu0 %v1972
    %2925 = vmatpush1.msra.mxu0 %v1971
    %2926 = vmatprep.subr.mxu0 %v1976
    %2927 = vmatpush1.msra.mxu0 %v1975
    %2928 = vmatprep.subr.mxu0 %v1980
    %2929 = vmatpush1.msra.mxu0 %v1979
    %2930 = vmatprep.subr.mxu0 %v1984
    %2931 = vmatpush1.msra.mxu0 %v1983
    %2932 = vmatprep.subr.mxu0 %v1988
    %2933 = vmatpush1.msra.mxu0 %v1987
    %2934 = vmatprep.subr.mxu0 %v1992
    %2935 = vmatpush1.msra.mxu0 %v1991
    %2936 = vmatprep.subr.mxu0 %v1996
    %2937 = vmatpush1.msra.mxu0 %v1995
    %2938 = vmatprep.subr.mxu0 %v2000
    %2939 = vmatpush1.msra.mxu0 %v1999
    %2940 = vmatprep.subr.mxu0 %v2004
    %2941 = vmatpush1.msra.mxu0 %v2003
    %2942 = vmatprep.subr.mxu0 %v2008
    %2943 = vmatpush1.msra.mxu0 %v2007
    %2944 = vmatprep.subr.mxu0 0.0
    %2945 = vmatpush1.msra.mxu0 0.0
    %2946 = vmatprep.subr.mxu0 0.0
    %2947 = vmatpush1.msra.mxu0 0.0
    %2948 = vmatprep.subr.mxu0 0.0
    %2949 = vmatpush1.msra.mxu0 0.0
    %2950 = vmatprep.subr.mxu0 0.0
    %2951 = vmatpush1.msra.mxu0 0.0
    %2952 = vmatprep.subr.mxu0 0.0
    %2953 = vmatpush1.msra.mxu0 0.0
    %2954 = vmatprep.subr.mxu0 0.0
    %2955 = vmatpush1.msra.mxu0 0.0
    %2956 = vmatprep.subr.mxu0 0.0
    %2957 = vmatpush1.msra.mxu0 0.0
    %2958 = vmatprep.subr.mxu0 0.0
    %2959 = vmatpush1.msra.mxu0 0.0
    %2960 = vmatprep.subr.mxu0 0.0
    %2961 = vmatpush1.msra.mxu0 0.0
    %2962 = vmatprep.subr.mxu0 0.0
    %2963 = vmatpush1.msra.mxu0 0.0
    %2964 = vmatprep.subr.mxu0 0.0
    %2965 = vmatpush1.msra.mxu0 0.0
    %2966 = vmatprep.subr.mxu0 0.0
    %2967 = vmatpush1.msra.mxu0 0.0
    %2968 = vmatprep.subr.mxu0 0.0
    %2969 = vmatpush1.msra.mxu0 0.0
    %2970 = vmatprep.subr.mxu0 0.0
    %2971 = vmatpush1.msra.mxu0 0.0
    %2972 = vmatprep.subr.mxu0 0.0
    %2973 = vmatpush1.msra.mxu0 0.0
    %2974 = vmatprep.subr.mxu0 0.0
    %2975 = vmatpush1.msra.mxu0 0.0
    %2976 = vmatprep.mubr.f32.mxu0 0.0
    %2977 = vmatmul.mubr.f32.gmra.mrb[0].mxu0 %v2910
    %v2978 = vpop.f32.mrb[0].mxu0
    %v2979 = vadd.f32 0.0, %v2978
    %v2980 = vpop.f32.mrb[0].mxu0
    %v2981 = vadd.f32 0.0, %v2980
    %2982 = vdwg.mxu0
    %2983 = vmatprep.subr.mxu0 %v1950
    %2984 = vmatpush1.msra.mxu0 %v1949
    %2985 = vmatprep.subr.mxu0 %v1954
    %2986 = vmatpush1.msra.mxu0 %v1953
    %2987 = vmatprep.subr.mxu0 %v1958
    %2988 = vmatpush1.msra.mxu0 %v1957
    %2989 = vmatprep.subr.mxu0 %v1962
    %2990 = vmatpush1.msra.mxu0 %v1961
    %2991 = vmatprep.subr.mxu0 %v1966
    %2992 = vmatpush1.msra.mxu0 %v1965
    %2993 = vmatprep.subr.mxu0 %v1970
    %2994 = vmatpush1.msra.mxu0 %v1969
    %2995 = vmatprep.subr.mxu0 %v1974
    %2996 = vmatpush1.msra.mxu0 %v1973
    %2997 = vmatprep.subr.mxu0 %v1978
    %2998 = vmatpush1.msra.mxu0 %v1977
    %2999 = vmatprep.subr.mxu0 %v1982
    %3000 = vmatpush1.msra.mxu0 %v1981
    %3001 = vmatprep.subr.mxu0 %v1986
    %3002 = vmatpush1.msra.mxu0 %v1985
    %3003 = vmatprep.subr.mxu0 %v1990
    %3004 = vmatpush1.msra.mxu0 %v1989
    %3005 = vmatprep.subr.mxu0 %v1994
    %3006 = vmatpush1.msra.mxu0 %v1993
    %3007 = vmatprep.subr.mxu0 %v1998
    %3008 = vmatpush1.msra.mxu0 %v1997
    %3009 = vmatprep.subr.mxu0 %v2002
    %3010 = vmatpush1.msra.mxu0 %v2001
    %3011 = vmatprep.subr.mxu0 %v2006
    %3012 = vmatpush1.msra.mxu0 %v2005
    %3013 = vmatprep.subr.mxu0 %v2010
    %3014 = vmatpush1.msra.mxu0 %v2009
    %3015 = vmatprep.subr.mxu0 0.0
    %3016 = vmatpush1.msra.mxu0 0.0
    %3017 = vmatprep.subr.mxu0 0.0
    %3018 = vmatpush1.msra.mxu0 0.0
    %3019 = vmatprep.subr.mxu0 0.0
    %3020 = vmatpush1.msra.mxu0 0.0
    %3021 = vmatprep.subr.mxu0 0.0
    %3022 = vmatpush1.msra.mxu0 0.0
    %3023 = vmatprep.subr.mxu0 0.0
    %3024 = vmatpush1.msra.mxu0 0.0
    %3025 = vmatprep.subr.mxu0 0.0
    %3026 = vmatpush1.msra.mxu0 0.0
    %3027 = vmatprep.subr.mxu0 0.0
    %3028 = vmatpush1.msra.mxu0 0.0
    %3029 = vmatprep.subr.mxu0 0.0
    %3030 = vmatpush1.msra.mxu0 0.0
    %3031 = vmatprep.subr.mxu0 0.0
    %3032 = vmatpush1.msra.mxu0 0.0
    %3033 = vmatprep.subr.mxu0 0.0
    %3034 = vmatpush1.msra.mxu0 0.0
    %3035 = vmatprep.subr.mxu0 0.0
    %3036 = vmatpush1.msra.mxu0 0.0
    %3037 = vmatprep.subr.mxu0 0.0
    %3038 = vmatpush1.msra.mxu0 0.0
    %3039 = vmatprep.subr.mxu0 0.0
    %3040 = vmatpush1.msra.mxu0 0.0
    %3041 = vmatprep.subr.mxu0 0.0
    %3042 = vmatpush1.msra.mxu0 0.0
    %3043 = vmatprep.subr.mxu0 0.0
    %3044 = vmatpush1.msra.mxu0 0.0
    %3045 = vmatprep.subr.mxu0 0.0
    %3046 = vmatpush1.msra.mxu0 0.0
    %3047 = vmatprep.mubr.f32.mxu0 0.0
    %3048 = vmatmul.mubr.f32.gmra.mrb[0].mxu0 %v2910
    %v3049 = vpop.f32.mrb[0].mxu0
    %v3050 = vadd.f32 0.0, %v3049
    %v3051 = vpop.f32.mrb[0].mxu0
    %v3052 = vadd.f32 0.0, %v3051
    %3053 = vdwg.mxu0
    %v3058 = vrot.slane %v2979, 4
    %v3059 = vrot.slane %v2981, 4
    %v3060 = vrot.slane %v3050, 4
    %v3061 = vrot.slane %v3052, 4
    %v3066 = vadd.f32 %v2101, %v3058
    %v3067 = vadd.f32 %v2103, %v3059
    %v3068 = vadd.f32 %v2172, %v3060
    %v3069 = vadd.f32 %v2174, %v3061
    %v3070 = vxor.u32 %v3066, 2147483648
    %v3071 = vmul.f32 %v3070, 1.442695
    %v3072 = vpow.pop %v3071
    %v3073 = vadd.f32 %v3072, 1.0
    %v3074 = vrcp.pop %v3073
    %v3075 = vmul.f32 1.0, %v3074
    %v3076 = vxor.u32 %v3067, 2147483648
    %v3077 = vmul.f32 %v3076, 1.442695
    %v3078 = vpow.pop %v3077
    %v3079 = vadd.f32 %v3078, 1.0
    %v3080 = vrcp.pop %v3079
    %v3081 = vmul.f32 1.0, %v3080
    %v3082 = vtanh.pop %v3068
    %v3083 = vxor.u32 %v3069, 2147483648
    %v3084 = vmul.f32 %v3083, 1.442695
    %v3085 = vpow.pop %v3084
    %v3086 = vadd.f32 %v3085, 1.0
    %v3087 = vrcp.pop %v3086
    %v3088 = vmul.f32 1.0, %v3087
    %v3090 = vrot.slane %v2906, 7
    %v3092 = vmul.f32 %v3081, %v3090
    %v3093 = vmul.f32 %v3075, %v3082
    %v3094 = vadd.f32 %v3092, %v3093
    %v3095 = vtanh.pop %v3094
    %v3096 = vmul.f32 %v3088, %v3095
    %v3098 = vrot.slane %v3096, 4
    %3100 = vmatprep.subr.mxu0 %v1948
    %3101 = vmatpush1.msra.mxu0 %v1947
    %3102 = vmatprep.subr.mxu0 %v1952
    %3103 = vmatpush1.msra.mxu0 %v1951
    %3104 = vmatprep.subr.mxu0 %v1956
    %3105 = vmatpush1.msra.mxu0 %v1955
    %3106 = vmatprep.subr.mxu0 %v1960
    %3107 = vmatpush1.msra.mxu0 %v1959
    %3108 = vmatprep.subr.mxu0 %v1964
    %3109 = vmatpush1.msra.mxu0 %v1963
    %3110 = vmatprep.subr.mxu0 %v1968
    %3111 = vmatpush1.msra.mxu0 %v1967
    %3112 = vmatprep.subr.mxu0 %v1972
    %3113 = vmatpush1.msra.mxu0 %v1971
    %3114 = vmatprep.subr.mxu0 %v1976
    %3115 = vmatpush1.msra.mxu0 %v1975
    %3116 = vmatprep.subr.mxu0 %v1980
    %3117 = vmatpush1.msra.mxu0 %v1979
    %3118 = vmatprep.subr.mxu0 %v1984
    %3119 = vmatpush1.msra.mxu0 %v1983
    %3120 = vmatprep.subr.mxu0 %v1988
    %3121 = vmatpush1.msra.mxu0 %v1987
    %3122 = vmatprep.subr.mxu0 %v1992
    %3123 = vmatpush1.msra.mxu0 %v1991
    %3124 = vmatprep.subr.mxu0 %v1996
    %3125 = vmatpush1.msra.mxu0 %v1995
    %3126 = vmatprep.subr.mxu0 %v2000
    %3127 = vmatpush1.msra.mxu0 %v1999
    %3128 = vmatprep.subr.mxu0 %v2004
    %3129 = vmatpush1.msra.mxu0 %v2003
    %3130 = vmatprep.subr.mxu0 %v2008
    %3131 = vmatpush1.msra.mxu0 %v2007
    %3132 = vmatprep.subr.mxu0 0.0
    %3133 = vmatpush1.msra.mxu0 0.0
    %3134 = vmatprep.subr.mxu0 0.0
    %3135 = vmatpush1.msra.mxu0 0.0
    %3136 = vmatprep.subr.mxu0 0.0
    %3137 = vmatpush1.msra.mxu0 0.0
    %3138 = vmatprep.subr.mxu0 0.0
    %3139 = vmatpush1.msra.mxu0 0.0
    %3140 = vmatprep.subr.mxu0 0.0
    %3141 = vmatpush1.msra.mxu0 0.0
    %3142 = vmatprep.subr.mxu0 0.0
    %3143 = vmatpush1.msra.mxu0 0.0
    %3144 = vmatprep.subr.mxu0 0.0
    %3145 = vmatpush1.msra.mxu0 0.0
    %3146 = vmatprep.subr.mxu0 0.0
    %3147 = vmatpush1.msra.mxu0 0.0
    %3148 = vmatprep.subr.mxu0 0.0
    %3149 = vmatpush1.msra.mxu0 0.0
    %3150 = vmatprep.subr.mxu0 0.0
    %3151 = vmatpush1.msra.mxu0 0.0
    %3152 = vmatprep.subr.mxu0 0.0
    %3153 = vmatpush1.msra.mxu0 0.0
    %3154 = vmatprep.subr.mxu0 0.0
    %3155 = vmatpush1.msra.mxu0 0.0
    %3156 = vmatprep.subr.mxu0 0.0
    %3157 = vmatpush1.msra.mxu0 0.0
    %3158 = vmatprep.subr.mxu0 0.0
    %3159 = vmatpush1.msra.mxu0 0.0
    %3160 = vmatprep.subr.mxu0 0.0
    %3161 = vmatpush1.msra.mxu0 0.0
    %3162 = vmatprep.subr.mxu0 0.0
    %3163 = vmatpush1.msra.mxu0 0.0
    %3164 = vmatprep.mubr.f32.mxu0 0.0
    %3165 = vmatmul.mubr.f32.gmra.mrb[0].mxu0 %v3098
    %v3166 = vpop.f32.mrb[0].mxu0
    %v3167 = vadd.f32 0.0, %v3166
    %v3168 = vpop.f32.mrb[0].mxu0
    %v3169 = vadd.f32 0.0, %v3168
    %3170 = vdwg.mxu0
    %3171 = vmatprep.subr.mxu0 %v1950
    %3172 = vmatpush1.msra.mxu0 %v1949
    %3173 = vmatprep.subr.mxu0 %v1954
    %3174 = vmatpush1.msra.mxu0 %v1953
    %3175 = vmatprep.subr.mxu0 %v1958
    %3176 = vmatpush1.msra.mxu0 %v1957
    %3177 = vmatprep.subr.mxu0 %v1962
    %3178 = vmatpush1.msra.mxu0 %v1961
    %3179 = vmatprep.subr.mxu0 %v1966
    %3180 = vmatpush1.msra.mxu0 %v1965
    %3181 = vmatprep.subr.mxu0 %v1970
    %3182 = vmatpush1.msra.mxu0 %v1969
    %3183 = vmatprep.subr.mxu0 %v1974
    %3184 = vmatpush1.msra.mxu0 %v1973
    %3185 = vmatprep.subr.mxu0 %v1978
    %3186 = vmatpush1.msra.mxu0 %v1977
    %3187 = vmatprep.subr.mxu0 %v1982
    %3188 = vmatpush1.msra.mxu0 %v1981
    %3189 = vmatprep.subr.mxu0 %v1986
    %3190 = vmatpush1.msra.mxu0 %v1985
    %3191 = vmatprep.subr.mxu0 %v1990
    %3192 = vmatpush1.msra.mxu0 %v1989
    %3193 = vmatprep.subr.mxu0 %v1994
    %3194 = vmatpush1.msra.mxu0 %v1993
    %3195 = vmatprep.subr.mxu0 %v1998
    %3196 = vmatpush1.msra.mxu0 %v1997
    %3197 = vmatprep.subr.mxu0 %v2002
    %3198 = vmatpush1.msra.mxu0 %v2001
    %3199 = vmatprep.subr.mxu0 %v2006
    %3200 = vmatpush1.msra.mxu0 %v2005
    %3201 = vmatprep.subr.mxu0 %v2010
    %3202 = vmatpush1.msra.mxu0 %v2009
    %3203 = vmatprep.subr.mxu0 0.0
    %3204 = vmatpush1.msra.mxu0 0.0
    %3205 = vmatprep.subr.mxu0 0.0
    %3206 = vmatpush1.msra.mxu0 0.0
    %3207 = vmatprep.subr.mxu0 0.0
    %3208 = vmatpush1.msra.mxu0 0.0
    %3209 = vmatprep.subr.mxu0 0.0
    %3210 = vmatpush1.msra.mxu0 0.0
    %3211 = vmatprep.subr.mxu0 0.0
    %3212 = vmatpush1.msra.mxu0 0.0
    %3213 = vmatprep.subr.mxu0 0.0
    %3214 = vmatpush1.msra.mxu0 0.0
    %3215 = vmatprep.subr.mxu0 0.0
    %3216 = vmatpush1.msra.mxu0 0.0
    %3217 = vmatprep.subr.mxu0 0.0
    %3218 = vmatpush1.msra.mxu0 0.0
    %3219 = vmatprep.subr.mxu0 0.0
    %3220 = vmatpush1.msra.mxu0 0.0
    %3221 = vmatprep.subr.mxu0 0.0
    %3222 = vmatpush1.msra.mxu0 0.0
    %3223 = vmatprep.subr.mxu0 0.0
    %3224 = vmatpush1.msra.mxu0 0.0
    %3225 = vmatprep.subr.mxu0 0.0
    %3226 = vmatpush1.msra.mxu0 0.0
    %3227 = vmatprep.subr.mxu0 0.0
    %3228 = vmatpush1.msra.mxu0 0.0
    %3229 = vmatprep.subr.mxu0 0.0
    %3230 = vmatpush1.msra.mxu0 0.0
    %3231 = vmatprep.subr.mxu0 0.0
    %3232 = vmatpush1.msra.mxu0 0.0
    %3233 = vmatprep.subr.mxu0 0.0
    %3234 = vmatpush1.msra.mxu0 0.0
    %3235 = vmatprep.mubr.f32.mxu0 0.0
    %3236 = vmatmul.mubr.f32.gmra.mrb[0].mxu0 %v3098
    %v3237 = vpop.f32.mrb[0].mxu0
    %v3238 = vadd.f32 0.0, %v3237
    %v3239 = vpop.f32.mrb[0].mxu0
    %v3240 = vadd.f32 0.0, %v3239
    %3241 = vdwg.mxu0
    %v3246 = vrot.slane %v3167, 3
    %v3247 = vrot.slane %v3169, 3
    %v3248 = vrot.slane %v3238, 3
    %v3249 = vrot.slane %v3240, 3
    %v3254 = vadd.f32 %v2101, %v3246
    %v3255 = vadd.f32 %v2103, %v3247
    %v3256 = vadd.f32 %v2172, %v3248
    %v3257 = vadd.f32 %v2174, %v3249
    %v3258 = vxor.u32 %v3254, 2147483648
    %v3259 = vmul.f32 %v3258, 1.442695
    %v3260 = vpow.pop %v3259
    %v3261 = vadd.f32 %v3260, 1.0
    %v3262 = vrcp.pop %v3261
    %v3263 = vmul.f32 1.0, %v3262
    %v3264 = vxor.u32 %v3255, 2147483648
    %v3265 = vmul.f32 %v3264, 1.442695
    %v3266 = vpow.pop %v3265
    %v3267 = vadd.f32 %v3266, 1.0
    %v3268 = vrcp.pop %v3267
    %v3269 = vmul.f32 1.0, %v3268
    %v3270 = vtanh.pop %v3256
    %v3271 = vxor.u32 %v3257, 2147483648
    %v3272 = vmul.f32 %v3271, 1.442695
    %v3273 = vpow.pop %v3272
    %v3274 = vadd.f32 %v3273, 1.0
    %v3275 = vrcp.pop %v3274
    %v3276 = vmul.f32 1.0, %v3275
    %v3278 = vrot.slane %v3094, 7
    %v3280 = vmul.f32 %v3269, %v3278
    %v3281 = vmul.f32 %v3263, %v3270
    %v3282 = vadd.f32 %v3280, %v3281
    %v3283 = vtanh.pop %v3282
    %v3284 = vmul.f32 %v3276, %v3283
    %v3286 = vrot.slane %v3284, 5
    %3288 = vmatprep.subr.mxu0 %v1948
    %3289 = vmatpush1.msra.mxu0 %v1947
    %3290 = vmatprep.subr.mxu0 %v1952
    %3291 = vmatpush1.msra.mxu0 %v1951
    %3292 = vmatprep.subr.mxu0 %v1956
    %3293 = vmatpush1.msra.mxu0 %v1955
    %3294 = vmatprep.subr.mxu0 %v1960
    %3295 = vmatpush1.msra.mxu0 %v1959
    %3296 = vmatprep.subr.mxu0 %v1964
    %3297 = vmatpush1.msra.mxu0 %v1963
    %3298 = vmatprep.subr.mxu0 %v1968
    %3299 = vmatpush1.msra.mxu0 %v1967
    %3300 = vmatprep.subr.mxu0 %v1972
    %3301 = vmatpush1.msra.mxu0 %v1971
    %3302 = vmatprep.subr.mxu0 %v1976
    %3303 = vmatpush1.msra.mxu0 %v1975
    %3304 = vmatprep.subr.mxu0 %v1980
    %3305 = vmatpush1.msra.mxu0 %v1979
    %3306 = vmatprep.subr.mxu0 %v1984
    %3307 = vmatpush1.msra.mxu0 %v1983
    %3308 = vmatprep.subr.mxu0 %v1988
    %3309 = vmatpush1.msra.mxu0 %v1987
    %3310 = vmatprep.subr.mxu0 %v1992
    %3311 = vmatpush1.msra.mxu0 %v1991
    %3312 = vmatprep.subr.mxu0 %v1996
    %3313 = vmatpush1.msra.mxu0 %v1995
    %3314 = vmatprep.subr.mxu0 %v2000
    %3315 = vmatpush1.msra.mxu0 %v1999
    %3316 = vmatprep.subr.mxu0 %v2004
    %3317 = vmatpush1.msra.mxu0 %v2003
    %3318 = vmatprep.subr.mxu0 %v2008
    %3319 = vmatpush1.msra.mxu0 %v2007
    %3320 = vmatprep.subr.mxu0 0.0
    %3321 = vmatpush1.msra.mxu0 0.0
    %3322 = vmatprep.subr.mxu0 0.0
    %3323 = vmatpush1.msra.mxu0 0.0
    %3324 = vmatprep.subr.mxu0 0.0
    %3325 = vmatpush1.msra.mxu0 0.0
    %3326 = vmatprep.subr.mxu0 0.0
    %3327 = vmatpush1.msra.mxu0 0.0
    %3328 = vmatprep.subr.mxu0 0.0
    %3329 = vmatpush1.msra.mxu0 0.0
    %3330 = vmatprep.subr.mxu0 0.0
    %3331 = vmatpush1.msra.mxu0 0.0
    %3332 = vmatprep.subr.mxu0 0.0
    %3333 = vmatpush1.msra.mxu0 0.0
    %3334 = vmatprep.subr.mxu0 0.0
    %3335 = vmatpush1.msra.mxu0 0.0
    %3336 = vmatprep.subr.mxu0 0.0
    %3337 = vmatpush1.msra.mxu0 0.0
    %3338 = vmatprep.subr.mxu0 0.0
    %3339 = vmatpush1.msra.mxu0 0.0
    %3340 = vmatprep.subr.mxu0 0.0
    %3341 = vmatpush1.msra.mxu0 0.0
    %3342 = vmatprep.subr.mxu0 0.0
    %3343 = vmatpush1.msra.mxu0 0.0
    %3344 = vmatprep.subr.mxu0 0.0
    %3345 = vmatpush1.msra.mxu0 0.0
    %3346 = vmatprep.subr.mxu0 0.0
    %3347 = vmatpush1.msra.mxu0 0.0
    %3348 = vmatprep.subr.mxu0 0.0
    %3349 = vmatpush1.msra.mxu0 0.0
    %3350 = vmatprep.subr.mxu0 0.0
    %3351 = vmatpush1.msra.mxu0 0.0
    %3352 = vmatprep.mubr.f32.mxu0 0.0
    %3353 = vmatmul.mubr.f32.gmra.mrb[0].mxu0 %v3286
    %v3354 = vpop.f32.mrb[0].mxu0
    %v3355 = vadd.f32 0.0, %v3354
    %v3356 = vpop.f32.mrb[0].mxu0
    %v3357 = vadd.f32 0.0, %v3356
    %3358 = vdwg.mxu0
    %3359 = vmatprep.subr.mxu0 %v1950
    %3360 = vmatpush1.msra.mxu0 %v1949
    %3361 = vmatprep.subr.mxu0 %v1954
    %3362 = vmatpush1.msra.mxu0 %v1953
    %3363 = vmatprep.subr.mxu0 %v1958
    %3364 = vmatpush1.msra.mxu0 %v1957
    %3365 = vmatprep.subr.mxu0 %v1962
    %3366 = vmatpush1.msra.mxu0 %v1961
    %3367 = vmatprep.subr.mxu0 %v1966
    %3368 = vmatpush1.msra.mxu0 %v1965
    %3369 = vmatprep.subr.mxu0 %v1970
    %3370 = vmatpush1.msra.mxu0 %v1969
    %3371 = vmatprep.subr.mxu0 %v1974
    %3372 = vmatpush1.msra.mxu0 %v1973
    %3373 = vmatprep.subr.mxu0 %v1978
    %3374 = vmatpush1.msra.mxu0 %v1977
    %3375 = vmatprep.subr.mxu0 %v1982
    %3376 = vmatpush1.msra.mxu0 %v1981
    %3377 = vmatprep.subr.mxu0 %v1986
    %3378 = vmatpush1.msra.mxu0 %v1985
    %3379 = vmatprep.subr.mxu0 %v1990
    %3380 = vmatpush1.msra.mxu0 %v1989
    %3381 = vmatprep.subr.mxu0 %v1994
    %3382 = vmatpush1.msra.mxu0 %v1993
    %3383 = vmatprep.subr.mxu0 %v1998
    %3384 = vmatpush1.msra.mxu0 %v1997
    %3385 = vmatprep.subr.mxu0 %v2002
    %3386 = vmatpush1.msra.mxu0 %v2001
    %3387 = vmatprep.subr.mxu0 %v2006
    %3388 = vmatpush1.msra.mxu0 %v2005
    %3389 = vmatprep.subr.mxu0 %v2010
    %3390 = vmatpush1.msra.mxu0 %v2009
    %3391 = vmatprep.subr.mxu0 0.0
    %3392 = vmatpush1.msra.mxu0 0.0
    %3393 = vmatprep.subr.mxu0 0.0
    %3394 = vmatpush1.msra.mxu0 0.0
    %3395 = vmatprep.subr.mxu0 0.0
    %3396 = vmatpush1.msra.mxu0 0.0
    %3397 = vmatprep.subr.mxu0 0.0
    %3398 = vmatpush1.msra.mxu0 0.0
    %3399 = vmatprep.subr.mxu0 0.0
    %3400 = vmatpush1.msra.mxu0 0.0
    %3401 = vmatprep.subr.mxu0 0.0
    %3402 = vmatpush1.msra.mxu0 0.0
    %3403 = vmatprep.subr.mxu0 0.0
    %3404 = vmatpush1.msra.mxu0 0.0
    %3405 = vmatprep.subr.mxu0 0.0
    %3406 = vmatpush1.msra.mxu0 0.0
    %3407 = vmatprep.subr.mxu0 0.0
    %3408 = vmatpush1.msra.mxu0 0.0
    %3409 = vmatprep.subr.mxu0 0.0
    %3410 = vmatpush1.msra.mxu0 0.0
    %3411 = vmatprep.subr.mxu0 0.0
    %3412 = vmatpush1.msra.mxu0 0.0
    %3413 = vmatprep.subr.mxu0 0.0
    %3414 = vmatpush1.msra.mxu0 0.0
    %3415 = vmatprep.subr.mxu0 0.0
    %3416 = vmatpush1.msra.mxu0 0.0
    %3417 = vmatprep.subr.mxu0 0.0
    %3418 = vmatpush1.msra.mxu0 0.0
    %3419 = vmatprep.subr.mxu0 0.0
    %3420 = vmatpush1.msra.mxu0 0.0
    %3421 = vmatprep.subr.mxu0 0.0
    %3422 = vmatpush1.msra.mxu0 0.0
    %3423 = vmatprep.mubr.f32.mxu0 0.0
    %3424 = vmatmul.mubr.f32.gmra.mrb[0].mxu0 %v3286
    %v3425 = vpop.f32.mrb[0].mxu0
    %v3426 = vadd.f32 0.0, %v3425
    %v3427 = vpop.f32.mrb[0].mxu0
    %v3428 = vadd.f32 0.0, %v3427
    %3429 = vdwg.mxu0
    %v3434 = vrot.slane %v3355, 2
    %v3435 = vrot.slane %v3357, 2
    %v3436 = vrot.slane %v3426, 2
    %v3437 = vrot.slane %v3428, 2
    %v3442 = vadd.f32 %v2101, %v3434
    %v3443 = vadd.f32 %v2103, %v3435
    %v3444 = vadd.f32 %v2172, %v3436
    %v3445 = vadd.f32 %v2174, %v3437
    %v3446 = vxor.u32 %v3442, 2147483648
    %v3447 = vmul.f32 %v3446, 1.442695
    %v3448 = vpow.pop %v3447
    %v3449 = vadd.f32 %v3448, 1.0
    %v3450 = vrcp.pop %v3449
    %v3451 = vmul.f32 1.0, %v3450
    %v3452 = vxor.u32 %v3443, 2147483648
    %v3453 = vmul.f32 %v3452, 1.442695
    %v3454 = vpow.pop %v3453
    %v3455 = vadd.f32 %v3454, 1.0
    %v3456 = vrcp.pop %v3455
    %v3457 = vmul.f32 1.0, %v3456
    %v3458 = vtanh.pop %v3444
    %v3459 = vxor.u32 %v3445, 2147483648
    %v3460 = vmul.f32 %v3459, 1.442695
    %v3461 = vpow.pop %v3460
    %v3462 = vadd.f32 %v3461, 1.0
    %v3463 = vrcp.pop %v3462
    %v3464 = vmul.f32 1.0, %v3463
    %v3466 = vrot.slane %v3282, 7
    %v3468 = vmul.f32 %v3457, %v3466
    %v3469 = vmul.f32 %v3451, %v3458
    %v3470 = vadd.f32 %v3468, %v3469
    %v3471 = vtanh.pop %v3470
    %v3472 = vmul.f32 %v3464, %v3471
    %v3474 = vrot.slane %v3472, 6
    %3476 = vmatprep.subr.mxu0 %v1948
    %3477 = vmatpush1.msra.mxu0 %v1947
    %3478 = vmatprep.subr.mxu0 %v1952
    %3479 = vmatpush1.msra.mxu0 %v1951
    %3480 = vmatprep.subr.mxu0 %v1956
    %3481 = vmatpush1.msra.mxu0 %v1955
    %3482 = vmatprep.subr.mxu0 %v1960
    %3483 = vmatpush1.msra.mxu0 %v1959
    %3484 = vmatprep.subr.mxu0 %v1964
    %3485 = vmatpush1.msra.mxu0 %v1963
    %3486 = vmatprep.subr.mxu0 %v1968
    %3487 = vmatpush1.msra.mxu0 %v1967
    %3488 = vmatprep.subr.mxu0 %v1972
    %3489 = vmatpush1.msra.mxu0 %v1971
    %3490 = vmatprep.subr.mxu0 %v1976
    %3491 = vmatpush1.msra.mxu0 %v1975
    %3492 = vmatprep.subr.mxu0 %v1980
    %3493 = vmatpush1.msra.mxu0 %v1979
    %3494 = vmatprep.subr.mxu0 %v1984
    %3495 = vmatpush1.msra.mxu0 %v1983
    %3496 = vmatprep.subr.mxu0 %v1988
    %3497 = vmatpush1.msra.mxu0 %v1987
    %3498 = vmatprep.subr.mxu0 %v1992
    %3499 = vmatpush1.msra.mxu0 %v1991
    %3500 = vmatprep.subr.mxu0 %v1996
    %3501 = vmatpush1.msra.mxu0 %v1995
    %3502 = vmatprep.subr.mxu0 %v2000
    %3503 = vmatpush1.msra.mxu0 %v1999
    %3504 = vmatprep.subr.mxu0 %v2004
    %3505 = vmatpush1.msra.mxu0 %v2003
    %3506 = vmatprep.subr.mxu0 %v2008
    %3507 = vmatpush1.msra.mxu0 %v2007
    %3508 = vmatprep.subr.mxu0 0.0
    %3509 = vmatpush1.msra.mxu0 0.0
    %3510 = vmatprep.subr.mxu0 0.0
    %3511 = vmatpush1.msra.mxu0 0.0
    %3512 = vmatprep.subr.mxu0 0.0
    %3513 = vmatpush1.msra.mxu0 0.0
    %3514 = vmatprep.subr.mxu0 0.0
    %3515 = vmatpush1.msra.mxu0 0.0
    %3516 = vmatprep.subr.mxu0 0.0
    %3517 = vmatpush1.msra.mxu0 0.0
    %3518 = vmatprep.subr.mxu0 0.0
    %3519 = vmatpush1.msra.mxu0 0.0
    %3520 = vmatprep.subr.mxu0 0.0
    %3521 = vmatpush1.msra.mxu0 0.0
    %3522 = vmatprep.subr.mxu0 0.0
    %3523 = vmatpush1.msra.mxu0 0.0
    %3524 = vmatprep.subr.mxu0 0.0
    %3525 = vmatpush1.msra.mxu0 0.0
    %3526 = vmatprep.subr.mxu0 0.0
    %3527 = vmatpush1.msra.mxu0 0.0
    %3528 = vmatprep.subr.mxu0 0.0
    %3529 = vmatpush1.msra.mxu0 0.0
    %3530 = vmatprep.subr.mxu0 0.0
    %3531 = vmatpush1.msra.mxu0 0.0
    %3532 = vmatprep.subr.mxu0 0.0
    %3533 = vmatpush1.msra.mxu0 0.0
    %3534 = vmatprep.subr.mxu0 0.0
    %3535 = vmatpush1.msra.mxu0 0.0
    %3536 = vmatprep.subr.mxu0 0.0
    %3537 = vmatpush1.msra.mxu0 0.0
    %3538 = vmatprep.subr.mxu0 0.0
    %3539 = vmatpush1.msra.mxu0 0.0
    %3540 = vmatprep.mubr.f32.mxu0 0.0
    %3541 = vmatmul.mubr.f32.gmra.mrb[0].mxu0 %v3474
    %v3542 = vpop.f32.mrb[0].mxu0
    %v3543 = vadd.f32 0.0, %v3542
    %v3544 = vpop.f32.mrb[0].mxu0
    %v3545 = vadd.f32 0.0, %v3544
    %3546 = vdwg.mxu0
    %3547 = vmatprep.subr.mxu0 %v1950
    %3548 = vmatpush1.msra.mxu0 %v1949
    %3549 = vmatprep.subr.mxu0 %v1954
    %3550 = vmatpush1.msra.mxu0 %v1953
    %3551 = vmatprep.subr.mxu0 %v1958
    %3552 = vmatpush1.msra.mxu0 %v1957
    %3553 = vmatprep.subr.mxu0 %v1962
    %3554 = vmatpush1.msra.mxu0 %v1961
    %3555 = vmatprep.subr.mxu0 %v1966
    %3556 = vmatpush1.msra.mxu0 %v1965
    %3557 = vmatprep.subr.mxu0 %v1970
    %3558 = vmatpush1.msra.mxu0 %v1969
    %3559 = vmatprep.subr.mxu0 %v1974
    %3560 = vmatpush1.msra.mxu0 %v1973
    %3561 = vmatprep.subr.mxu0 %v1978
    %3562 = vmatpush1.msra.mxu0 %v1977
    %3563 = vmatprep.subr.mxu0 %v1982
    %3564 = vmatpush1.msra.mxu0 %v1981
    %3565 = vmatprep.subr.mxu0 %v1986
    %3566 = vmatpush1.msra.mxu0 %v1985
    %3567 = vmatprep.subr.mxu0 %v1990
    %3568 = vmatpush1.msra.mxu0 %v1989
    %3569 = vmatprep.subr.mxu0 %v1994
    %3570 = vmatpush1.msra.mxu0 %v1993
    %3571 = vmatprep.subr.mxu0 %v1998
    %3572 = vmatpush1.msra.mxu0 %v1997
    %3573 = vmatprep.subr.mxu0 %v2002
    %3574 = vmatpush1.msra.mxu0 %v2001
    %3575 = vmatprep.subr.mxu0 %v2006
    %3576 = vmatpush1.msra.mxu0 %v2005
    %3577 = vmatprep.subr.mxu0 %v2010
    %3578 = vmatpush1.msra.mxu0 %v2009
    %3579 = vmatprep.subr.mxu0 0.0
    %3580 = vmatpush1.msra.mxu0 0.0
    %3581 = vmatprep.subr.mxu0 0.0
    %3582 = vmatpush1.msra.mxu0 0.0
    %3583 = vmatprep.subr.mxu0 0.0
    %3584 = vmatpush1.msra.mxu0 0.0
    %3585 = vmatprep.subr.mxu0 0.0
    %3586 = vmatpush1.msra.mxu0 0.0
    %3587 = vmatprep.subr.mxu0 0.0
    %3588 = vmatpush1.msra.mxu0 0.0
    %3589 = vmatprep.subr.mxu0 0.0
    %3590 = vmatpush1.msra.mxu0 0.0
    %3591 = vmatprep.subr.mxu0 0.0
    %3592 = vmatpush1.msra.mxu0 0.0
    %3593 = vmatprep.subr.mxu0 0.0
    %3594 = vmatpush1.msra.mxu0 0.0
    %3595 = vmatprep.subr.mxu0 0.0
    %3596 = vmatpush1.msra.mxu0 0.0
    %3597 = vmatprep.subr.mxu0 0.0
    %3598 = vmatpush1.msra.mxu0 0.0
    %3599 = vmatprep.subr.mxu0 0.0
    %3600 = vmatpush1.msra.mxu0 0.0
    %3601 = vmatprep.subr.mxu0 0.0
    %3602 = vmatpush1.msra.mxu0 0.0
    %3603 = vmatprep.subr.mxu0 0.0
    %3604 = vmatpush1.msra.mxu0 0.0
    %3605 = vmatprep.subr.mxu0 0.0
    %3606 = vmatpush1.msra.mxu0 0.0
    %3607 = vmatprep.subr.mxu0 0.0
    %3608 = vmatpush1.msra.mxu0 0.0
    %3609 = vmatprep.subr.mxu0 0.0
    %3610 = vmatpush1.msra.mxu0 0.0
    %3611 = vmatprep.mubr.f32.mxu0 0.0
    %3612 = vmatmul.mubr.f32.gmra.mrb[0].mxu0 %v3474
    %v3613 = vpop.f32.mrb[0].mxu0
    %v3614 = vadd.f32 0.0, %v3613
    %v3615 = vpop.f32.mrb[0].mxu0
    %v3616 = vadd.f32 0.0, %v3615
    %3617 = vdwg.mxu0
    %v3622 = vrot.slane %v3543, 1
    %v3623 = vrot.slane %v3545, 1
    %v3624 = vrot.slane %v3614, 1
    %v3625 = vrot.slane %v3616, 1
    %v3630 = vadd.f32 %v2101, %v3622
    %v3631 = vadd.f32 %v2103, %v3623
    %v3632 = vadd.f32 %v2172, %v3624
    %v3633 = vadd.f32 %v2174, %v3625
    %v3634 = vxor.u32 %v3630, 2147483648
    %v3635 = vmul.f32 %v3634, 1.442695
    %v3636 = vpow.pop %v3635
    %v3637 = vadd.f32 %v3636, 1.0
    %v3638 = vrcp.pop %v3637
    %v3639 = vmul.f32 1.0, %v3638
    %v3640 = vxor.u32 %v3631, 2147483648
    %v3641 = vmul.f32 %v3640, 1.442695
    %v3642 = vpow.pop %v3641
    %v3643 = vadd.f32 %v3642, 1.0
    %v3644 = vrcp.pop %v3643
    %v3645 = vmul.f32 1.0, %v3644
    %v3646 = vtanh.pop %v3632
    %v3647 = vxor.u32 %v3633, 2147483648
    %v3648 = vmul.f32 %v3647, 1.442695
    %v3649 = vpow.pop %v3648
    %v3650 = vadd.f32 %v3649, 1.0
    %v3651 = vrcp.pop %v3650
    %v3652 = vmul.f32 1.0, %v3651
    %v3654 = vrot.slane %v3470, 7
    %v3656 = vmul.f32 %v3645, %v3654
    %v3657 = vmul.f32 %v3639, %v3646
    %v3658 = vadd.f32 %v3656, %v3657
    %v3659 = vtanh.pop %v3658
    %v3660 = vmul.f32 %v3652, %v3659
    %3661 = vst [vmem:[#allocation11 - $0x6] sm:$0x80] %v3660
    %3662 = vst [vmem:[#allocation13 - $0x6] sm:$0x80] %v3658
    %v3663 = vsel %vm1867, %v2347, %v2532
    %v3664 = vsel %vm1869, %v3663, %v2720
    %v3665 = vsel %vm1871, %v3664, %v2908
    %v3666 = vsel %vm1873, %v3665, %v3096
    %v3667 = vsel %vm1875, %v3666, %v3284
    %v3668 = vsel %vm1877, %v3667, %v3472
    %v3669 = vsel %vm1879, %v3668, %v3660
    %v3670 = vld [vmem:[#allocation8] sm:$0xff]
    %v3671 = vld [vmem:[#allocation8 + $0x8] sm:$0xff]
    %v3672 = vld [vmem:[#allocation8 + $0x10] sm:$0xff]
    %v3673 = vld [vmem:[#allocation8 + $0x18] sm:$0xff]
    %v3674 = vld [vmem:[#allocation8 + $0x20] sm:$0xff]
    %v3675 = vld [vmem:[#allocation8 + $0x28] sm:$0xff]
    %v3676 = vld [vmem:[#allocation8 + $0x30] sm:$0xff]
    %v3677 = vld [vmem:[#allocation8 + $0x38] sm:$0xff]
    %v3678 = vld [vmem:[#allocation8 + $0x40] sm:$0xff]
    %v3679 = vld [vmem:[#allocation8 + $0x48] sm:$0xff]
    %v3680 = vld [vmem:[#allocation8 + $0x50] sm:$0xff]
    %v3681 = vld [vmem:[#allocation8 + $0x58] sm:$0xff]
    %v3682 = vld [vmem:[#allocation8 + $0x60] sm:$0xff]
    %v3683 = vld [vmem:[#allocation8 + $0x68] sm:$0xff]
    %v3684 = vld [vmem:[#allocation8 + $0x70] sm:$0xff]
    %v3685 = vld [vmem:[#allocation8 + $0x78] sm:$0xff]
    %v3686 = vld [vmem:[%s7] sm:$0x1]
    %v3688 = vlaneseq
    %v3689 = vshrl.u32 %v3688, 7
    %v3690 = vsub.s32 0, %v3689
    %v3691 = vrot.slane %v3686, %v3690
    %3693 = vmatprep.subr.mxu0 0.0
    %3694 = vmatpush1.msra.mxu0 %v3670
    %3695 = vmatprep.subr.mxu0 0.0
    %3696 = vmatpush1.msra.mxu0 %v3671
    %3697 = vmatprep.subr.mxu0 0.0
    %3698 = vmatpush1.msra.mxu0 %v3672
    %3699 = vmatprep.subr.mxu0 0.0
    %3700 = vmatpush1.msra.mxu0 %v3673
    %3701 = vmatprep.subr.mxu0 0.0
    %3702 = vmatpush1.msra.mxu0 %v3674
    %3703 = vmatprep.subr.mxu0 0.0
    %3704 = vmatpush1.msra.mxu0 %v3675
    %3705 = vmatprep.subr.mxu0 0.0
    %3706 = vmatpush1.msra.mxu0 %v3676
    %3707 = vmatprep.subr.mxu0 0.0
    %3708 = vmatpush1.msra.mxu0 %v3677
    %3709 = vmatprep.subr.mxu0 0.0
    %3710 = vmatpush1.msra.mxu0 %v3678
    %3711 = vmatprep.subr.mxu0 0.0
    %3712 = vmatpush1.msra.mxu0 %v3679
    %3713 = vmatprep.subr.mxu0 0.0
    %3714 = vmatpush1.msra.mxu0 %v3680
    %3715 = vmatprep.subr.mxu0 0.0
    %3716 = vmatpush1.msra.mxu0 %v3681
    %3717 = vmatprep.subr.mxu0 0.0
    %3718 = vmatpush1.msra.mxu0 %v3682
    %3719 = vmatprep.subr.mxu0 0.0
    %3720 = vmatpush1.msra.mxu0 %v3683
    %3721 = vmatprep.subr.mxu0 0.0
    %3722 = vmatpush1.msra.mxu0 %v3684
    %3723 = vmatprep.subr.mxu0 0.0
    %3724 = vmatpush1.msra.mxu0 %v3685
    %3725 = vmatprep.subr.mxu0 0.0
    %3726 = vmatpush1.msra.mxu0 0.0
    %3727 = vmatprep.subr.mxu0 0.0
    %3728 = vmatpush1.msra.mxu0 0.0
    %3729 = vmatprep.subr.mxu0 0.0
    %3730 = vmatpush1.msra.mxu0 0.0
    %3731 = vmatprep.subr.mxu0 0.0
    %3732 = vmatpush1.msra.mxu0 0.0
    %3733 = vmatprep.subr.mxu0 0.0
    %3734 = vmatpush1.msra.mxu0 0.0
    %3735 = vmatprep.subr.mxu0 0.0
    %3736 = vmatpush1.msra.mxu0 0.0
    %3737 = vmatprep.subr.mxu0 0.0
    %3738 = vmatpush1.msra.mxu0 0.0
    %3739 = vmatprep.subr.mxu0 0.0
    %3740 = vmatpush1.msra.mxu0 0.0
    %3741 = vmatprep.subr.mxu0 0.0
    %3742 = vmatpush1.msra.mxu0 0.0
    %3743 = vmatprep.subr.mxu0 0.0
    %3744 = vmatpush1.msra.mxu0 0.0
    %3745 = vmatprep.subr.mxu0 0.0
    %3746 = vmatpush1.msra.mxu0 0.0
    %3747 = vmatprep.subr.mxu0 0.0
    %3748 = vmatpush1.msra.mxu0 0.0
    %3749 = vmatprep.subr.mxu0 0.0
    %3750 = vmatpush1.msra.mxu0 0.0
    %3751 = vmatprep.subr.mxu0 0.0
    %3752 = vmatpush1.msra.mxu0 0.0
    %3753 = vmatprep.subr.mxu0 0.0
    %3754 = vmatpush1.msra.mxu0 0.0
    %3755 = vmatprep.subr.mxu0 0.0
    %3756 = vmatpush1.msra.mxu0 0.0
    %3757 = vmatprep.mubr.f32.mxu0 0.0
    %3758 = vmatmul.mubr.f32.gmra.mrb[0].mxu0 %v3669
    %v3759 = vpop.f32.mrb[0].mxu0
    %v3760 = vadd.f32 %v3691, %v3759
    %v3761 = vpop.f32.mrb[0].mxu0
    %3762 = vdwg.mxu0
    %v3763 = vxor.u32 %v3760, 2147483648
    %v3764 = vmul.f32 %v3763, 1.442695
    %v3765 = vpow.pop %v3764
    %v3766 = vadd.f32 %v3765, 1.0
    %v3767 = vrcp.pop %v3766
    %v3768 = vmul.f32 1.0, %v3767
    %3769 = vst [vmem:[#allocation10] sm:$0xff] %v3768
    // Predicated region
    $region50: #{_predict_time_forward.1} parent=1 // pred_check
      _
    $region51: #{_predict_time_forward.1} parent=1 // pred_check_branch
      %3771 = sbr.rel (0) target = $region53
    $region52: #{_predict_time_forward.1} parent=1 // pred_region
      %s3773 = ssub.s32 128, 128
      %3774 = vsyncadd [#allocation4], %s3773
      %s3776 = sshll.u32 [#allocation10], 4
      %s3777 = int_to_ptr.vmem [resolvable:$true] %s3776
      %3779 = dma.vmem_to_hbm [thread:$0]  %s3777, 128, %s8, [#allocation4]
    $region53: #{_predict_time_forward.1} parent=1 // pred_fallthru
      _
    // Predicated region
    $region54: #{_predict_time_forward.1} parent=1 // pred_check
      _
    $region55: #{_predict_time_forward.1} parent=1 // pred_check_branch
      %3781 = sbr.rel (0) target = $region57
    $region56: #{_predict_time_forward.1} parent=1 // pred_region
      %s3783 = ssub.s32 32, 32
      %3784 = vsyncadd [#allocation12], %s3783
      %s3786 = sshll.u32 [#allocation11], 4
      %s3787 = int_to_ptr.vmem [resolvable:$true] %s3786
      %3789 = dma.vmem_to_hbm [thread:$0]  %s3787, 32, %s9, [#allocation12]
    $region57: #{_predict_time_forward.1} parent=1 // pred_fallthru
      _
    // Predicated region
    $region58: #{_predict_time_forward.1} parent=1 // pred_check
      _
    $region59: #{_predict_time_forward.1} parent=1 // pred_check_branch
      %3791 = sbr.rel (0) target = $region61
    $region60: #{_predict_time_forward.1} parent=1 // pred_region
      %s3793 = ssub.s32 32, 32
      %3794 = vsyncadd [#allocation12], %s3793
      %s3796 = sshll.u32 [#allocation13], 4
      %s3797 = int_to_ptr.vmem [resolvable:$true] %s3796
      %3799 = dma.vmem_to_hbm [thread:$0]  %s3797, 32, %s10, [#allocation12]
    $region61: #{_predict_time_forward.1} parent=1 // pred_fallthru
      _
    // Predicated region
    $region62: #{_predict_time_forward.1} parent=1 // pred_check
      _
    $region63: #{_predict_time_forward.1} parent=1 // pred_check_branch
      %3801 = sbr.rel (0) target = $region65
    $region64: #{_predict_time_forward.1} parent=1 // pred_region
      %3802 = dma.done [#allocation4], 128
    $region65: #{_predict_time_forward.1} parent=1 // pred_fallthru
      _
    // Predicated region
    $region66: #{_predict_time_forward.1} parent=1 // pred_check
      _
    $region67: #{_predict_time_forward.1} parent=1 // pred_check_branch
      %3804 = sbr.rel (0) target = $region69
    $region68: #{_predict_time_forward.1} parent=1 // pred_region
      %3805 = dma.done [#allocation12], 32
    $region69: #{_predict_time_forward.1} parent=1 // pred_fallthru
      _
    // Predicated region
    $region70: #{_predict_time_forward.1} parent=1 // pred_check
      _
    $region71: #{_predict_time_forward.1} parent=1 // pred_check_branch
      %3807 = sbr.rel (0) target = $region73
    $region72: #{_predict_time_forward.1} parent=1 // pred_region
      %3808 = dma.done [#allocation12], 32
    $region73: #{_predict_time_forward.1} parent=1 // pred_fallthru
      _
    %3809 = vsyncpa [#allocation3], 1
    %3810 = vsyncpa [#allocation6], 1
    %3811 = vsyncpa [#allocation9], 1
    %3812 = vsyncpa [#allocation4], 1
    %3813 = vsyncpa [#allocation12], 1

</llo_original>
